<compile_context>
chip_gen: v7x
topology: tpu7x:2x2x1
jax: 0.10.0
libtpu: 0.0.40
codegen_flags: <defaults>
</compile_context>

<pallas_src>
import functools

import numpy as np
import jax
import jax.numpy as jnp
from jax import lax
from jax.experimental import pallas as pl
from jax.experimental.pallas import tpu as pltpu


# bf16 MXU inputs (full-rate on v5e/v6e/v7x); accumulation is f32 via
# preferred_element_type, GroupNorm/PReLU math stays f32.
MATMUL_DTYPE = jnp.bfloat16

# F.upsample(..., mode='bilinear') in modern PyTorch == F.interpolate with
# align_corners=False (half-pixel centers + edge clamp).  Flip this if
# matching a pre-0.4 PyTorch checkpoint that used align_corners=True.
ALIGN_CORNERS = False


# ----------------------------------------------------------------------------
# In-kernel BB block: 3x (conv3x3 -> GroupNorm(1) -> PReLU), residual added to
# the last norm output before the activation.  Operates on one image packed as
# (H, W*C) f32; conv weights are block-Toeplitz row matrices (no column halo).
# ----------------------------------------------------------------------------
def _bb_body(x, wconv_ref, gba_ref, xpad_ref):
    """x        : (H, W*C) f32 value (channels packed into lanes).
    wconv_ref: (3, 3, W*C, W*C) bf16 block-Toeplitz matrices
               [conv_idx, ky, (w_in, cin), (w_out, cout)].
    gba_ref  : (3, W*C) f32 = gamma / beta / PReLU alpha, each tiled W times.
    xpad_ref : (H+2, W*C) bf16 VMEM scratch; rows 0 and H+1 are the zero halo."""
    H, WC = x.shape

    gba = gba_ref[...]
    gamma, beta, alpha = gba[0:1, :], gba[1:2, :], gba[2:3, :]

    # Zero only the two halo rows; the interior is fully rewritten per conv.
    zrow = jnp.zeros((1, WC), xpad_ref.dtype)
    xpad_ref[0:1, :] = zrow
    xpad_ref[H + 1:H + 2, :] = zrow

    def conv3x3(v, k):
        xpad_ref[1:H + 1, :] = v.astype(xpad_ref.dtype)
        acc = jnp.zeros((H, WC), jnp.float32)
        for ky in range(3):
            acc = acc + jnp.dot(xpad_ref[ky:ky + H, :],       # bf16 slab
                                wconv_ref[k, ky],              # bf16 weights
                                preferred_element_type=jnp.float32)
        return acc

    inv_n = 1.0 / float(H * WC)

    def gn_act(h, res=None):
        # One-pass GroupNorm(num_groups=1) stats in f32: two independent
        # reductions instead of two dependent ones.  eps = 1e-5 (torch GN).
        mean = jnp.sum(h) * inv_n
        var = jnp.sum(h * h) * inv_n - mean * mean
        y = (h - mean) * lax.rsqrt(var + 1e-5)
        y = y * gamma + beta
        if res is not None:
            y = y + res
        return jnp.where(y >= 0.0, y, alpha * y)

    x1 = gn_act(conv3x3(x, 0))
    x2 = gn_act(conv3x3(x1, 1))
    return gn_act(conv3x3(x2, 2), res=x)


# ----------------------------------------------------------------------------
# Fully fused decoder kernel: one grid step == one image through all 3 stages.
# ----------------------------------------------------------------------------
def _decoder_kernel(x_ref, e3_ref, e2_ref, e1_ref,
                    w1_ref, g1_ref, ah12_ref, gm12_ref,
                    w2_ref, g2_ref, ah23_ref, gm23_ref,
                    w3_ref, g3_ref,
                    o_ref, xpad1, xpad2, xpad3):
    # ---- stage 1: d1out = BB1(x + e3out) ------------------------------------
    x = x_ref[0].astype(jnp.float32) + e3_ref[0].astype(jnp.float32)
    d1 = _bb_body(x, w1_ref, g1_ref, xpad1)

    # ---- glue 1->2: conv1x1 + bilinear upsample + skip-add ------------------
    # conv1x1 and the W-interpolation are one matmul (kron-packed gm12);
    # the H-interpolation is a second matmul (both on the MXU).
    t = jnp.dot(d1.astype(MATMUL_DTYPE), gm12_ref[...],
                preferred_element_type=jnp.float32)             # (H1, W2*C2)
    u = jnp.dot(ah12_ref[...], t.astype(MATMUL_DTYPE),
                preferred_element_type=jnp.float32)             # (H2, W2*C2)
    x2 = u + e2_ref[0].astype(jnp.float32)
    d2 = _bb_body(x2, w2_ref, g2_ref, xpad2)

    # ---- glue 2->3 ----------------------------------------------------------
    t = jnp.dot(d2.astype(MATMUL_DTYPE), gm23_ref[...],
                preferred_element_type=jnp.float32)             # (H2, W3*C3)
    u = jnp.dot(ah23_ref[...], t.astype(MATMUL_DTYPE),
                preferred_element_type=jnp.float32)             # (H3, W3*C3)
    x3 = u + e1_ref[0].astype(jnp.float32)
    d3 = _bb_body(x3, w3_ref, g3_ref, xpad3)

    o_ref[...] = d3[None, :, :].astype(o_ref.dtype)


# ----------------------------------------------------------------------------
# One-time parameter packing (hoisted out of the forward path)
# ----------------------------------------------------------------------------
def _shift_pattern(W):
    """S[kx, w_in, w_out] = 1 iff w_in == w_out + kx - 1 (zero padding implied
    by simply omitting out-of-range taps -> no column halo needed)."""
    S = np.zeros((3, W, W), np.float32)
    for kx in range(3):
        for w_out in range(W):
            w_in = w_out + kx - 1
            if 0 <= w_in < W:
                S[kx, w_in, w_out] = 1.0
    return S


def _conv3x3_rowmats(w_hwio, W):
    """HWIO (3,3,Ci,Co) -> (3, W*Ci, W*Co): a 'same' 3x3 conv on a channels-
    packed (H, W*C) image becomes  sum_ky  xpad[ky:ky+H, :] @ mat[ky]."""
    Ci, Co = w_hwio.shape[2], w_hwio.shape[3]
    S = jnp.asarray(_shift_pattern(W))
    K = jnp.einsum('xpw,yxio->ypiwo', S, w_hwio)      # (3, W, Ci, W, Co)
    return K.reshape(3, W * Ci, W * Co)


@functools.lru_cache(maxsize=None)
def _bilinear_matrix(out_size, in_size):
    if ALIGN_CORNERS and out_size > 1:
        src = np.arange(out_size, dtype=np.float64) * (in_size - 1) / (out_size - 1)
    else:  # PyTorch F.interpolate default: half-pixel centers + clamp
        scale = in_size / out_size
        src = (np.arange(out_size, dtype=np.float64) + 0.5) * scale - 0.5
    src = np.clip(src, 0.0, in_size - 1.0)
    i0 = np.floor(src).astype(np.int64)
    i1 = np.minimum(i0 + 1, in_size - 1)
    frac = (src - i0).astype(np.float32)
    A = np.zeros((out_size, in_size), np.float32)
    rows = np.arange(out_size)
    A[rows, i0] += 1.0 - frac
    A[rows, i1] += frac
    return A


def prepare_decoder(params, spatial):
    """Pack raw parameters into kernel-ready layouts (bf16 for MXU operands).
    spatial = ((H1, W1), (H2, W2), (H3, W3)) for the d1/d2/d3 stages."""
    (H1, W1), (H2, W2), (H3, W3) = spatial

    def bb_pack(p, W):
        wconv = jnp.stack([_conv3x3_rowmats(p["w1"], W),
                           _conv3x3_rowmats(p["w2"], W),
                           _conv3x3_rowmats(p["w3"], W)]).astype(MATMUL_DTYPE)
        gba = jnp.stack([jnp.tile(p["gamma"], W),
                         jnp.tile(p["beta"], W),
                         jnp.tile(p["alpha"], W)]).astype(jnp.float32)
        return wconv, gba                                       # (3,3,WC,WC), (3,WC)

    d1 = bb_pack(params["d1"], W1)
    d2 = bb_pack(params["d2"], W2)
    d3 = bb_pack(params["d3"], W3)

    # conv1x1 + bilinear W-interp as one matrix: kron(AW^T, W1x1) (Wi*Ci, Wo*Co)
    aw12 = jnp.asarray(_bilinear_matrix(W2, W1))
    aw23 = jnp.asarray(_bilinear_matrix(W3, W2))
    glue12 = (jnp.asarray(_bilinear_matrix(H2, H1)).astype(MATMUL_DTYPE),
              jnp.kron(aw12.T, params["w_d1td2"]).astype(MATMUL_DTYPE))
    glue23 = (jnp.asarray(_bilinear_matrix(H3, H2)).astype(MATMUL_DTYPE),
              jnp.kron(aw23.T, params["w_d2td3"]).astype(MATMUL_DTYPE))

    return dict(d1=d1, d2=d2, d3=d3, glue12=glue12, glue23=glue23)


# ----------------------------------------------------------------------------
# Decoder forward (NCHW in / NCHW out, like the PyTorch module)
# ----------------------------------------------------------------------------
def _nchw_to_packed(x):
    N, C, H, W = x.shape
    return jnp.transpose(x, (0, 2, 3, 1)).reshape(N, H, W * C)


def decoder_forward(x, e3out, e2out, e1out, prep):
    N, C1, H1, W1 = x.shape          # 4*channel
    _, C2, H2, W2 = e2out.shape      # 2*channel
    _, C3, H3, W3 = e1out.shape      # channel

    x2d = _nchw_to_packed(x)
    e3d = _nchw_to_packed(e3out)
    e2d = _nchw_to_packed(e2out)
    e1d = _nchw_to_packed(e1out)

    w1, g1 = prep["d1"]
    w2, g2 = prep["d2"]
    w3, g3 = prep["d3"]
    ah12, gm12 = prep["glue12"]
    ah23, gm23 = prep["glue23"]

    def const_spec(a):
        nd = a.ndim
        return pl.BlockSpec(a.shape, lambda n, _nd=nd: (0,) * _nd)

    out = pl.pallas_call(
        _decoder_kernel,
        out_shape=jax.ShapeDtypeStruct((N, H3, W3 * C3), jnp.float32),
        grid=(N,),
        in_specs=[
            pl.BlockSpec((1, H1, W1 * C1), lambda n: (n, 0, 0)),   # x
            pl.BlockSpec((1, H1, W1 * C1), lambda n: (n, 0, 0)),   # e3out
            pl.BlockSpec((1, H2, W2 * C2), lambda n: (n, 0, 0)),   # e2out
            pl.BlockSpec((1, H3, W3 * C3), lambda n: (n, 0, 0)),   # e1out
            const_spec(w1), const_spec(g1),
            const_spec(ah12), const_spec(gm12),
            const_spec(w2), const_spec(g2),
            const_spec(ah23), const_spec(gm23),
            const_spec(w3), const_spec(g3),
        ],
        out_specs=pl.BlockSpec((1, H3, W3 * C3), lambda n: (n, 0, 0)),
        scratch_shapes=[
            pltpu.VMEM((H1 + 2, W1 * C1), MATMUL_DTYPE),
            pltpu.VMEM((H2 + 2, W2 * C2), MATMUL_DTYPE),
            pltpu.VMEM((H3 + 2, W3 * C3), MATMUL_DTYPE),
        ],
        compiler_params=pltpu.CompilerParams(
            dimension_semantics=("parallel",),       # 2 images -> both v7x TCs
            vmem_limit_bytes=32 * 1024 * 1024),
    )(x2d, e3d, e2d, e1d, w1, g1, ah12, gm12, w2, g2, ah23, gm23, w3, g3)

    return jnp.transpose(out.reshape(N, H3, W3, C3), (0, 3, 1, 2))


# ----------------------------------------------------------------------------
# Deterministic synthetic parameters (shapes follow the nn.Module)
# ----------------------------------------------------------------------------
def init_bb_params(key, ch):
    k1, k2, k3, k4, k5 = jax.random.split(key, 5)
    s = 0.1
    return dict(
        w1=jax.random.normal(k1, (3, 3, ch, ch), jnp.float32) * s,   # HWIO
        w2=jax.random.normal(k2, (3, 3, ch, ch), jnp.float32) * s,
        w3=jax.random.normal(k3, (3, 3, ch, ch), jnp.float32) * s,
        gamma=1.0 + 0.05 * jax.random.normal(k4, (ch,), jnp.float32),
        beta=0.05 * jax.random.normal(k5, (ch,), jnp.float32),
        alpha=jnp.full((ch,), 0.25, jnp.float32),                    # PReLU init
    )


def init_decoder_params(key, channel):
    k1, k2, k3, k4, k5 = jax.random.split(key, 5)
    return dict(
        d1=init_bb_params(k1, 4 * channel),
        d2=init_bb_params(k2, 2 * channel),
        d3=init_bb_params(k3, channel),
        # 1x1 conv weights stored as (Cin, Cout); convs have bias=False.
        w_d1td2=jax.random.normal(k4, (4 * channel, 2 * channel), jnp.float32) * 0.1,
        w_d2td3=jax.random.normal(k5, (2 * channel, channel), jnp.float32) * 0.1,
    )


if __name__ == "__main__":
    key = jax.random.PRNGKey(0)
    channel = 4
    N = 2
    kx, k3, k2, k1, kp = jax.random.split(key, 5)

    # NCHW inputs matching the PyTorch Decoder's expected pyramid shapes
    x     = jax.random.normal(kx, (N, 4 * channel, 4, 4), jnp.float32)
    e3out = jax.random.normal(k3, (N, 4 * channel, 4, 4), jnp.float32)
    e2out = jax.random.normal(k2, (N, 2 * channel, 8, 8), jnp.float32)
    e1out = jax.random.normal(k1, (N, channel, 16, 16), jnp.float32)

    params = init_decoder_params(kp, channel)
    prep = prepare_decoder(params, spatial=((4, 4), (8, 8), (16, 16)))

    fwd = jax.jit(decoder_forward)
    out = jax.block_until_ready(fwd(x, e3out, e2out, e1out, prep))
    assert out.shape == (N, channel, 16, 16)
    assert bool(jnp.all(jnp.isfinite(out)))
    print("KERNEL_OK")
</pallas_src>

<mosaic_0001>
module attributes {stable_mosaic.version = 11 : i64} {
  func.func @_decoder_kernel(%arg0: i32, %arg1: memref<1x4x64xf32, #tpu.memory_space<vmem>>, %arg2: memref<1x4x64xf32, #tpu.memory_space<vmem>>, %arg3: memref<1x8x64xf32, #tpu.memory_space<vmem>>, %arg4: memref<1x16x64xf32, #tpu.memory_space<vmem>>, %arg5: memref<3x3x64x64xbf16, #tpu.memory_space<vmem>>, %arg6: memref<3x64xf32, #tpu.memory_space<vmem>>, %arg7: memref<8x4xbf16, #tpu.memory_space<vmem>>, %arg8: memref<64x64xbf16, #tpu.memory_space<vmem>>, %arg9: memref<3x3x64x64xbf16, #tpu.memory_space<vmem>>, %arg10: memref<3x64xf32, #tpu.memory_space<vmem>>, %arg11: memref<16x8xbf16, #tpu.memory_space<vmem>>, %arg12: memref<64x64xbf16, #tpu.memory_space<vmem>>, %arg13: memref<3x3x64x64xbf16, #tpu.memory_space<vmem>>, %arg14: memref<3x64xf32, #tpu.memory_space<vmem>>, %arg15: memref<1x16x64xf32, #tpu.memory_space<vmem>>, %arg16: memref<6x64xbf16, #tpu.memory_space<vmem>>, %arg17: memref<10x64xbf16, #tpu.memory_space<vmem>>, %arg18: memref<18x64xbf16, #tpu.memory_space<vmem>>) attributes {dimension_semantics = [#tpu.dimension_semantics<parallel>], iteration_bounds = array<i64: 2>, scalar_prefetch = 0 : i64, scratch_operands = 3 : i64, tpu.core_type = #tpu.core_type<tc>, window_params = [{transform_indices = @transform_0, window_bounds = array<i64: 1, 4, 64>}, {transform_indices = @transform_1, window_bounds = array<i64: 1, 4, 64>}, {transform_indices = @transform_2, window_bounds = array<i64: 1, 8, 64>}, {transform_indices = @transform_3, window_bounds = array<i64: 1, 16, 64>}, {pipeline_mode = #tpu.pipeline_mode<synchronous>, transform_indices = @transform_4, window_bounds = array<i64: 3, 3, 64, 64>}, {pipeline_mode = #tpu.pipeline_mode<synchronous>, transform_indices = @transform_5, window_bounds = array<i64: 3, 64>}, {pipeline_mode = #tpu.pipeline_mode<synchronous>, transform_indices = @transform_6, window_bounds = array<i64: 8, 4>}, {pipeline_mode = #tpu.pipeline_mode<synchronous>, transform_indices = @transform_7, window_bounds = array<i64: 64, 64>}, {pipeline_mode = #tpu.pipeline_mode<synchronous>, transform_indices = @transform_8, window_bounds = array<i64: 3, 3, 64, 64>}, {pipeline_mode = #tpu.pipeline_mode<synchronous>, transform_indices = @transform_9, window_bounds = array<i64: 3, 64>}, {pipeline_mode = #tpu.pipeline_mode<synchronous>, transform_indices = @transform_10, window_bounds = array<i64: 16, 8>}, {pipeline_mode = #tpu.pipeline_mode<synchronous>, transform_indices = @transform_11, window_bounds = array<i64: 64, 64>}, {pipeline_mode = #tpu.pipeline_mode<synchronous>, transform_indices = @transform_12, window_bounds = array<i64: 3, 3, 64, 64>}, {pipeline_mode = #tpu.pipeline_mode<synchronous>, transform_indices = @transform_13, window_bounds = array<i64: 3, 64>}, {transform_indices = @transform_14, window_bounds = array<i64: 1, 16, 64>}]} {
    %c0 = arith.constant 0 : index
    %c0_0 = arith.constant 0 : index
    %c0_1 = arith.constant 0 : index
    %0 = vector.load %arg1[%c0, %c0_0, %c0_1] : memref<1x4x64xf32, #tpu.memory_space<vmem>>, vector<1x4x64xf32>
    %1 = vector.shape_cast %0 : vector<1x4x64xf32> to vector<4x64xf32>
    %c0_2 = arith.constant 0 : index
    %c0_3 = arith.constant 0 : index
    %c0_4 = arith.constant 0 : index
    %2 = vector.load %arg2[%c0_2, %c0_3, %c0_4] : memref<1x4x64xf32, #tpu.memory_space<vmem>>, vector<1x4x64xf32>
    %3 = vector.shape_cast %2 : vector<1x4x64xf32> to vector<4x64xf32>
    %4 = arith.addf %1, %3 : vector<4x64xf32>
    %c0_5 = arith.constant 0 : index
    %c0_6 = arith.constant 0 : index
    %5 = vector.load %arg6[%c0_5, %c0_6] : memref<3x64xf32, #tpu.memory_space<vmem>>, vector<3x64xf32>
    %6 = vector.extract_strided_slice %5 {offsets = [0, 0], sizes = [1, 64], strides = [1, 1]} : vector<3x64xf32> to vector<1x64xf32>
    %7 = vector.extract_strided_slice %5 {offsets = [1, 0], sizes = [1, 64], strides = [1, 1]} : vector<3x64xf32> to vector<1x64xf32>
    %8 = vector.extract_strided_slice %5 {offsets = [2, 0], sizes = [1, 64], strides = [1, 1]} : vector<3x64xf32> to vector<1x64xf32>
    %cst = arith.constant 0.000000e+00 : bf16
    %9 = vector.broadcast %cst : bf16 to vector<1x64xbf16>
    %c0_7 = arith.constant 0 : index
    %c0_8 = arith.constant 0 : index
    %10 = vector.load %arg16[%c0_7, %c0_8] : memref<6x64xbf16, #tpu.memory_space<vmem>>, vector<1x64xbf16>
    tpu.vector_store %arg16[%c0_7, %c0_8], %9 {strides = array<i32>} : memref<6x64xbf16, #tpu.memory_space<vmem>>, vector<1x64xbf16>,
    %c5 = arith.constant 5 : index
    %c0_9 = arith.constant 0 : index
    %11 = vector.load %arg16[%c5, %c0_9] : memref<6x64xbf16, #tpu.memory_space<vmem>>, vector<1x64xbf16>
    tpu.vector_store %arg16[%c5, %c0_9], %9 {strides = array<i32>} : memref<6x64xbf16, #tpu.memory_space<vmem>>, vector<1x64xbf16>,
    %12 = arith.truncf %4 : vector<4x64xf32> to vector<4x64xbf16>
    %c1 = arith.constant 1 : index
    %c0_10 = arith.constant 0 : index
    %13 = vector.load %arg16[%c1, %c0_10] : memref<6x64xbf16, #tpu.memory_space<vmem>>, vector<4x64xbf16>
    tpu.vector_store %arg16[%c1, %c0_10], %12 {strides = array<i32>} : memref<6x64xbf16, #tpu.memory_space<vmem>>, vector<4x64xbf16>,
    %cst_11 = arith.constant 0.000000e+00 : f32
    %14 = vector.broadcast %cst_11 : f32 to vector<4x64xf32>
    %c0_12 = arith.constant 0 : index
    %c0_13 = arith.constant 0 : index
    %15 = vector.load %arg16[%c0_12, %c0_13] : memref<6x64xbf16, #tpu.memory_space<vmem>>, vector<4x64xbf16>
    %c0_14 = arith.constant 0 : index
    %c0_15 = arith.constant 0 : index
    %c0_16 = arith.constant 0 : index
    %c0_17 = arith.constant 0 : index
    %16 = vector.load %arg5[%c0_14, %c0_15, %c0_16, %c0_17] : memref<3x3x64x64xbf16, #tpu.memory_space<vmem>>, vector<1x1x64x64xbf16>
    %17 = vector.shape_cast %16 : vector<1x1x64x64xbf16> to vector<64x64xbf16>
    %cst_18 = arith.constant dense<0.000000e+00> : vector<4x64xf32>
    %18 = tpu.matmul %15, %17, %cst_18 {dimension_numbers = #tpu.dot_dimension_numbers<[1], [0], [0], [1], [0, 0, 1, 1], [], []>} : vector<4x64xbf16>, vector<64x64xbf16>, vector<4x64xf32> -> vector<4x64xf32>
    %19 = arith.addf %14, %18 : vector<4x64xf32>
    %c1_19 = arith.constant 1 : index
    %c0_20 = arith.constant 0 : index
    %20 = vector.load %arg16[%c1_19, %c0_20] : memref<6x64xbf16, #tpu.memory_space<vmem>>, vector<4x64xbf16>
    %c0_21 = arith.constant 0 : index
    %c1_22 = arith.constant 1 : index
    %c0_23 = arith.constant 0 : index
    %c0_24 = arith.constant 0 : index
    %21 = vector.load %arg5[%c0_21, %c1_22, %c0_23, %c0_24] : memref<3x3x64x64xbf16, #tpu.memory_space<vmem>>, vector<1x1x64x64xbf16>
    %22 = vector.shape_cast %21 : vector<1x1x64x64xbf16> to vector<64x64xbf16>
    %cst_25 = arith.constant dense<0.000000e+00> : vector<4x64xf32>
    %23 = tpu.matmul %20, %22, %cst_25 {dimension_numbers = #tpu.dot_dimension_numbers<[1], [0], [0], [1], [0, 0, 1, 1], [], []>} : vector<4x64xbf16>, vector<64x64xbf16>, vector<4x64xf32> -> vector<4x64xf32>
    %24 = arith.addf %19, %23 : vector<4x64xf32>
    %c2 = arith.constant 2 : index
    %c0_26 = arith.constant 0 : index
    %25 = vector.load %arg16[%c2, %c0_26] : memref<6x64xbf16, #tpu.memory_space<vmem>>, vector<4x64xbf16>
    %c0_27 = arith.constant 0 : index
    %c2_28 = arith.constant 2 : index
    %c0_29 = arith.constant 0 : index
    %c0_30 = arith.constant 0 : index
    %26 = vector.load %arg5[%c0_27, %c2_28, %c0_29, %c0_30] : memref<3x3x64x64xbf16, #tpu.memory_space<vmem>>, vector<1x1x64x64xbf16>
    %27 = vector.shape_cast %26 : vector<1x1x64x64xbf16> to vector<64x64xbf16>
    %cst_31 = arith.constant dense<0.000000e+00> : vector<4x64xf32>
    %28 = tpu.matmul %25, %27, %cst_31 {dimension_numbers = #tpu.dot_dimension_numbers<[1], [0], [0], [1], [0, 0, 1, 1], [], []>} : vector<4x64xbf16>, vector<64x64xbf16>, vector<4x64xf32> -> vector<4x64xf32>
    %29 = arith.addf %24, %28 : vector<4x64xf32>
    %30 = vector.shape_cast %29 : vector<4x64xf32> to vector<1x4x64xf32>
    %cst_32 = arith.constant dense<0.000000e+00> : vector<1xf32>
    %31 = vector.multi_reduction <add>, %30, %cst_32 [1, 2] : vector<1x4x64xf32> to vector<1xf32>
    %32 = vector.shape_cast %31 : vector<1xf32> to vector<1x1x1xf32>
    %33 = vector.extract %32[0, 0, 0] : f32 from vector<1x1x1xf32>
    %cst_33 = arith.constant 3.906250e-03 : f32
    %34 = arith.mulf %33, %cst_33 : f32
    %35 = arith.mulf %29, %29 : vector<4x64xf32>
    %36 = vector.shape_cast %35 : vector<4x64xf32> to vector<1x4x64xf32>
    %cst_34 = arith.constant dense<0.000000e+00> : vector<1xf32>
    %37 = vector.multi_reduction <add>, %36, %cst_34 [1, 2] : vector<1x4x64xf32> to vector<1xf32>
    %38 = vector.shape_cast %37 : vector<1xf32> to vector<1x1x1xf32>
    %39 = vector.extract %38[0, 0, 0] : f32 from vector<1x1x1xf32>
    %cst_35 = arith.constant 3.906250e-03 : f32
    %40 = arith.mulf %39, %cst_35 : f32
    %41 = arith.mulf %34, %34 : f32
    %42 = arith.subf %40, %41 : f32
    %43 = vector.broadcast %34 : f32 to vector<4x64xf32>
    %44 = arith.subf %29, %43 : vector<4x64xf32>
    %cst_36 = arith.constant 9.99999974E-6 : f32
    %45 = arith.addf %42, %cst_36 : f32
    %46 = math.rsqrt %45 : f32
    %47 = vector.broadcast %46 : f32 to vector<4x64xf32>
    %48 = arith.mulf %44, %47 : vector<4x64xf32>
    %49 = vector.broadcast %6 : vector<1x64xf32> to vector<4x64xf32>
    %50 = arith.mulf %48, %49 : vector<4x64xf32>
    %51 = vector.broadcast %7 : vector<1x64xf32> to vector<4x64xf32>
    %52 = arith.addf %50, %51 : vector<4x64xf32>
    %cst_37 = arith.constant 0.000000e+00 : f32
    %53 = vector.broadcast %cst_37 : f32 to vector<4x64xf32>
    %54 = arith.cmpf oge, %52, %53 : vector<4x64xf32>
    %55 = vector.broadcast %8 : vector<1x64xf32> to vector<4x64xf32>
    %56 = arith.mulf %55, %52 : vector<4x64xf32>
    %57 = arith.select %54, %52, %56 : vector<4x64xi1>, vector<4x64xf32>
    %58 = arith.truncf %57 : vector<4x64xf32> to vector<4x64xbf16>
    %c1_38 = arith.constant 1 : index
    %c0_39 = arith.constant 0 : index
    %59 = vector.load %arg16[%c1_38, %c0_39] : memref<6x64xbf16, #tpu.memory_space<vmem>>, vector<4x64xbf16>
    tpu.vector_store %arg16[%c1_38, %c0_39], %58 {strides = array<i32>} : memref<6x64xbf16, #tpu.memory_space<vmem>>, vector<4x64xbf16>,
    %cst_40 = arith.constant 0.000000e+00 : f32
    %60 = vector.broadcast %cst_40 : f32 to vector<4x64xf32>
    %c0_41 = arith.constant 0 : index
    %c0_42 = arith.constant 0 : index
    %61 = vector.load %arg16[%c0_41, %c0_42] : memref<6x64xbf16, #tpu.memory_space<vmem>>, vector<4x64xbf16>
    %c1_43 = arith.constant 1 : index
    %c0_44 = arith.constant 0 : index
    %c0_45 = arith.constant 0 : index
    %c0_46 = arith.constant 0 : index
    %62 = vector.load %arg5[%c1_43, %c0_44, %c0_45, %c0_46] : memref<3x3x64x64xbf16, #tpu.memory_space<vmem>>, vector<1x1x64x64xbf16>
    %63 = vector.shape_cast %62 : vector<1x1x64x64xbf16> to vector<64x64xbf16>
    %cst_47 = arith.constant dense<0.000000e+00> : vector<4x64xf32>
    %64 = tpu.matmul %61, %63, %cst_47 {dimension_numbers = #tpu.dot_dimension_numbers<[1], [0], [0], [1], [0, 0, 1, 1], [], []>} : vector<4x64xbf16>, vector<64x64xbf16>, vector<4x64xf32> -> vector<4x64xf32>
    %65 = arith.addf %60, %64 : vector<4x64xf32>
    %c1_48 = arith.constant 1 : index
    %c0_49 = arith.constant 0 : index
    %66 = vector.load %arg16[%c1_48, %c0_49] : memref<6x64xbf16, #tpu.memory_space<vmem>>, vector<4x64xbf16>
    %c1_50 = arith.constant 1 : index
    %c1_51 = arith.constant 1 : index
    %c0_52 = arith.constant 0 : index
    %c0_53 = arith.constant 0 : index
    %67 = vector.load %arg5[%c1_50, %c1_51, %c0_52, %c0_53] : memref<3x3x64x64xbf16, #tpu.memory_space<vmem>>, vector<1x1x64x64xbf16>
    %68 = vector.shape_cast %67 : vector<1x1x64x64xbf16> to vector<64x64xbf16>
    %cst_54 = arith.constant dense<0.000000e+00> : vector<4x64xf32>
    %69 = tpu.matmul %66, %68, %cst_54 {dimension_numbers = #tpu.dot_dimension_numbers<[1], [0], [0], [1], [0, 0, 1, 1], [], []>} : vector<4x64xbf16>, vector<64x64xbf16>, vector<4x64xf32> -> vector<4x64xf32>
    %70 = arith.addf %65, %69 : vector<4x64xf32>
    %c2_55 = arith.constant 2 : index
    %c0_56 = arith.constant 0 : index
    %71 = vector.load %arg16[%c2_55, %c0_56] : memref<6x64xbf16, #tpu.memory_space<vmem>>, vector<4x64xbf16>
    %c1_57 = arith.constant 1 : index
    %c2_58 = arith.constant 2 : index
    %c0_59 = arith.constant 0 : index
    %c0_60 = arith.constant 0 : index
    %72 = vector.load %arg5[%c1_57, %c2_58, %c0_59, %c0_60] : memref<3x3x64x64xbf16, #tpu.memory_space<vmem>>, vector<1x1x64x64xbf16>
    %73 = vector.shape_cast %72 : vector<1x1x64x64xbf16> to vector<64x64xbf16>
    %cst_61 = arith.constant dense<0.000000e+00> : vector<4x64xf32>
    %74 = tpu.matmul %71, %73, %cst_61 {dimension_numbers = #tpu.dot_dimension_numbers<[1], [0], [0], [1], [0, 0, 1, 1], [], []>} : vector<4x64xbf16>, vector<64x64xbf16>, vector<4x64xf32> -> vector<4x64xf32>
    %75 = arith.addf %70, %74 : vector<4x64xf32>
    %76 = vector.shape_cast %75 : vector<4x64xf32> to vector<1x4x64xf32>
    %cst_62 = arith.constant dense<0.000000e+00> : vector<1xf32>
    %77 = vector.multi_reduction <add>, %76, %cst_62 [1, 2] : vector<1x4x64xf32> to vector<1xf32>
    %78 = vector.shape_cast %77 : vector<1xf32> to vector<1x1x1xf32>
    %79 = vector.extract %78[0, 0, 0] : f32 from vector<1x1x1xf32>
    %cst_63 = arith.constant 3.906250e-03 : f32
    %80 = arith.mulf %79, %cst_63 : f32
    %81 = arith.mulf %75, %75 : vector<4x64xf32>
    %82 = vector.shape_cast %81 : vector<4x64xf32> to vector<1x4x64xf32>
    %cst_64 = arith.constant dense<0.000000e+00> : vector<1xf32>
    %83 = vector.multi_reduction <add>, %82, %cst_64 [1, 2] : vector<1x4x64xf32> to vector<1xf32>
    %84 = vector.shape_cast %83 : vector<1xf32> to vector<1x1x1xf32>
    %85 = vector.extract %84[0, 0, 0] : f32 from vector<1x1x1xf32>
    %cst_65 = arith.constant 3.906250e-03 : f32
    %86 = arith.mulf %85, %cst_65 : f32
    %87 = arith.mulf %80, %80 : f32
    %88 = arith.subf %86, %87 : f32
    %89 = vector.broadcast %80 : f32 to vector<4x64xf32>
    %90 = arith.subf %75, %89 : vector<4x64xf32>
    %cst_66 = arith.constant 9.99999974E-6 : f32
    %91 = arith.addf %88, %cst_66 : f32
    %92 = math.rsqrt %91 : f32
    %93 = vector.broadcast %92 : f32 to vector<4x64xf32>
    %94 = arith.mulf %90, %93 : vector<4x64xf32>
    %95 = vector.broadcast %6 : vector<1x64xf32> to vector<4x64xf32>
    %96 = arith.mulf %94, %95 : vector<4x64xf32>
    %97 = vector.broadcast %7 : vector<1x64xf32> to vector<4x64xf32>
    %98 = arith.addf %96, %97 : vector<4x64xf32>
    %cst_67 = arith.constant 0.000000e+00 : f32
    %99 = vector.broadcast %cst_67 : f32 to vector<4x64xf32>
    %100 = arith.cmpf oge, %98, %99 : vector<4x64xf32>
    %101 = vector.broadcast %8 : vector<1x64xf32> to vector<4x64xf32>
    %102 = arith.mulf %101, %98 : vector<4x64xf32>
    %103 = arith.select %100, %98, %102 : vector<4x64xi1>, vector<4x64xf32>
    %104 = arith.truncf %103 : vector<4x64xf32> to vector<4x64xbf16>
    %c1_68 = arith.constant 1 : index
    %c0_69 = arith.constant 0 : index
    %105 = vector.load %arg16[%c1_68, %c0_69] : memref<6x64xbf16, #tpu.memory_space<vmem>>, vector<4x64xbf16>
    tpu.vector_store %arg16[%c1_68, %c0_69], %104 {strides = array<i32>} : memref<6x64xbf16, #tpu.memory_space<vmem>>, vector<4x64xbf16>,
    %cst_70 = arith.constant 0.000000e+00 : f32
    %106 = vector.broadcast %cst_70 : f32 to vector<4x64xf32>
    %c0_71 = arith.constant 0 : index
    %c0_72 = arith.constant 0 : index
    %107 = vector.load %arg16[%c0_71, %c0_72] : memref<6x64xbf16, #tpu.memory_space<vmem>>, vector<4x64xbf16>
    %c2_73 = arith.constant 2 : index
    %c0_74 = arith.constant 0 : index
    %c0_75 = arith.constant 0 : index
    %c0_76 = arith.constant 0 : index
    %108 = vector.load %arg5[%c2_73, %c0_74, %c0_75, %c0_76] : memref<3x3x64x64xbf16, #tpu.memory_space<vmem>>, vector<1x1x64x64xbf16>
    %109 = vector.shape_cast %108 : vector<1x1x64x64xbf16> to vector<64x64xbf16>
    %cst_77 = arith.constant dense<0.000000e+00> : vector<4x64xf32>
    %110 = tpu.matmul %107, %109, %cst_77 {dimension_numbers = #tpu.dot_dimension_numbers<[1], [0], [0], [1], [0, 0, 1, 1], [], []>} : vector<4x64xbf16>, vector<64x64xbf16>, vector<4x64xf32> -> vector<4x64xf32>
    %111 = arith.addf %106, %110 : vector<4x64xf32>
    %c1_78 = arith.constant 1 : index
    %c0_79 = arith.constant 0 : index
    %112 = vector.load %arg16[%c1_78, %c0_79] : memref<6x64xbf16, #tpu.memory_space<vmem>>, vector<4x64xbf16>
    %c2_80 = arith.constant 2 : index
    %c1_81 = arith.constant 1 : index
    %c0_82 = arith.constant 0 : index
    %c0_83 = arith.constant 0 : index
    %113 = vector.load %arg5[%c2_80, %c1_81, %c0_82, %c0_83] : memref<3x3x64x64xbf16, #tpu.memory_space<vmem>>, vector<1x1x64x64xbf16>
    %114 = vector.shape_cast %113 : vector<1x1x64x64xbf16> to vector<64x64xbf16>
    %cst_84 = arith.constant dense<0.000000e+00> : vector<4x64xf32>
    %115 = tpu.matmul %112, %114, %cst_84 {dimension_numbers = #tpu.dot_dimension_numbers<[1], [0], [0], [1], [0, 0, 1, 1], [], []>} : vector<4x64xbf16>, vector<64x64xbf16>, vector<4x64xf32> -> vector<4x64xf32>
    %116 = arith.addf %111, %115 : vector<4x64xf32>
    %c2_85 = arith.constant 2 : index
    %c0_86 = arith.constant 0 : index
    %117 = vector.load %arg16[%c2_85, %c0_86] : memref<6x64xbf16, #tpu.memory_space<vmem>>, vector<4x64xbf16>
    %c2_87 = arith.constant 2 : index
    %c2_88 = arith.constant 2 : index
    %c0_89 = arith.constant 0 : index
    %c0_90 = arith.constant 0 : index
    %118 = vector.load %arg5[%c2_87, %c2_88, %c0_89, %c0_90] : memref<3x3x64x64xbf16, #tpu.memory_space<vmem>>, vector<1x1x64x64xbf16>
    %119 = vector.shape_cast %118 : vector<1x1x64x64xbf16> to vector<64x64xbf16>
    %cst_91 = arith.constant dense<0.000000e+00> : vector<4x64xf32>
    %120 = tpu.matmul %117, %119, %cst_91 {dimension_numbers = #tpu.dot_dimension_numbers<[1], [0], [0], [1], [0, 0, 1, 1], [], []>} : vector<4x64xbf16>, vector<64x64xbf16>, vector<4x64xf32> -> vector<4x64xf32>
    %121 = arith.addf %116, %120 : vector<4x64xf32>
    %122 = vector.shape_cast %121 : vector<4x64xf32> to vector<1x4x64xf32>
    %cst_92 = arith.constant dense<0.000000e+00> : vector<1xf32>
    %123 = vector.multi_reduction <add>, %122, %cst_92 [1, 2] : vector<1x4x64xf32> to vector<1xf32>
    %124 = vector.shape_cast %123 : vector<1xf32> to vector<1x1x1xf32>
    %125 = vector.extract %124[0, 0, 0] : f32 from vector<1x1x1xf32>
    %cst_93 = arith.constant 3.906250e-03 : f32
    %126 = arith.mulf %125, %cst_93 : f32
    %127 = arith.mulf %121, %121 : vector<4x64xf32>
    %128 = vector.shape_cast %127 : vector<4x64xf32> to vector<1x4x64xf32>
    %cst_94 = arith.constant dense<0.000000e+00> : vector<1xf32>
    %129 = vector.multi_reduction <add>, %128, %cst_94 [1, 2] : vector<1x4x64xf32> to vector<1xf32>
    %130 = vector.shape_cast %129 : vector<1xf32> to vector<1x1x1xf32>
    %131 = vector.extract %130[0, 0, 0] : f32 from vector<1x1x1xf32>
    %cst_95 = arith.constant 3.906250e-03 : f32
    %132 = arith.mulf %131, %cst_95 : f32
    %133 = arith.mulf %126, %126 : f32
    %134 = arith.subf %132, %133 : f32
    %135 = vector.broadcast %126 : f32 to vector<4x64xf32>
    %136 = arith.subf %121, %135 : vector<4x64xf32>
    %cst_96 = arith.constant 9.99999974E-6 : f32
    %137 = arith.addf %134, %cst_96 : f32
    %138 = math.rsqrt %137 : f32
    %139 = vector.broadcast %138 : f32 to vector<4x64xf32>
    %140 = arith.mulf %136, %139 : vector<4x64xf32>
    %141 = vector.broadcast %6 : vector<1x64xf32> to vector<4x64xf32>
    %142 = arith.mulf %140, %141 : vector<4x64xf32>
    %143 = vector.broadcast %7 : vector<1x64xf32> to vector<4x64xf32>
    %144 = arith.addf %142, %143 : vector<4x64xf32>
    %145 = arith.addf %144, %4 : vector<4x64xf32>
    %cst_97 = arith.constant 0.000000e+00 : f32
    %146 = vector.broadcast %cst_97 : f32 to vector<4x64xf32>
    %147 = arith.cmpf oge, %145, %146 : vector<4x64xf32>
    %148 = vector.broadcast %8 : vector<1x64xf32> to vector<4x64xf32>
    %149 = arith.mulf %148, %145 : vector<4x64xf32>
    %150 = arith.select %147, %145, %149 : vector<4x64xi1>, vector<4x64xf32>
    %151 = arith.truncf %150 : vector<4x64xf32> to vector<4x64xbf16>
    %c0_98 = arith.constant 0 : index
    %c0_99 = arith.constant 0 : index
    %152 = vector.load %arg8[%c0_98, %c0_99] : memref<64x64xbf16, #tpu.memory_space<vmem>>, vector<64x64xbf16>
    %cst_100 = arith.constant dense<0.000000e+00> : vector<4x64xf32>
    %153 = tpu.matmul %151, %152, %cst_100 {dimension_numbers = #tpu.dot_dimension_numbers<[1], [0], [0], [1], [0, 0, 1, 1], [], []>} : vector<4x64xbf16>, vector<64x64xbf16>, vector<4x64xf32> -> vector<4x64xf32>
    %c0_101 = arith.constant 0 : index
    %c0_102 = arith.constant 0 : index
    %154 = vector.load %arg7[%c0_101, %c0_102] : memref<8x4xbf16, #tpu.memory_space<vmem>>, vector<8x4xbf16>
    %155 = arith.truncf %153 : vector<4x64xf32> to vector<4x64xbf16>
    %cst_103 = arith.constant dense<0.000000e+00> : vector<8x64xf32>
    %156 = tpu.matmul %154, %155, %cst_103 {dimension_numbers = #tpu.dot_dimension_numbers<[1], [0], [0], [1], [0, 0, 1, 1], [], []>} : vector<8x4xbf16>, vector<4x64xbf16>, vector<8x64xf32> -> vector<8x64xf32>
    %c0_104 = arith.constant 0 : index
    %c0_105 = arith.constant 0 : index
    %c0_106 = arith.constant 0 : index
    %157 = vector.load %arg3[%c0_104, %c0_105, %c0_106] : memref<1x8x64xf32, #tpu.memory_space<vmem>>, vector<1x8x64xf32>
    %158 = vector.shape_cast %157 : vector<1x8x64xf32> to vector<8x64xf32>
    %159 = arith.addf %156, %158 : vector<8x64xf32>
    %c0_107 = arith.constant 0 : index
    %c0_108 = arith.constant 0 : index
    %160 = vector.load %arg10[%c0_107, %c0_108] : memref<3x64xf32, #tpu.memory_space<vmem>>, vector<3x64xf32>
    %161 = vector.extract_strided_slice %160 {offsets = [0, 0], sizes = [1, 64], strides = [1, 1]} : vector<3x64xf32> to vector<1x64xf32>
    %162 = vector.extract_strided_slice %160 {offsets = [1, 0], sizes = [1, 64], strides = [1, 1]} : vector<3x64xf32> to vector<1x64xf32>
    %163 = vector.extract_strided_slice %160 {offsets = [2, 0], sizes = [1, 64], strides = [1, 1]} : vector<3x64xf32> to vector<1x64xf32>
    %cst_109 = arith.constant 0.000000e+00 : bf16
    %164 = vector.broadcast %cst_109 : bf16 to vector<1x64xbf16>
    %c0_110 = arith.constant 0 : index
    %c0_111 = arith.constant 0 : index
    %165 = vector.load %arg17[%c0_110, %c0_111] : memref<10x64xbf16, #tpu.memory_space<vmem>>, vector<1x64xbf16>
    tpu.vector_store %arg17[%c0_110, %c0_111], %164 {strides = array<i32>} : memref<10x64xbf16, #tpu.memory_space<vmem>>, vector<1x64xbf16>,
    %c9 = arith.constant 9 : index
    %c0_112 = arith.constant 0 : index
    %166 = vector.load %arg17[%c9, %c0_112] : memref<10x64xbf16, #tpu.memory_space<vmem>>, vector<1x64xbf16>
    tpu.vector_store %arg17[%c9, %c0_112], %164 {strides = array<i32>} : memref<10x64xbf16, #tpu.memory_space<vmem>>, vector<1x64xbf16>,
    %167 = arith.truncf %159 : vector<8x64xf32> to vector<8x64xbf16>
    %c1_113 = arith.constant 1 : index
    %c0_114 = arith.constant 0 : index
    %168 = vector.load %arg17[%c1_113, %c0_114] : memref<10x64xbf16, #tpu.memory_space<vmem>>, vector<8x64xbf16>
    tpu.vector_store %arg17[%c1_113, %c0_114], %167 {strides = array<i32>} : memref<10x64xbf16, #tpu.memory_space<vmem>>, vector<8x64xbf16>,
    %cst_115 = arith.constant 0.000000e+00 : f32
    %169 = vector.broadcast %cst_115 : f32 to vector<8x64xf32>
    %c0_116 = arith.constant 0 : index
    %c0_117 = arith.constant 0 : index
    %170 = vector.load %arg17[%c0_116, %c0_117] : memref<10x64xbf16, #tpu.memory_space<vmem>>, vector<8x64xbf16>
    %c0_118 = arith.constant 0 : index
    %c0_119 = arith.constant 0 : index
    %c0_120 = arith.constant 0 : index
    %c0_121 = arith.constant 0 : index
    %171 = vector.load %arg9[%c0_118, %c0_119, %c0_120, %c0_121] : memref<3x3x64x64xbf16, #tpu.memory_space<vmem>>, vector<1x1x64x64xbf16>
    %172 = vector.shape_cast %171 : vector<1x1x64x64xbf16> to vector<64x64xbf16>
    %cst_122 = arith.constant dense<0.000000e+00> : vector<8x64xf32>
    %173 = tpu.matmul %170, %172, %cst_122 {dimension_numbers = #tpu.dot_dimension_numbers<[1], [0], [0], [1], [0, 0, 1, 1], [], []>} : vector<8x64xbf16>, vector<64x64xbf16>, vector<8x64xf32> -> vector<8x64xf32>
    %174 = arith.addf %169, %173 : vector<8x64xf32>
    %c1_123 = arith.constant 1 : index
    %c0_124 = arith.constant 0 : index
    %175 = vector.load %arg17[%c1_123, %c0_124] : memref<10x64xbf16, #tpu.memory_space<vmem>>, vector<8x64xbf16>
    %c0_125 = arith.constant 0 : index
    %c1_126 = arith.constant 1 : index
    %c0_127 = arith.constant 0 : index
    %c0_128 = arith.constant 0 : index
    %176 = vector.load %arg9[%c0_125, %c1_126, %c0_127, %c0_128] : memref<3x3x64x64xbf16, #tpu.memory_space<vmem>>, vector<1x1x64x64xbf16>
    %177 = vector.shape_cast %176 : vector<1x1x64x64xbf16> to vector<64x64xbf16>
    %cst_129 = arith.constant dense<0.000000e+00> : vector<8x64xf32>
    %178 = tpu.matmul %175, %177, %cst_129 {dimension_numbers = #tpu.dot_dimension_numbers<[1], [0], [0], [1], [0, 0, 1, 1], [], []>} : vector<8x64xbf16>, vector<64x64xbf16>, vector<8x64xf32> -> vector<8x64xf32>
    %179 = arith.addf %174, %178 : vector<8x64xf32>
    %c2_130 = arith.constant 2 : index
    %c0_131 = arith.constant 0 : index
    %180 = vector.load %arg17[%c2_130, %c0_131] : memref<10x64xbf16, #tpu.memory_space<vmem>>, vector<8x64xbf16>
    %c0_132 = arith.constant 0 : index
    %c2_133 = arith.constant 2 : index
    %c0_134 = arith.constant 0 : index
    %c0_135 = arith.constant 0 : index
    %181 = vector.load %arg9[%c0_132, %c2_133, %c0_134, %c0_135] : memref<3x3x64x64xbf16, #tpu.memory_space<vmem>>, vector<1x1x64x64xbf16>
    %182 = vector.shape_cast %181 : vector<1x1x64x64xbf16> to vector<64x64xbf16>
    %cst_136 = arith.constant dense<0.000000e+00> : vector<8x64xf32>
    %183 = tpu.matmul %180, %182, %cst_136 {dimension_numbers = #tpu.dot_dimension_numbers<[1], [0], [0], [1], [0, 0, 1, 1], [], []>} : vector<8x64xbf16>, vector<64x64xbf16>, vector<8x64xf32> -> vector<8x64xf32>
    %184 = arith.addf %179, %183 : vector<8x64xf32>
    %185 = vector.shape_cast %184 : vector<8x64xf32> to vector<1x8x64xf32>
    %cst_137 = arith.constant dense<0.000000e+00> : vector<1xf32>
    %186 = vector.multi_reduction <add>, %185, %cst_137 [1, 2] : vector<1x8x64xf32> to vector<1xf32>
    %187 = vector.shape_cast %186 : vector<1xf32> to vector<1x1x1xf32>
    %188 = vector.extract %187[0, 0, 0] : f32 from vector<1x1x1xf32>
    %cst_138 = arith.constant 0.001953125 : f32
    %189 = arith.mulf %188, %cst_138 : f32
    %190 = arith.mulf %184, %184 : vector<8x64xf32>
    %191 = vector.shape_cast %190 : vector<8x64xf32> to vector<1x8x64xf32>
    %cst_139 = arith.constant dense<0.000000e+00> : vector<1xf32>
    %192 = vector.multi_reduction <add>, %191, %cst_139 [1, 2] : vector<1x8x64xf32> to vector<1xf32>
    %193 = vector.shape_cast %192 : vector<1xf32> to vector<1x1x1xf32>
    %194 = vector.extract %193[0, 0, 0] : f32 from vector<1x1x1xf32>
    %cst_140 = arith.constant 0.001953125 : f32
    %195 = arith.mulf %194, %cst_140 : f32
    %196 = arith.mulf %189, %189 : f32
    %197 = arith.subf %195, %196 : f32
    %198 = vector.broadcast %189 : f32 to vector<8x64xf32>
    %199 = arith.subf %184, %198 : vector<8x64xf32>
    %cst_141 = arith.constant 9.99999974E-6 : f32
    %200 = arith.addf %197, %cst_141 : f32
    %201 = math.rsqrt %200 : f32
    %202 = vector.broadcast %201 : f32 to vector<8x64xf32>
    %203 = arith.mulf %199, %202 : vector<8x64xf32>
    %204 = vector.broadcast %161 : vector<1x64xf32> to vector<8x64xf32>
    %205 = arith.mulf %203, %204 : vector<8x64xf32>
    %206 = vector.broadcast %162 : vector<1x64xf32> to vector<8x64xf32>
    %207 = arith.addf %205, %206 : vector<8x64xf32>
    %cst_142 = arith.constant 0.000000e+00 : f32
    %208 = vector.broadcast %cst_142 : f32 to vector<8x64xf32>
    %209 = arith.cmpf oge, %207, %208 : vector<8x64xf32>
    %210 = vector.broadcast %163 : vector<1x64xf32> to vector<8x64xf32>
    %211 = arith.mulf %210, %207 : vector<8x64xf32>
    %212 = arith.select %209, %207, %211 : vector<8x64xi1>, vector<8x64xf32>
    %213 = arith.truncf %212 : vector<8x64xf32> to vector<8x64xbf16>
    %c1_143 = arith.constant 1 : index
    %c0_144 = arith.constant 0 : index
    %214 = vector.load %arg17[%c1_143, %c0_144] : memref<10x64xbf16, #tpu.memory_space<vmem>>, vector<8x64xbf16>
    tpu.vector_store %arg17[%c1_143, %c0_144], %213 {strides = array<i32>} : memref<10x64xbf16, #tpu.memory_space<vmem>>, vector<8x64xbf16>,
    %cst_145 = arith.constant 0.000000e+00 : f32
    %215 = vector.broadcast %cst_145 : f32 to vector<8x64xf32>
    %c0_146 = arith.constant 0 : index
    %c0_147 = arith.constant 0 : index
    %216 = vector.load %arg17[%c0_146, %c0_147] : memref<10x64xbf16, #tpu.memory_space<vmem>>, vector<8x64xbf16>
    %c1_148 = arith.constant 1 : index
    %c0_149 = arith.constant 0 : index
    %c0_150 = arith.constant 0 : index
    %c0_151 = arith.constant 0 : index
    %217 = vector.load %arg9[%c1_148, %c0_149, %c0_150, %c0_151] : memref<3x3x64x64xbf16, #tpu.memory_space<vmem>>, vector<1x1x64x64xbf16>
    %218 = vector.shape_cast %217 : vector<1x1x64x64xbf16> to vector<64x64xbf16>
    %cst_152 = arith.constant dense<0.000000e+00> : vector<8x64xf32>
    %219 = tpu.matmul %216, %218, %cst_152 {dimension_numbers = #tpu.dot_dimension_numbers<[1], [0], [0], [1], [0, 0, 1, 1], [], []>} : vector<8x64xbf16>, vector<64x64xbf16>, vector<8x64xf32> -> vector<8x64xf32>
    %220 = arith.addf %215, %219 : vector<8x64xf32>
    %c1_153 = arith.constant 1 : index
    %c0_154 = arith.constant 0 : index
    %221 = vector.load %arg17[%c1_153, %c0_154] : memref<10x64xbf16, #tpu.memory_space<vmem>>, vector<8x64xbf16>
    %c1_155 = arith.constant 1 : index
    %c1_156 = arith.constant 1 : index
    %c0_157 = arith.constant 0 : index
    %c0_158 = arith.constant 0 : index
    %222 = vector.load %arg9[%c1_155, %c1_156, %c0_157, %c0_158] : memref<3x3x64x64xbf16, #tpu.memory_space<vmem>>, vector<1x1x64x64xbf16>
    %223 = vector.shape_cast %222 : vector<1x1x64x64xbf16> to vector<64x64xbf16>
    %cst_159 = arith.constant dense<0.000000e+00> : vector<8x64xf32>
    %224 = tpu.matmul %221, %223, %cst_159 {dimension_numbers = #tpu.dot_dimension_numbers<[1], [0], [0], [1], [0, 0, 1, 1], [], []>} : vector<8x64xbf16>, vector<64x64xbf16>, vector<8x64xf32> -> vector<8x64xf32>
    %225 = arith.addf %220, %224 : vector<8x64xf32>
    %c2_160 = arith.constant 2 : index
    %c0_161 = arith.constant 0 : index
    %226 = vector.load %arg17[%c2_160, %c0_161] : memref<10x64xbf16, #tpu.memory_space<vmem>>, vector<8x64xbf16>
    %c1_162 = arith.constant 1 : index
    %c2_163 = arith.constant 2 : index
    %c0_164 = arith.constant 0 : index
    %c0_165 = arith.constant 0 : index
    %227 = vector.load %arg9[%c1_162, %c2_163, %c0_164, %c0_165] : memref<3x3x64x64xbf16, #tpu.memory_space<vmem>>, vector<1x1x64x64xbf16>
    %228 = vector.shape_cast %227 : vector<1x1x64x64xbf16> to vector<64x64xbf16>
    %cst_166 = arith.constant dense<0.000000e+00> : vector<8x64xf32>
    %229 = tpu.matmul %226, %228, %cst_166 {dimension_numbers = #tpu.dot_dimension_numbers<[1], [0], [0], [1], [0, 0, 1, 1], [], []>} : vector<8x64xbf16>, vector<64x64xbf16>, vector<8x64xf32> -> vector<8x64xf32>
    %230 = arith.addf %225, %229 : vector<8x64xf32>
    %231 = vector.shape_cast %230 : vector<8x64xf32> to vector<1x8x64xf32>
    %cst_167 = arith.constant dense<0.000000e+00> : vector<1xf32>
    %232 = vector.multi_reduction <add>, %231, %cst_167 [1, 2] : vector<1x8x64xf32> to vector<1xf32>
    %233 = vector.shape_cast %232 : vector<1xf32> to vector<1x1x1xf32>
    %234 = vector.extract %233[0, 0, 0] : f32 from vector<1x1x1xf32>
    %cst_168 = arith.constant 0.001953125 : f32
    %235 = arith.mulf %234, %cst_168 : f32
    %236 = arith.mulf %230, %230 : vector<8x64xf32>
    %237 = vector.shape_cast %236 : vector<8x64xf32> to vector<1x8x64xf32>
    %cst_169 = arith.constant dense<0.000000e+00> : vector<1xf32>
    %238 = vector.multi_reduction <add>, %237, %cst_169 [1, 2] : vector<1x8x64xf32> to vector<1xf32>
    %239 = vector.shape_cast %238 : vector<1xf32> to vector<1x1x1xf32>
    %240 = vector.extract %239[0, 0, 0] : f32 from vector<1x1x1xf32>
    %cst_170 = arith.constant 0.001953125 : f32
    %241 = arith.mulf %240, %cst_170 : f32
    %242 = arith.mulf %235, %235 : f32
    %243 = arith.subf %241, %242 : f32
    %244 = vector.broadcast %235 : f32 to vector<8x64xf32>
    %245 = arith.subf %230, %244 : vector<8x64xf32>
    %cst_171 = arith.constant 9.99999974E-6 : f32
    %246 = arith.addf %243, %cst_171 : f32
    %247 = math.rsqrt %246 : f32
    %248 = vector.broadcast %247 : f32 to vector<8x64xf32>
    %249 = arith.mulf %245, %248 : vector<8x64xf32>
    %250 = vector.broadcast %161 : vector<1x64xf32> to vector<8x64xf32>
    %251 = arith.mulf %249, %250 : vector<8x64xf32>
    %252 = vector.broadcast %162 : vector<1x64xf32> to vector<8x64xf32>
    %253 = arith.addf %251, %252 : vector<8x64xf32>
    %cst_172 = arith.constant 0.000000e+00 : f32
    %254 = vector.broadcast %cst_172 : f32 to vector<8x64xf32>
    %255 = arith.cmpf oge, %253, %254 : vector<8x64xf32>
    %256 = vector.broadcast %163 : vector<1x64xf32> to vector<8x64xf32>
    %257 = arith.mulf %256, %253 : vector<8x64xf32>
    %258 = arith.select %255, %253, %257 : vector<8x64xi1>, vector<8x64xf32>
    %259 = arith.truncf %258 : vector<8x64xf32> to vector<8x64xbf16>
    %c1_173 = arith.constant 1 : index
    %c0_174 = arith.constant 0 : index
    %260 = vector.load %arg17[%c1_173, %c0_174] : memref<10x64xbf16, #tpu.memory_space<vmem>>, vector<8x64xbf16>
    tpu.vector_store %arg17[%c1_173, %c0_174], %259 {strides = array<i32>} : memref<10x64xbf16, #tpu.memory_space<vmem>>, vector<8x64xbf16>,
    %cst_175 = arith.constant 0.000000e+00 : f32
    %261 = vector.broadcast %cst_175 : f32 to vector<8x64xf32>
    %c0_176 = arith.constant 0 : index
    %c0_177 = arith.constant 0 : index
    %262 = vector.load %arg17[%c0_176, %c0_177] : memref<10x64xbf16, #tpu.memory_space<vmem>>, vector<8x64xbf16>
    %c2_178 = arith.constant 2 : index
    %c0_179 = arith.constant 0 : index
    %c0_180 = arith.constant 0 : index
    %c0_181 = arith.constant 0 : index
    %263 = vector.load %arg9[%c2_178, %c0_179, %c0_180, %c0_181] : memref<3x3x64x64xbf16, #tpu.memory_space<vmem>>, vector<1x1x64x64xbf16>
    %264 = vector.shape_cast %263 : vector<1x1x64x64xbf16> to vector<64x64xbf16>
    %cst_182 = arith.constant dense<0.000000e+00> : vector<8x64xf32>
    %265 = tpu.matmul %262, %264, %cst_182 {dimension_numbers = #tpu.dot_dimension_numbers<[1], [0], [0], [1], [0, 0, 1, 1], [], []>} : vector<8x64xbf16>, vector<64x64xbf16>, vector<8x64xf32> -> vector<8x64xf32>
    %266 = arith.addf %261, %265 : vector<8x64xf32>
    %c1_183 = arith.constant 1 : index
    %c0_184 = arith.constant 0 : index
    %267 = vector.load %arg17[%c1_183, %c0_184] : memref<10x64xbf16, #tpu.memory_space<vmem>>, vector<8x64xbf16>
    %c2_185 = arith.constant 2 : index
    %c1_186 = arith.constant 1 : index
    %c0_187 = arith.constant 0 : index
    %c0_188 = arith.constant 0 : index
    %268 = vector.load %arg9[%c2_185, %c1_186, %c0_187, %c0_188] : memref<3x3x64x64xbf16, #tpu.memory_space<vmem>>, vector<1x1x64x64xbf16>
    %269 = vector.shape_cast %268 : vector<1x1x64x64xbf16> to vector<64x64xbf16>
    %cst_189 = arith.constant dense<0.000000e+00> : vector<8x64xf32>
    %270 = tpu.matmul %267, %269, %cst_189 {dimension_numbers = #tpu.dot_dimension_numbers<[1], [0], [0], [1], [0, 0, 1, 1], [], []>} : vector<8x64xbf16>, vector<64x64xbf16>, vector<8x64xf32> -> vector<8x64xf32>
    %271 = arith.addf %266, %270 : vector<8x64xf32>
    %c2_190 = arith.constant 2 : index
    %c0_191 = arith.constant 0 : index
    %272 = vector.load %arg17[%c2_190, %c0_191] : memref<10x64xbf16, #tpu.memory_space<vmem>>, vector<8x64xbf16>
    %c2_192 = arith.constant 2 : index
    %c2_193 = arith.constant 2 : index
    %c0_194 = arith.constant 0 : index
    %c0_195 = arith.constant 0 : index
    %273 = vector.load %arg9[%c2_192, %c2_193, %c0_194, %c0_195] : memref<3x3x64x64xbf16, #tpu.memory_space<vmem>>, vector<1x1x64x64xbf16>
    %274 = vector.shape_cast %273 : vector<1x1x64x64xbf16> to vector<64x64xbf16>
    %cst_196 = arith.constant dense<0.000000e+00> : vector<8x64xf32>
    %275 = tpu.matmul %272, %274, %cst_196 {dimension_numbers = #tpu.dot_dimension_numbers<[1], [0], [0], [1], [0, 0, 1, 1], [], []>} : vector<8x64xbf16>, vector<64x64xbf16>, vector<8x64xf32> -> vector<8x64xf32>
    %276 = arith.addf %271, %275 : vector<8x64xf32>
    %277 = vector.shape_cast %276 : vector<8x64xf32> to vector<1x8x64xf32>
    %cst_197 = arith.constant dense<0.000000e+00> : vector<1xf32>
    %278 = vector.multi_reduction <add>, %277, %cst_197 [1, 2] : vector<1x8x64xf32> to vector<1xf32>
    %279 = vector.shape_cast %278 : vector<1xf32> to vector<1x1x1xf32>
    %280 = vector.extract %279[0, 0, 0] : f32 from vector<1x1x1xf32>
    %cst_198 = arith.constant 0.001953125 : f32
    %281 = arith.mulf %280, %cst_198 : f32
    %282 = arith.mulf %276, %276 : vector<8x64xf32>
    %283 = vector.shape_cast %282 : vector<8x64xf32> to vector<1x8x64xf32>
    %cst_199 = arith.constant dense<0.000000e+00> : vector<1xf32>
    %284 = vector.multi_reduction <add>, %283, %cst_199 [1, 2] : vector<1x8x64xf32> to vector<1xf32>
    %285 = vector.shape_cast %284 : vector<1xf32> to vector<1x1x1xf32>
    %286 = vector.extract %285[0, 0, 0] : f32 from vector<1x1x1xf32>
    %cst_200 = arith.constant 0.001953125 : f32
    %287 = arith.mulf %286, %cst_200 : f32
    %288 = arith.mulf %281, %281 : f32
    %289 = arith.subf %287, %288 : f32
    %290 = vector.broadcast %281 : f32 to vector<8x64xf32>
    %291 = arith.subf %276, %290 : vector<8x64xf32>
    %cst_201 = arith.constant 9.99999974E-6 : f32
    %292 = arith.addf %289, %cst_201 : f32
    %293 = math.rsqrt %292 : f32
    %294 = vector.broadcast %293 : f32 to vector<8x64xf32>
    %295 = arith.mulf %291, %294 : vector<8x64xf32>
    %296 = vector.broadcast %161 : vector<1x64xf32> to vector<8x64xf32>
    %297 = arith.mulf %295, %296 : vector<8x64xf32>
    %298 = vector.broadcast %162 : vector<1x64xf32> to vector<8x64xf32>
    %299 = arith.addf %297, %298 : vector<8x64xf32>
    %300 = arith.addf %299, %159 : vector<8x64xf32>
    %cst_202 = arith.constant 0.000000e+00 : f32
    %301 = vector.broadcast %cst_202 : f32 to vector<8x64xf32>
    %302 = arith.cmpf oge, %300, %301 : vector<8x64xf32>
    %303 = vector.broadcast %163 : vector<1x64xf32> to vector<8x64xf32>
    %304 = arith.mulf %303, %300 : vector<8x64xf32>
    %305 = arith.select %302, %300, %304 : vector<8x64xi1>, vector<8x64xf32>
    %306 = arith.truncf %305 : vector<8x64xf32> to vector<8x64xbf16>
    %c0_203 = arith.constant 0 : index
    %c0_204 = arith.constant 0 : index
    %307 = vector.load %arg12[%c0_203, %c0_204] : memref<64x64xbf16, #tpu.memory_space<vmem>>, vector<64x64xbf16>
    %cst_205 = arith.constant dense<0.000000e+00> : vector<8x64xf32>
    %308 = tpu.matmul %306, %307, %cst_205 {dimension_numbers = #tpu.dot_dimension_numbers<[1], [0], [0], [1], [0, 0, 1, 1], [], []>} : vector<8x64xbf16>, vector<64x64xbf16>, vector<8x64xf32> -> vector<8x64xf32>
    %c0_206 = arith.constant 0 : index
    %c0_207 = arith.constant 0 : index
    %309 = vector.load %arg11[%c0_206, %c0_207] : memref<16x8xbf16, #tpu.memory_space<vmem>>, vector<16x8xbf16>
    %310 = arith.truncf %308 : vector<8x64xf32> to vector<8x64xbf16>
    %cst_208 = arith.constant dense<0.000000e+00> : vector<16x64xf32>
    %311 = tpu.matmul %309, %310, %cst_208 {dimension_numbers = #tpu.dot_dimension_numbers<[1], [0], [0], [1], [0, 0, 1, 1], [], []>} : vector<16x8xbf16>, vector<8x64xbf16>, vector<16x64xf32> -> vector<16x64xf32>
    %c0_209 = arith.constant 0 : index
    %c0_210 = arith.constant 0 : index
    %c0_211 = arith.constant 0 : index
    %312 = vector.load %arg4[%c0_209, %c0_210, %c0_211] : memref<1x16x64xf32, #tpu.memory_space<vmem>>, vector<1x16x64xf32>
    %313 = vector.shape_cast %312 : vector<1x16x64xf32> to vector<16x64xf32>
    %314 = arith.addf %311, %313 : vector<16x64xf32>
    %c0_212 = arith.constant 0 : index
    %c0_213 = arith.constant 0 : index
    %315 = vector.load %arg14[%c0_212, %c0_213] : memref<3x64xf32, #tpu.memory_space<vmem>>, vector<3x64xf32>
    %316 = vector.extract_strided_slice %315 {offsets = [0, 0], sizes = [1, 64], strides = [1, 1]} : vector<3x64xf32> to vector<1x64xf32>
    %317 = vector.extract_strided_slice %315 {offsets = [1, 0], sizes = [1, 64], strides = [1, 1]} : vector<3x64xf32> to vector<1x64xf32>
    %318 = vector.extract_strided_slice %315 {offsets = [2, 0], sizes = [1, 64], strides = [1, 1]} : vector<3x64xf32> to vector<1x64xf32>
    %cst_214 = arith.constant 0.000000e+00 : bf16
    %319 = vector.broadcast %cst_214 : bf16 to vector<1x64xbf16>
    %c0_215 = arith.constant 0 : index
    %c0_216 = arith.constant 0 : index
    %320 = vector.load %arg18[%c0_215, %c0_216] : memref<18x64xbf16, #tpu.memory_space<vmem>>, vector<1x64xbf16>
    tpu.vector_store %arg18[%c0_215, %c0_216], %319 {strides = array<i32>} : memref<18x64xbf16, #tpu.memory_space<vmem>>, vector<1x64xbf16>,
    %c17 = arith.constant 17 : index
    %c0_217 = arith.constant 0 : index
    %321 = vector.load %arg18[%c17, %c0_217] : memref<18x64xbf16, #tpu.memory_space<vmem>>, vector<1x64xbf16>
    tpu.vector_store %arg18[%c17, %c0_217], %319 {strides = array<i32>} : memref<18x64xbf16, #tpu.memory_space<vmem>>, vector<1x64xbf16>,
    %322 = arith.truncf %314 : vector<16x64xf32> to vector<16x64xbf16>
    %c1_218 = arith.constant 1 : index
    %c0_219 = arith.constant 0 : index
    %323 = vector.load %arg18[%c1_218, %c0_219] : memref<18x64xbf16, #tpu.memory_space<vmem>>, vector<16x64xbf16>
    tpu.vector_store %arg18[%c1_218, %c0_219], %322 {strides = array<i32>} : memref<18x64xbf16, #tpu.memory_space<vmem>>, vector<16x64xbf16>,
    %cst_220 = arith.constant 0.000000e+00 : f32
    %324 = vector.broadcast %cst_220 : f32 to vector<16x64xf32>
    %c0_221 = arith.constant 0 : index
    %c0_222 = arith.constant 0 : index
    %325 = vector.load %arg18[%c0_221, %c0_222] : memref<18x64xbf16, #tpu.memory_space<vmem>>, vector<16x64xbf16>
    %c0_223 = arith.constant 0 : index
    %c0_224 = arith.constant 0 : index
    %c0_225 = arith.constant 0 : index
    %c0_226 = arith.constant 0 : index
    %326 = vector.load %arg13[%c0_223, %c0_224, %c0_225, %c0_226] : memref<3x3x64x64xbf16, #tpu.memory_space<vmem>>, vector<1x1x64x64xbf16>
    %327 = vector.shape_cast %326 : vector<1x1x64x64xbf16> to vector<64x64xbf16>
    %cst_227 = arith.constant dense<0.000000e+00> : vector<16x64xf32>
    %328 = tpu.matmul %325, %327, %cst_227 {dimension_numbers = #tpu.dot_dimension_numbers<[1], [0], [0], [1], [0, 0, 1, 1], [], []>} : vector<16x64xbf16>, vector<64x64xbf16>, vector<16x64xf32> -> vector<16x64xf32>
    %329 = arith.addf %324, %328 : vector<16x64xf32>
    %c1_228 = arith.constant 1 : index
    %c0_229 = arith.constant 0 : index
    %330 = vector.load %arg18[%c1_228, %c0_229] : memref<18x64xbf16, #tpu.memory_space<vmem>>, vector<16x64xbf16>
    %c0_230 = arith.constant 0 : index
    %c1_231 = arith.constant 1 : index
    %c0_232 = arith.constant 0 : index
    %c0_233 = arith.constant 0 : index
    %331 = vector.load %arg13[%c0_230, %c1_231, %c0_232, %c0_233] : memref<3x3x64x64xbf16, #tpu.memory_space<vmem>>, vector<1x1x64x64xbf16>
    %332 = vector.shape_cast %331 : vector<1x1x64x64xbf16> to vector<64x64xbf16>
    %cst_234 = arith.constant dense<0.000000e+00> : vector<16x64xf32>
    %333 = tpu.matmul %330, %332, %cst_234 {dimension_numbers = #tpu.dot_dimension_numbers<[1], [0], [0], [1], [0, 0, 1, 1], [], []>} : vector<16x64xbf16>, vector<64x64xbf16>, vector<16x64xf32> -> vector<16x64xf32>
    %334 = arith.addf %329, %333 : vector<16x64xf32>
    %c2_235 = arith.constant 2 : index
    %c0_236 = arith.constant 0 : index
    %335 = vector.load %arg18[%c2_235, %c0_236] : memref<18x64xbf16, #tpu.memory_space<vmem>>, vector<16x64xbf16>
    %c0_237 = arith.constant 0 : index
    %c2_238 = arith.constant 2 : index
    %c0_239 = arith.constant 0 : index
    %c0_240 = arith.constant 0 : index
    %336 = vector.load %arg13[%c0_237, %c2_238, %c0_239, %c0_240] : memref<3x3x64x64xbf16, #tpu.memory_space<vmem>>, vector<1x1x64x64xbf16>
    %337 = vector.shape_cast %336 : vector<1x1x64x64xbf16> to vector<64x64xbf16>
    %cst_241 = arith.constant dense<0.000000e+00> : vector<16x64xf32>
    %338 = tpu.matmul %335, %337, %cst_241 {dimension_numbers = #tpu.dot_dimension_numbers<[1], [0], [0], [1], [0, 0, 1, 1], [], []>} : vector<16x64xbf16>, vector<64x64xbf16>, vector<16x64xf32> -> vector<16x64xf32>
    %339 = arith.addf %334, %338 : vector<16x64xf32>
    %340 = vector.shape_cast %339 : vector<16x64xf32> to vector<1x16x64xf32>
    %cst_242 = arith.constant dense<0.000000e+00> : vector<1xf32>
    %341 = vector.multi_reduction <add>, %340, %cst_242 [1, 2] : vector<1x16x64xf32> to vector<1xf32>
    %342 = vector.shape_cast %341 : vector<1xf32> to vector<1x1x1xf32>
    %343 = vector.extract %342[0, 0, 0] : f32 from vector<1x1x1xf32>
    %cst_243 = arith.constant 9.765625E-4 : f32
    %344 = arith.mulf %343, %cst_243 : f32
    %345 = arith.mulf %339, %339 : vector<16x64xf32>
    %346 = vector.shape_cast %345 : vector<16x64xf32> to vector<1x16x64xf32>
    %cst_244 = arith.constant dense<0.000000e+00> : vector<1xf32>
    %347 = vector.multi_reduction <add>, %346, %cst_244 [1, 2] : vector<1x16x64xf32> to vector<1xf32>
    %348 = vector.shape_cast %347 : vector<1xf32> to vector<1x1x1xf32>
    %349 = vector.extract %348[0, 0, 0] : f32 from vector<1x1x1xf32>
    %cst_245 = arith.constant 9.765625E-4 : f32
    %350 = arith.mulf %349, %cst_245 : f32
    %351 = arith.mulf %344, %344 : f32
    %352 = arith.subf %350, %351 : f32
    %353 = vector.broadcast %344 : f32 to vector<16x64xf32>
    %354 = arith.subf %339, %353 : vector<16x64xf32>
    %cst_246 = arith.constant 9.99999974E-6 : f32
    %355 = arith.addf %352, %cst_246 : f32
    %356 = math.rsqrt %355 : f32
    %357 = vector.broadcast %356 : f32 to vector<16x64xf32>
    %358 = arith.mulf %354, %357 : vector<16x64xf32>
    %359 = vector.broadcast %316 : vector<1x64xf32> to vector<16x64xf32>
    %360 = arith.mulf %358, %359 : vector<16x64xf32>
    %361 = vector.broadcast %317 : vector<1x64xf32> to vector<16x64xf32>
    %362 = arith.addf %360, %361 : vector<16x64xf32>
    %cst_247 = arith.constant 0.000000e+00 : f32
    %363 = vector.broadcast %cst_247 : f32 to vector<16x64xf32>
    %364 = arith.cmpf oge, %362, %363 : vector<16x64xf32>
    %365 = vector.broadcast %318 : vector<1x64xf32> to vector<16x64xf32>
    %366 = arith.mulf %365, %362 : vector<16x64xf32>
    %367 = arith.select %364, %362, %366 : vector<16x64xi1>, vector<16x64xf32>
    %368 = arith.truncf %367 : vector<16x64xf32> to vector<16x64xbf16>
    %c1_248 = arith.constant 1 : index
    %c0_249 = arith.constant 0 : index
    %369 = vector.load %arg18[%c1_248, %c0_249] : memref<18x64xbf16, #tpu.memory_space<vmem>>, vector<16x64xbf16>
    tpu.vector_store %arg18[%c1_248, %c0_249], %368 {strides = array<i32>} : memref<18x64xbf16, #tpu.memory_space<vmem>>, vector<16x64xbf16>,
    %cst_250 = arith.constant 0.000000e+00 : f32
    %370 = vector.broadcast %cst_250 : f32 to vector<16x64xf32>
    %c0_251 = arith.constant 0 : index
    %c0_252 = arith.constant 0 : index
    %371 = vector.load %arg18[%c0_251, %c0_252] : memref<18x64xbf16, #tpu.memory_space<vmem>>, vector<16x64xbf16>
    %c1_253 = arith.constant 1 : index
    %c0_254 = arith.constant 0 : index
    %c0_255 = arith.constant 0 : index
    %c0_256 = arith.constant 0 : index
    %372 = vector.load %arg13[%c1_253, %c0_254, %c0_255, %c0_256] : memref<3x3x64x64xbf16, #tpu.memory_space<vmem>>, vector<1x1x64x64xbf16>
    %373 = vector.shape_cast %372 : vector<1x1x64x64xbf16> to vector<64x64xbf16>
    %cst_257 = arith.constant dense<0.000000e+00> : vector<16x64xf32>
    %374 = tpu.matmul %371, %373, %cst_257 {dimension_numbers = #tpu.dot_dimension_numbers<[1], [0], [0], [1], [0, 0, 1, 1], [], []>} : vector<16x64xbf16>, vector<64x64xbf16>, vector<16x64xf32> -> vector<16x64xf32>
    %375 = arith.addf %370, %374 : vector<16x64xf32>
    %c1_258 = arith.constant 1 : index
    %c0_259 = arith.constant 0 : index
    %376 = vector.load %arg18[%c1_258, %c0_259] : memref<18x64xbf16, #tpu.memory_space<vmem>>, vector<16x64xbf16>
    %c1_260 = arith.constant 1 : index
    %c1_261 = arith.constant 1 : index
    %c0_262 = arith.constant 0 : index
    %c0_263 = arith.constant 0 : index
    %377 = vector.load %arg13[%c1_260, %c1_261, %c0_262, %c0_263] : memref<3x3x64x64xbf16, #tpu.memory_space<vmem>>, vector<1x1x64x64xbf16>
    %378 = vector.shape_cast %377 : vector<1x1x64x64xbf16> to vector<64x64xbf16>
    %cst_264 = arith.constant dense<0.000000e+00> : vector<16x64xf32>
    %379 = tpu.matmul %376, %378, %cst_264 {dimension_numbers = #tpu.dot_dimension_numbers<[1], [0], [0], [1], [0, 0, 1, 1], [], []>} : vector<16x64xbf16>, vector<64x64xbf16>, vector<16x64xf32> -> vector<16x64xf32>
    %380 = arith.addf %375, %379 : vector<16x64xf32>
    %c2_265 = arith.constant 2 : index
    %c0_266 = arith.constant 0 : index
    %381 = vector.load %arg18[%c2_265, %c0_266] : memref<18x64xbf16, #tpu.memory_space<vmem>>, vector<16x64xbf16>
    %c1_267 = arith.constant 1 : index
    %c2_268 = arith.constant 2 : index
    %c0_269 = arith.constant 0 : index
    %c0_270 = arith.constant 0 : index
    %382 = vector.load %arg13[%c1_267, %c2_268, %c0_269, %c0_270] : memref<3x3x64x64xbf16, #tpu.memory_space<vmem>>, vector<1x1x64x64xbf16>
    %383 = vector.shape_cast %382 : vector<1x1x64x64xbf16> to vector<64x64xbf16>
    %cst_271 = arith.constant dense<0.000000e+00> : vector<16x64xf32>
    %384 = tpu.matmul %381, %383, %cst_271 {dimension_numbers = #tpu.dot_dimension_numbers<[1], [0], [0], [1], [0, 0, 1, 1], [], []>} : vector<16x64xbf16>, vector<64x64xbf16>, vector<16x64xf32> -> vector<16x64xf32>
    %385 = arith.addf %380, %384 : vector<16x64xf32>
    %386 = vector.shape_cast %385 : vector<16x64xf32> to vector<1x16x64xf32>
    %cst_272 = arith.constant dense<0.000000e+00> : vector<1xf32>
    %387 = vector.multi_reduction <add>, %386, %cst_272 [1, 2] : vector<1x16x64xf32> to vector<1xf32>
    %388 = vector.shape_cast %387 : vector<1xf32> to vector<1x1x1xf32>
    %389 = vector.extract %388[0, 0, 0] : f32 from vector<1x1x1xf32>
    %cst_273 = arith.constant 9.765625E-4 : f32
    %390 = arith.mulf %389, %cst_273 : f32
    %391 = arith.mulf %385, %385 : vector<16x64xf32>
    %392 = vector.shape_cast %391 : vector<16x64xf32> to vector<1x16x64xf32>
    %cst_274 = arith.constant dense<0.000000e+00> : vector<1xf32>
    %393 = vector.multi_reduction <add>, %392, %cst_274 [1, 2] : vector<1x16x64xf32> to vector<1xf32>
    %394 = vector.shape_cast %393 : vector<1xf32> to vector<1x1x1xf32>
    %395 = vector.extract %394[0, 0, 0] : f32 from vector<1x1x1xf32>
    %cst_275 = arith.constant 9.765625E-4 : f32
    %396 = arith.mulf %395, %cst_275 : f32
    %397 = arith.mulf %390, %390 : f32
    %398 = arith.subf %396, %397 : f32
    %399 = vector.broadcast %390 : f32 to vector<16x64xf32>
    %400 = arith.subf %385, %399 : vector<16x64xf32>
    %cst_276 = arith.constant 9.99999974E-6 : f32
    %401 = arith.addf %398, %cst_276 : f32
    %402 = math.rsqrt %401 : f32
    %403 = vector.broadcast %402 : f32 to vector<16x64xf32>
    %404 = arith.mulf %400, %403 : vector<16x64xf32>
    %405 = vector.broadcast %316 : vector<1x64xf32> to vector<16x64xf32>
    %406 = arith.mulf %404, %405 : vector<16x64xf32>
    %407 = vector.broadcast %317 : vector<1x64xf32> to vector<16x64xf32>
    %408 = arith.addf %406, %407 : vector<16x64xf32>
    %cst_277 = arith.constant 0.000000e+00 : f32
    %409 = vector.broadcast %cst_277 : f32 to vector<16x64xf32>
    %410 = arith.cmpf oge, %408, %409 : vector<16x64xf32>
    %411 = vector.broadcast %318 : vector<1x64xf32> to vector<16x64xf32>
    %412 = arith.mulf %411, %408 : vector<16x64xf32>
    %413 = arith.select %410, %408, %412 : vector<16x64xi1>, vector<16x64xf32>
    %414 = arith.truncf %413 : vector<16x64xf32> to vector<16x64xbf16>
    %c1_278 = arith.constant 1 : index
    %c0_279 = arith.constant 0 : index
    %415 = vector.load %arg18[%c1_278, %c0_279] : memref<18x64xbf16, #tpu.memory_space<vmem>>, vector<16x64xbf16>
    tpu.vector_store %arg18[%c1_278, %c0_279], %414 {strides = array<i32>} : memref<18x64xbf16, #tpu.memory_space<vmem>>, vector<16x64xbf16>,
    %cst_280 = arith.constant 0.000000e+00 : f32
    %416 = vector.broadcast %cst_280 : f32 to vector<16x64xf32>
    %c0_281 = arith.constant 0 : index
    %c0_282 = arith.constant 0 : index
    %417 = vector.load %arg18[%c0_281, %c0_282] : memref<18x64xbf16, #tpu.memory_space<vmem>>, vector<16x64xbf16>
    %c2_283 = arith.constant 2 : index
    %c0_284 = arith.constant 0 : index
    %c0_285 = arith.constant 0 : index
    %c0_286 = arith.constant 0 : index
    %418 = vector.load %arg13[%c2_283, %c0_284, %c0_285, %c0_286] : memref<3x3x64x64xbf16, #tpu.memory_space<vmem>>, vector<1x1x64x64xbf16>
    %419 = vector.shape_cast %418 : vector<1x1x64x64xbf16> to vector<64x64xbf16>
    %cst_287 = arith.constant dense<0.000000e+00> : vector<16x64xf32>
    %420 = tpu.matmul %417, %419, %cst_287 {dimension_numbers = #tpu.dot_dimension_numbers<[1], [0], [0], [1], [0, 0, 1, 1], [], []>} : vector<16x64xbf16>, vector<64x64xbf16>, vector<16x64xf32> -> vector<16x64xf32>
    %421 = arith.addf %416, %420 : vector<16x64xf32>
    %c1_288 = arith.constant 1 : index
    %c0_289 = arith.constant 0 : index
    %422 = vector.load %arg18[%c1_288, %c0_289] : memref<18x64xbf16, #tpu.memory_space<vmem>>, vector<16x64xbf16>
    %c2_290 = arith.constant 2 : index
    %c1_291 = arith.constant 1 : index
    %c0_292 = arith.constant 0 : index
    %c0_293 = arith.constant 0 : index
    %423 = vector.load %arg13[%c2_290, %c1_291, %c0_292, %c0_293] : memref<3x3x64x64xbf16, #tpu.memory_space<vmem>>, vector<1x1x64x64xbf16>
    %424 = vector.shape_cast %423 : vector<1x1x64x64xbf16> to vector<64x64xbf16>
    %cst_294 = arith.constant dense<0.000000e+00> : vector<16x64xf32>
    %425 = tpu.matmul %422, %424, %cst_294 {dimension_numbers = #tpu.dot_dimension_numbers<[1], [0], [0], [1], [0, 0, 1, 1], [], []>} : vector<16x64xbf16>, vector<64x64xbf16>, vector<16x64xf32> -> vector<16x64xf32>
    %426 = arith.addf %421, %425 : vector<16x64xf32>
    %c2_295 = arith.constant 2 : index
    %c0_296 = arith.constant 0 : index
    %427 = vector.load %arg18[%c2_295, %c0_296] : memref<18x64xbf16, #tpu.memory_space<vmem>>, vector<16x64xbf16>
    %c2_297 = arith.constant 2 : index
    %c2_298 = arith.constant 2 : index
    %c0_299 = arith.constant 0 : index
    %c0_300 = arith.constant 0 : index
    %428 = vector.load %arg13[%c2_297, %c2_298, %c0_299, %c0_300] : memref<3x3x64x64xbf16, #tpu.memory_space<vmem>>, vector<1x1x64x64xbf16>
    %429 = vector.shape_cast %428 : vector<1x1x64x64xbf16> to vector<64x64xbf16>
    %cst_301 = arith.constant dense<0.000000e+00> : vector<16x64xf32>
    %430 = tpu.matmul %427, %429, %cst_301 {dimension_numbers = #tpu.dot_dimension_numbers<[1], [0], [0], [1], [0, 0, 1, 1], [], []>} : vector<16x64xbf16>, vector<64x64xbf16>, vector<16x64xf32> -> vector<16x64xf32>
    %431 = arith.addf %426, %430 : vector<16x64xf32>
    %432 = vector.shape_cast %431 : vector<16x64xf32> to vector<1x16x64xf32>
    %cst_302 = arith.constant dense<0.000000e+00> : vector<1xf32>
    %433 = vector.multi_reduction <add>, %432, %cst_302 [1, 2] : vector<1x16x64xf32> to vector<1xf32>
    %434 = vector.shape_cast %433 : vector<1xf32> to vector<1x1x1xf32>
    %435 = vector.extract %434[0, 0, 0] : f32 from vector<1x1x1xf32>
    %cst_303 = arith.constant 9.765625E-4 : f32
    %436 = arith.mulf %435, %cst_303 : f32
    %437 = arith.mulf %431, %431 : vector<16x64xf32>
    %438 = vector.shape_cast %437 : vector<16x64xf32> to vector<1x16x64xf32>
    %cst_304 = arith.constant dense<0.000000e+00> : vector<1xf32>
    %439 = vector.multi_reduction <add>, %438, %cst_304 [1, 2] : vector<1x16x64xf32> to vector<1xf32>
    %440 = vector.shape_cast %439 : vector<1xf32> to vector<1x1x1xf32>
    %441 = vector.extract %440[0, 0, 0] : f32 from vector<1x1x1xf32>
    %cst_305 = arith.constant 9.765625E-4 : f32
    %442 = arith.mulf %441, %cst_305 : f32
    %443 = arith.mulf %436, %436 : f32
    %444 = arith.subf %442, %443 : f32
    %445 = vector.broadcast %436 : f32 to vector<16x64xf32>
    %446 = arith.subf %431, %445 : vector<16x64xf32>
    %cst_306 = arith.constant 9.99999974E-6 : f32
    %447 = arith.addf %444, %cst_306 : f32
    %448 = math.rsqrt %447 : f32
    %449 = vector.broadcast %448 : f32 to vector<16x64xf32>
    %450 = arith.mulf %446, %449 : vector<16x64xf32>
    %451 = vector.broadcast %316 : vector<1x64xf32> to vector<16x64xf32>
    %452 = arith.mulf %450, %451 : vector<16x64xf32>
    %453 = vector.broadcast %317 : vector<1x64xf32> to vector<16x64xf32>
    %454 = arith.addf %452, %453 : vector<16x64xf32>
    %455 = arith.addf %454, %314 : vector<16x64xf32>
    %cst_307 = arith.constant 0.000000e+00 : f32
    %456 = vector.broadcast %cst_307 : f32 to vector<16x64xf32>
    %457 = arith.cmpf oge, %455, %456 : vector<16x64xf32>
    %458 = vector.broadcast %318 : vector<1x64xf32> to vector<16x64xf32>
    %459 = arith.mulf %458, %455 : vector<16x64xf32>
    %460 = arith.select %457, %455, %459 : vector<16x64xi1>, vector<16x64xf32>
    %461 = vector.shape_cast %460 : vector<16x64xf32> to vector<1x16x64xf32>
    %c0_308 = arith.constant 0 : index
    %c0_309 = arith.constant 0 : index
    %c0_310 = arith.constant 0 : index
    %462 = vector.load %arg15[%c0_308, %c0_309, %c0_310] : memref<1x16x64xf32, #tpu.memory_space<vmem>>, vector<1x16x64xf32>
    tpu.vector_store %arg15[%c0_308, %c0_309, %c0_310], %461 {strides = array<i32>} : memref<1x16x64xf32, #tpu.memory_space<vmem>>, vector<1x16x64xf32>,
    return
  }
  func.func @transform_0(%arg0: i32) -> (i32, i32, i32) {
    %c0_i32 = arith.constant 0 : i32
    %c0_i32_0 = arith.constant 0 : i32
    %c0_i32_1 = arith.constant 0 : i32
    return %arg0, %c0_i32, %c0_i32_0 : i32, i32, i32
  }
  func.func @transform_1(%arg0: i32) -> (i32, i32, i32) {
    %c0_i32 = arith.constant 0 : i32
    %c0_i32_0 = arith.constant 0 : i32
    %c0_i32_1 = arith.constant 0 : i32
    return %arg0, %c0_i32, %c0_i32_0 : i32, i32, i32
  }
  func.func @transform_2(%arg0: i32) -> (i32, i32, i32) {
    %c0_i32 = arith.constant 0 : i32
    %c0_i32_0 = arith.constant 0 : i32
    %c0_i32_1 = arith.constant 0 : i32
    return %arg0, %c0_i32, %c0_i32_0 : i32, i32, i32
  }
  func.func @transform_3(%arg0: i32) -> (i32, i32, i32) {
    %c0_i32 = arith.constant 0 : i32
    %c0_i32_0 = arith.constant 0 : i32
    %c0_i32_1 = arith.constant 0 : i32
    return %arg0, %c0_i32, %c0_i32_0 : i32, i32, i32
  }
  func.func @transform_4(%arg0: i32) -> (i32, i32, i32, i32) {
    %c0_i32 = arith.constant 0 : i32
    %c0_i32_0 = arith.constant 0 : i32
    %c0_i32_1 = arith.constant 0 : i32
    %c0_i32_2 = arith.constant 0 : i32
    %c0_i32_3 = arith.constant 0 : i32
    return %c0_i32, %c0_i32_0, %c0_i32_1, %c0_i32_2 : i32, i32, i32, i32
  }
  func.func @transform_5(%arg0: i32) -> (i32, i32) {
    %c0_i32 = arith.constant 0 : i32
    %c0_i32_0 = arith.constant 0 : i32
    %c0_i32_1 = arith.constant 0 : i32
    return %c0_i32, %c0_i32_0 : i32, i32
  }
  func.func @transform_6(%arg0: i32) -> (i32, i32) {
    %c0_i32 = arith.constant 0 : i32
    %c0_i32_0 = arith.constant 0 : i32
    %c0_i32_1 = arith.constant 0 : i32
    return %c0_i32, %c0_i32_0 : i32, i32
  }
  func.func @transform_7(%arg0: i32) -> (i32, i32) {
    %c0_i32 = arith.constant 0 : i32
    %c0_i32_0 = arith.constant 0 : i32
    %c0_i32_1 = arith.constant 0 : i32
    return %c0_i32, %c0_i32_0 : i32, i32
  }
  func.func @transform_8(%arg0: i32) -> (i32, i32, i32, i32) {
    %c0_i32 = arith.constant 0 : i32
    %c0_i32_0 = arith.constant 0 : i32
    %c0_i32_1 = arith.constant 0 : i32
    %c0_i32_2 = arith.constant 0 : i32
    %c0_i32_3 = arith.constant 0 : i32
    return %c0_i32, %c0_i32_0, %c0_i32_1, %c0_i32_2 : i32, i32, i32, i32
  }
  func.func @transform_9(%arg0: i32) -> (i32, i32) {
    %c0_i32 = arith.constant 0 : i32
    %c0_i32_0 = arith.constant 0 : i32
    %c0_i32_1 = arith.constant 0 : i32
    return %c0_i32, %c0_i32_0 : i32, i32
  }
  func.func @transform_10(%arg0: i32) -> (i32, i32) {
    %c0_i32 = arith.constant 0 : i32
    %c0_i32_0 = arith.constant 0 : i32
    %c0_i32_1 = arith.constant 0 : i32
    return %c0_i32, %c0_i32_0 : i32, i32
  }
  func.func @transform_11(%arg0: i32) -> (i32, i32) {
    %c0_i32 = arith.constant 0 : i32
    %c0_i32_0 = arith.constant 0 : i32
    %c0_i32_1 = arith.constant 0 : i32
    return %c0_i32, %c0_i32_0 : i32, i32
  }
  func.func @transform_12(%arg0: i32) -> (i32, i32, i32, i32) {
    %c0_i32 = arith.constant 0 : i32
    %c0_i32_0 = arith.constant 0 : i32
    %c0_i32_1 = arith.constant 0 : i32
    %c0_i32_2 = arith.constant 0 : i32
    %c0_i32_3 = arith.constant 0 : i32
    return %c0_i32, %c0_i32_0, %c0_i32_1, %c0_i32_2 : i32, i32, i32, i32
  }
  func.func @transform_13(%arg0: i32) -> (i32, i32) {
    %c0_i32 = arith.constant 0 : i32
    %c0_i32_0 = arith.constant 0 : i32
    %c0_i32_1 = arith.constant 0 : i32
    return %c0_i32, %c0_i32_0 : i32, i32
  }
  func.func @transform_14(%arg0: i32) -> (i32, i32, i32) {
    %c0_i32 = arith.constant 0 : i32
    %c0_i32_0 = arith.constant 0 : i32
    %c0_i32_1 = arith.constant 0 : i32
    return %arg0, %c0_i32, %c0_i32_0 : i32, i32, i32
  }
}

</mosaic_0001>

<llo_original>
// kernel: decoder_forward.1
$region0: #{decoder_forward.1}
  #allocation0 [shape = 'u32[]', space=smem, size = 0x4, offset = 0x4, fixed_abs, tag = 'smem constant byte address 0x4 - core index']
  #allocation1 [shape = 'u32[144,128]{1,0:T(1,128)}', space=vmem, size = 0x12000, scoped, tag = 'internal scratch']
  #allocation2 [shape = 'bf16[6,64]{1,0:T(8,128)(2,1)}', space=vmem, size = 0x800, scoped, tag = 'scratch operand']
  #allocation3 [shape = 'bf16[10,64]{1,0:T(8,128)(2,1)}', space=vmem, size = 0x1000, scoped, tag = 'scratch operand']
  #allocation4 [shape = 'bf16[18,64]{1,0:T(8,128)(2,1)}', space=vmem, size = 0x1800, scoped, tag = 'scratch operand']
  %s0 = inlined_call_operand.vmem [shape: f32[2,4,64], index: 0, kind: input, shape index: {}]
  %s1 = inlined_call_operand.vmem [shape: f32[2,4,64], index: 1, kind: input, shape index: {}]
  %s2 = inlined_call_operand.vmem [shape: f32[2,8,64], index: 2, kind: input, shape index: {}]
  %s3 = inlined_call_operand.vmem [shape: f32[2,16,64], index: 3, kind: input, shape index: {}]
  %s4 = inlined_call_operand.vmem [shape: bf16[3,3,64,64], index: 4, kind: input, shape index: {}]
  %s5 = inlined_call_operand.vmem [shape: f32[3,64], index: 5, kind: input, shape index: {}]
  %s6 = inlined_call_operand.vmem [shape: bf16[8,4], index: 6, kind: input, shape index: {}]
  %s7 = inlined_call_operand.vmem [shape: bf16[64,64], index: 7, kind: input, shape index: {}]
  %s8 = inlined_call_operand.vmem [shape: bf16[3,3,64,64], index: 8, kind: input, shape index: {}]
  %s9 = inlined_call_operand.vmem [shape: f32[3,64], index: 9, kind: input, shape index: {}]
  %s10 = inlined_call_operand.vmem [shape: bf16[16,8], index: 10, kind: input, shape index: {}]
  %s11 = inlined_call_operand.vmem [shape: bf16[64,64], index: 11, kind: input, shape index: {}]
  %s12 = inlined_call_operand.vmem [shape: bf16[3,3,64,64], index: 12, kind: input, shape index: {}]
  %s13 = inlined_call_operand.vmem [shape: f32[3,64], index: 13, kind: input, shape index: {}]
  %s14 = inlined_call_operand.vmem [shape: f32[2,16,64], index: 14, kind: output, shape index: {}]
  %s15 = sld [smem:[#allocation0]]
  $region89: #{decoder_forward.1} parent=0
    _
  %s17 = ssub.s32 1, %s15
  %s18 = scalar_select 0, %s17, %s15
  loop: start=0, step=1, limit=4
  $region2: #{decoder_forward.1} parent=0 // loop_pre_header
    _
  $region3: #{decoder_forward.1} parent=0 // loop_header
    %s20 = sphi 0, %s24
    %p21 = scmp.ge.s32.totalorder %s20, 4
    %s30 = sphi 0, %s32
    %s33 = sphi 0, %s30
    %s34 = sphi 0, %s33
    %s50 = sphi 0, %s34
    %s56 = sphi 0, %s58
    %s59 = sphi 0, %s56
    %s60 = sphi 0, %s59
    %s76 = sphi 0, %s60
    %s82 = sphi 0, %s84
    %s85 = sphi 0, %s82
    %s86 = sphi 0, %s85
    %s102 = sphi 0, %s86
    %s108 = sphi 0, %s110
    %s111 = sphi 0, %s108
    %s112 = sphi 0, %s111
    %s128 = sphi 0, %s112
    %s132 = sphi 0, %s132
    %s134 = sphi 0, %s132
    %s135 = sphi 0, %s134
    %s149 = sphi 0, %s135
    %s153 = sphi 0, %s153
    %s155 = sphi 0, %s153
    %s156 = sphi 0, %s155
    %s170 = sphi 0, %s156
    %s174 = sphi 0, %s174
    %s176 = sphi 0, %s174
    %s177 = sphi 0, %s176
    %s191 = sphi 0, %s177
    %s195 = sphi 0, %s195
    %s197 = sphi 0, %s195
    %s198 = sphi 0, %s197
    %s212 = sphi 0, %s198
    %s216 = sphi 0, %s216
    %s218 = sphi 0, %s216
    %s219 = sphi 0, %s218
    %s233 = sphi 0, %s219
    %s237 = sphi 0, %s237
    %s239 = sphi 0, %s237
    %s240 = sphi 0, %s239
    %s254 = sphi 0, %s240
    %s258 = sphi 0, %s258
    %s260 = sphi 0, %s258
    %s261 = sphi 0, %s260
    %s275 = sphi 0, %s261
    %s279 = sphi 0, %s279
    %s281 = sphi 0, %s279
    %s282 = sphi 0, %s281
    %s296 = sphi 0, %s282
    %s300 = sphi 0, %s300
    %s302 = sphi 0, %s300
    %s303 = sphi 0, %s302
    %s317 = sphi 0, %s303
    %s321 = sphi 0, %s321
    %s323 = sphi 0, %s321
    %s324 = sphi 0, %s323
    %s338 = sphi 0, %s324
    %s344 = sphi 0, %s346
    %s347 = sphi 0, %s344
    %s348 = sphi 0, %s347
    %s364 = sphi 0, %s348
  $region4: #{decoder_forward.1} parent=0 // loop_header_branch
    %23 = sbr.rel (%p21) target = $region8
  $region5: #{decoder_forward.1} parent=0 // loop_body
    %s25 = ssub.s32 %s20, 1
    %s26 = ssub.s32 %s20, 2
    %s27 = sadd.s32 %s20, 1
    %s28 = ssub.s32 %s20, %s27
    %p29 = scmp.eq.s32.totalorder %s28, 0
    %s31 = sadd.s32 %s30, 1
    %s32 = scalar_select %p29, %s30, %s31
    %p35 = pneg %p29
    %p36 = scmp.eq.s32.totalorder %s20, 1
    %p37 = por %p35, %p36
    %p38 = scmp.ne.s32.totalorder %s30, %s33
    %p39 = scmp.eq.s32.totalorder %s20, 0
    %p40 = por %p38, %p39
    %p41 = scmp.ne.s32.totalorder %s30, %s33
    %p42 = scmp.eq.s32.totalorder %s25, 1
    %p43 = por %p41, %p42
    %p44 = scmp.ne.s32.totalorder %s33, %s34
    %p45 = scmp.eq.s32.totalorder %s25, 0
    %p46 = por %p44, %p45
    %p47 = scmp.ne.s32.totalorder %s33, %s34
    %p48 = scmp.eq.s32.totalorder %s26, 1
    %p49 = por %p47, %p48
    %p51 = scmp.ne.s32.totalorder %s34, %s50
    %p52 = scmp.eq.s32.totalorder %s26, 0
    %p53 = por %p51, %p52
    %s54 = ssub.s32 %s20, %s27
    %p55 = scmp.eq.s32.totalorder %s54, 0
    %s57 = sadd.s32 %s56, 1
    %s58 = scalar_select %p55, %s56, %s57
    %p61 = pneg %p55
    %p62 = scmp.eq.s32.totalorder %s20, 1
    %p63 = por %p61, %p62
    %p64 = scmp.ne.s32.totalorder %s56, %s59
    %p65 = scmp.eq.s32.totalorder %s20, 0
    %p66 = por %p64, %p65
    %p67 = scmp.ne.s32.totalorder %s56, %s59
    %p68 = scmp.eq.s32.totalorder %s25, 1
    %p69 = por %p67, %p68
    %p70 = scmp.ne.s32.totalorder %s59, %s60
    %p71 = scmp.eq.s32.totalorder %s25, 0
    %p72 = por %p70, %p71
    %p73 = scmp.ne.s32.totalorder %s59, %s60
    %p74 = scmp.eq.s32.totalorder %s26, 1
    %p75 = por %p73, %p74
    %p77 = scmp.ne.s32.totalorder %s60, %s76
    %p78 = scmp.eq.s32.totalorder %s26, 0
    %p79 = por %p77, %p78
    %s80 = ssub.s32 %s20, %s27
    %p81 = scmp.eq.s32.totalorder %s80, 0
    %s83 = sadd.s32 %s82, 1
    %s84 = scalar_select %p81, %s82, %s83
    %p87 = pneg %p81
    %p88 = scmp.eq.s32.totalorder %s20, 1
    %p89 = por %p87, %p88
    %p90 = scmp.ne.s32.totalorder %s82, %s85
    %p91 = scmp.eq.s32.totalorder %s20, 0
    %p92 = por %p90, %p91
    %p93 = scmp.ne.s32.totalorder %s82, %s85
    %p94 = scmp.eq.s32.totalorder %s25, 1
    %p95 = por %p93, %p94
    %p96 = scmp.ne.s32.totalorder %s85, %s86
    %p97 = scmp.eq.s32.totalorder %s25, 0
    %p98 = por %p96, %p97
    %p99 = scmp.ne.s32.totalorder %s85, %s86
    %p100 = scmp.eq.s32.totalorder %s26, 1
    %p101 = por %p99, %p100
    %p103 = scmp.ne.s32.totalorder %s86, %s102
    %p104 = scmp.eq.s32.totalorder %s26, 0
    %p105 = por %p103, %p104
    %s106 = ssub.s32 %s20, %s27
    %p107 = scmp.eq.s32.totalorder %s106, 0
    %s109 = sadd.s32 %s108, 1
    %s110 = scalar_select %p107, %s108, %s109
    %p113 = pneg %p107
    %p114 = scmp.eq.s32.totalorder %s20, 1
    %p115 = por %p113, %p114
    %p116 = scmp.ne.s32.totalorder %s108, %s111
    %p117 = scmp.eq.s32.totalorder %s20, 0
    %p118 = por %p116, %p117
    %p119 = scmp.ne.s32.totalorder %s108, %s111
    %p120 = scmp.eq.s32.totalorder %s25, 1
    %p121 = por %p119, %p120
    %p122 = scmp.ne.s32.totalorder %s111, %s112
    %p123 = scmp.eq.s32.totalorder %s25, 0
    %p124 = por %p122, %p123
    %p125 = scmp.ne.s32.totalorder %s111, %s112
    %p126 = scmp.eq.s32.totalorder %s26, 1
    %p127 = por %p125, %p126
    %p129 = scmp.ne.s32.totalorder %s112, %s128
    %p130 = scmp.eq.s32.totalorder %s26, 0
    %p131 = por %p129, %p130
    %s133 = sadd.s32 %s132, 1
    %p136 = scmp.eq.s32.totalorder %s20, 1
    %p137 = scmp.ne.s32.totalorder %s132, %s134
    %p138 = scmp.eq.s32.totalorder %s20, 0
    %p139 = por %p137, %p138
    %p140 = scmp.ne.s32.totalorder %s132, %s134
    %p141 = scmp.eq.s32.totalorder %s25, 1
    %p142 = por %p140, %p141
    %p143 = scmp.ne.s32.totalorder %s134, %s135
    %p144 = scmp.eq.s32.totalorder %s25, 0
    %p145 = por %p143, %p144
    %p146 = scmp.ne.s32.totalorder %s134, %s135
    %p147 = scmp.eq.s32.totalorder %s26, 1
    %p148 = por %p146, %p147
    %p150 = scmp.ne.s32.totalorder %s135, %s149
    %p151 = scmp.eq.s32.totalorder %s26, 0
    %p152 = por %p150, %p151
    %s154 = sadd.s32 %s153, 1
    %p157 = scmp.eq.s32.totalorder %s20, 1
    %p158 = scmp.ne.s32.totalorder %s153, %s155
    %p159 = scmp.eq.s32.totalorder %s20, 0
    %p160 = por %p158, %p159
    %p161 = scmp.ne.s32.totalorder %s153, %s155
    %p162 = scmp.eq.s32.totalorder %s25, 1
    %p163 = por %p161, %p162
    %p164 = scmp.ne.s32.totalorder %s155, %s156
    %p165 = scmp.eq.s32.totalorder %s25, 0
    %p166 = por %p164, %p165
    %p167 = scmp.ne.s32.totalorder %s155, %s156
    %p168 = scmp.eq.s32.totalorder %s26, 1
    %p169 = por %p167, %p168
    %p171 = scmp.ne.s32.totalorder %s156, %s170
    %p172 = scmp.eq.s32.totalorder %s26, 0
    %p173 = por %p171, %p172
    %s175 = sadd.s32 %s174, 1
    %p178 = scmp.eq.s32.totalorder %s20, 1
    %p179 = scmp.ne.s32.totalorder %s174, %s176
    %p180 = scmp.eq.s32.totalorder %s20, 0
    %p181 = por %p179, %p180
    %p182 = scmp.ne.s32.totalorder %s174, %s176
    %p183 = scmp.eq.s32.totalorder %s25, 1
    %p184 = por %p182, %p183
    %p185 = scmp.ne.s32.totalorder %s176, %s177
    %p186 = scmp.eq.s32.totalorder %s25, 0
    %p187 = por %p185, %p186
    %p188 = scmp.ne.s32.totalorder %s176, %s177
    %p189 = scmp.eq.s32.totalorder %s26, 1
    %p190 = por %p188, %p189
    %p192 = scmp.ne.s32.totalorder %s177, %s191
    %p193 = scmp.eq.s32.totalorder %s26, 0
    %p194 = por %p192, %p193
    %s196 = sadd.s32 %s195, 1
    %p199 = scmp.eq.s32.totalorder %s20, 1
    %p200 = scmp.ne.s32.totalorder %s195, %s197
    %p201 = scmp.eq.s32.totalorder %s20, 0
    %p202 = por %p200, %p201
    %p203 = scmp.ne.s32.totalorder %s195, %s197
    %p204 = scmp.eq.s32.totalorder %s25, 1
    %p205 = por %p203, %p204
    %p206 = scmp.ne.s32.totalorder %s197, %s198
    %p207 = scmp.eq.s32.totalorder %s25, 0
    %p208 = por %p206, %p207
    %p209 = scmp.ne.s32.totalorder %s197, %s198
    %p210 = scmp.eq.s32.totalorder %s26, 1
    %p211 = por %p209, %p210
    %p213 = scmp.ne.s32.totalorder %s198, %s212
    %p214 = scmp.eq.s32.totalorder %s26, 0
    %p215 = por %p213, %p214
    %s217 = sadd.s32 %s216, 1
    %p220 = scmp.eq.s32.totalorder %s20, 1
    %p221 = scmp.ne.s32.totalorder %s216, %s218
    %p222 = scmp.eq.s32.totalorder %s20, 0
    %p223 = por %p221, %p222
    %p224 = scmp.ne.s32.totalorder %s216, %s218
    %p225 = scmp.eq.s32.totalorder %s25, 1
    %p226 = por %p224, %p225
    %p227 = scmp.ne.s32.totalorder %s218, %s219
    %p228 = scmp.eq.s32.totalorder %s25, 0
    %p229 = por %p227, %p228
    %p230 = scmp.ne.s32.totalorder %s218, %s219
    %p231 = scmp.eq.s32.totalorder %s26, 1
    %p232 = por %p230, %p231
    %p234 = scmp.ne.s32.totalorder %s219, %s233
    %p235 = scmp.eq.s32.totalorder %s26, 0
    %p236 = por %p234, %p235
    %s238 = sadd.s32 %s237, 1
    %p241 = scmp.eq.s32.totalorder %s20, 1
    %p242 = scmp.ne.s32.totalorder %s237, %s239
    %p243 = scmp.eq.s32.totalorder %s20, 0
    %p244 = por %p242, %p243
    %p245 = scmp.ne.s32.totalorder %s237, %s239
    %p246 = scmp.eq.s32.totalorder %s25, 1
    %p247 = por %p245, %p246
    %p248 = scmp.ne.s32.totalorder %s239, %s240
    %p249 = scmp.eq.s32.totalorder %s25, 0
    %p250 = por %p248, %p249
    %p251 = scmp.ne.s32.totalorder %s239, %s240
    %p252 = scmp.eq.s32.totalorder %s26, 1
    %p253 = por %p251, %p252
    %p255 = scmp.ne.s32.totalorder %s240, %s254
    %p256 = scmp.eq.s32.totalorder %s26, 0
    %p257 = por %p255, %p256
    %s259 = sadd.s32 %s258, 1
    %p262 = scmp.eq.s32.totalorder %s20, 1
    %p263 = scmp.ne.s32.totalorder %s258, %s260
    %p264 = scmp.eq.s32.totalorder %s20, 0
    %p265 = por %p263, %p264
    %p266 = scmp.ne.s32.totalorder %s258, %s260
    %p267 = scmp.eq.s32.totalorder %s25, 1
    %p268 = por %p266, %p267
    %p269 = scmp.ne.s32.totalorder %s260, %s261
    %p270 = scmp.eq.s32.totalorder %s25, 0
    %p271 = por %p269, %p270
    %p272 = scmp.ne.s32.totalorder %s260, %s261
    %p273 = scmp.eq.s32.totalorder %s26, 1
    %p274 = por %p272, %p273
    %p276 = scmp.ne.s32.totalorder %s261, %s275
    %p277 = scmp.eq.s32.totalorder %s26, 0
    %p278 = por %p276, %p277
    %s280 = sadd.s32 %s279, 1
    %p283 = scmp.eq.s32.totalorder %s20, 1
    %p284 = scmp.ne.s32.totalorder %s279, %s281
    %p285 = scmp.eq.s32.totalorder %s20, 0
    %p286 = por %p284, %p285
    %p287 = scmp.ne.s32.totalorder %s279, %s281
    %p288 = scmp.eq.s32.totalorder %s25, 1
    %p289 = por %p287, %p288
    %p290 = scmp.ne.s32.totalorder %s281, %s282
    %p291 = scmp.eq.s32.totalorder %s25, 0
    %p292 = por %p290, %p291
    %p293 = scmp.ne.s32.totalorder %s281, %s282
    %p294 = scmp.eq.s32.totalorder %s26, 1
    %p295 = por %p293, %p294
    %p297 = scmp.ne.s32.totalorder %s282, %s296
    %p298 = scmp.eq.s32.totalorder %s26, 0
    %p299 = por %p297, %p298
    %s301 = sadd.s32 %s300, 1
    %p304 = scmp.eq.s32.totalorder %s20, 1
    %p305 = scmp.ne.s32.totalorder %s300, %s302
    %p306 = scmp.eq.s32.totalorder %s20, 0
    %p307 = por %p305, %p306
    %p308 = scmp.ne.s32.totalorder %s300, %s302
    %p309 = scmp.eq.s32.totalorder %s25, 1
    %p310 = por %p308, %p309
    %p311 = scmp.ne.s32.totalorder %s302, %s303
    %p312 = scmp.eq.s32.totalorder %s25, 0
    %p313 = por %p311, %p312
    %p314 = scmp.ne.s32.totalorder %s302, %s303
    %p315 = scmp.eq.s32.totalorder %s26, 1
    %p316 = por %p314, %p315
    %p318 = scmp.ne.s32.totalorder %s303, %s317
    %p319 = scmp.eq.s32.totalorder %s26, 0
    %p320 = por %p318, %p319
    %s322 = sadd.s32 %s321, 1
    %p325 = scmp.eq.s32.totalorder %s20, 1
    %p326 = scmp.ne.s32.totalorder %s321, %s323
    %p327 = scmp.eq.s32.totalorder %s20, 0
    %p328 = por %p326, %p327
    %p329 = scmp.ne.s32.totalorder %s321, %s323
    %p330 = scmp.eq.s32.totalorder %s25, 1
    %p331 = por %p329, %p330
    %p332 = scmp.ne.s32.totalorder %s323, %s324
    %p333 = scmp.eq.s32.totalorder %s25, 0
    %p334 = por %p332, %p333
    %p335 = scmp.ne.s32.totalorder %s323, %s324
    %p336 = scmp.eq.s32.totalorder %s26, 1
    %p337 = por %p335, %p336
    %p339 = scmp.ne.s32.totalorder %s324, %s338
    %p340 = scmp.eq.s32.totalorder %s26, 0
    %p341 = por %p339, %p340
    %s342 = ssub.s32 %s20, %s27
    %p343 = scmp.eq.s32.totalorder %s342, 0
    %s345 = sadd.s32 %s344, 1
    %s346 = scalar_select %p343, %s344, %s345
    %p349 = pneg %p343
    %p350 = scmp.eq.s32.totalorder %s20, 1
    %p351 = por %p349, %p350
    %p352 = scmp.ne.s32.totalorder %s344, %s347
    %p353 = scmp.eq.s32.totalorder %s20, 0
    %p354 = por %p352, %p353
    %p355 = scmp.ne.s32.totalorder %s344, %s347
    %p356 = scmp.eq.s32.totalorder %s25, 1
    %p357 = por %p355, %p356
    %p358 = scmp.ne.s32.totalorder %s347, %s348
    %p359 = scmp.eq.s32.totalorder %s25, 0
    %p360 = por %p358, %p359
    %p361 = scmp.ne.s32.totalorder %s347, %s348
    %p362 = scmp.eq.s32.totalorder %s26, 1
    %p363 = por %p361, %p362
    %p365 = scmp.ne.s32.totalorder %s348, %s364
    %p366 = scmp.eq.s32.totalorder %s26, 0
    %p367 = por %p365, %p366
    %p368 = scmp.le.s32.totalorder 1, %s20
    %p369 = scmp.lt.s32.totalorder %s20, 3
    %p370 = pnand %p368, %p369
    %p371 = pneg %p370
    // Predicated region
    $region9: #{decoder_forward.1} parent=5 // pred_check
      _
    $region10: #{decoder_forward.1} parent=5 // pred_check_branch
      %373 = sbr.rel (%p370) target = $region12
    $region11: #{decoder_forward.1} parent=5 // pred_region
      %s374 = ssub.s32 %s20, 1
      // Predicated region
      $region13: #{decoder_forward.1} parent=11 // pred_check
        %p375 = pneg %p145
      $region14: #{decoder_forward.1} parent=11 // pred_check_branch
        %377 = sbr.rel (%p375) target = $region16
      $region15: #{decoder_forward.1} parent=11 // pred_region
        _
      $region16: #{decoder_forward.1} parent=11 // pred_fallthru
        _
      // Predicated region
      $region17: #{decoder_forward.1} parent=11 // pred_check
        %p378 = pneg %p166
      $region18: #{decoder_forward.1} parent=11 // pred_check_branch
        %380 = sbr.rel (%p378) target = $region20
      $region19: #{decoder_forward.1} parent=11 // pred_region
        _
      $region20: #{decoder_forward.1} parent=11 // pred_fallthru
        _
      // Predicated region
      $region21: #{decoder_forward.1} parent=11 // pred_check
        %p381 = pneg %p187
      $region22: #{decoder_forward.1} parent=11 // pred_check_branch
        %383 = sbr.rel (%p381) target = $region24
      $region23: #{decoder_forward.1} parent=11 // pred_region
        _
      $region24: #{decoder_forward.1} parent=11 // pred_fallthru
        _
      // Predicated region
      $region25: #{decoder_forward.1} parent=11 // pred_check
        %p384 = pneg %p208
      $region26: #{decoder_forward.1} parent=11 // pred_check_branch
        %386 = sbr.rel (%p384) target = $region28
      $region27: #{decoder_forward.1} parent=11 // pred_region
        _
      $region28: #{decoder_forward.1} parent=11 // pred_fallthru
        _
      // Predicated region
      $region29: #{decoder_forward.1} parent=11 // pred_check
        %p387 = pneg %p229
      $region30: #{decoder_forward.1} parent=11 // pred_check_branch
        %389 = sbr.rel (%p387) target = $region32
      $region31: #{decoder_forward.1} parent=11 // pred_region
        _
      $region32: #{decoder_forward.1} parent=11 // pred_fallthru
        _
      // Predicated region
      $region33: #{decoder_forward.1} parent=11 // pred_check
        %p390 = pneg %p250
      $region34: #{decoder_forward.1} parent=11 // pred_check_branch
        %392 = sbr.rel (%p390) target = $region36
      $region35: #{decoder_forward.1} parent=11 // pred_region
        _
      $region36: #{decoder_forward.1} parent=11 // pred_fallthru
        _
      // Predicated region
      $region37: #{decoder_forward.1} parent=11 // pred_check
        %p393 = pneg %p271
      $region38: #{decoder_forward.1} parent=11 // pred_check_branch
        %395 = sbr.rel (%p393) target = $region40
      $region39: #{decoder_forward.1} parent=11 // pred_region
        _
      $region40: #{decoder_forward.1} parent=11 // pred_fallthru
        _
      // Predicated region
      $region41: #{decoder_forward.1} parent=11 // pred_check
        %p396 = pneg %p292
      $region42: #{decoder_forward.1} parent=11 // pred_check_branch
        %398 = sbr.rel (%p396) target = $region44
      $region43: #{decoder_forward.1} parent=11 // pred_region
        _
      $region44: #{decoder_forward.1} parent=11 // pred_fallthru
        _
      // Predicated region
      $region45: #{decoder_forward.1} parent=11 // pred_check
        %p399 = pneg %p313
      $region46: #{decoder_forward.1} parent=11 // pred_check_branch
        %401 = sbr.rel (%p399) target = $region48
      $region47: #{decoder_forward.1} parent=11 // pred_region
        _
      $region48: #{decoder_forward.1} parent=11 // pred_fallthru
        _
      // Predicated region
      $region49: #{decoder_forward.1} parent=11 // pred_check
        %p402 = pneg %p334
      $region50: #{decoder_forward.1} parent=11 // pred_check_branch
        %404 = sbr.rel (%p402) target = $region52
      $region51: #{decoder_forward.1} parent=11 // pred_region
        _
      $region52: #{decoder_forward.1} parent=11 // pred_fallthru
        _
    $region12: #{decoder_forward.1} parent=5 // pred_fallthru
      _
    %p405 = scmp.lt.s32.totalorder %s20, 2
    // Predicated region
    $region53: #{decoder_forward.1} parent=5 // pred_check
      %p406 = pneg %p405
    $region54: #{decoder_forward.1} parent=5 // pred_check_branch
      %408 = sbr.rel (%p406) target = $region56
    $region55: #{decoder_forward.1} parent=5 // pred_region
      // Predicated region
      $region57: #{decoder_forward.1} parent=55 // pred_check
        %p409 = pneg %p40
      $region58: #{decoder_forward.1} parent=55 // pred_check_branch
        %411 = sbr.rel (%p409) target = $region60
      $region59: #{decoder_forward.1} parent=55 // pred_region
        %p412 = scmp.lt.s32.totalorder %s20, 1
        %s413 = scalar_select %p412, %s20, 1
        %s414 = smul.addr %s413, 4
        %s415 = scalar_lea.vmem %s0, %s414
      $region60: #{decoder_forward.1} parent=55 // pred_fallthru
        _
      // Predicated region
      $region61: #{decoder_forward.1} parent=55 // pred_check
        %p416 = pneg %p66
      $region62: #{decoder_forward.1} parent=55 // pred_check_branch
        %418 = sbr.rel (%p416) target = $region64
      $region63: #{decoder_forward.1} parent=55 // pred_region
        %p419 = scmp.lt.s32.totalorder %s20, 1
        %s420 = scalar_select %p419, %s20, 1
        %s421 = smul.addr %s420, 4
        %s422 = scalar_lea.vmem %s1, %s421
      $region64: #{decoder_forward.1} parent=55 // pred_fallthru
        _
      // Predicated region
      $region65: #{decoder_forward.1} parent=55 // pred_check
        %p423 = pneg %p92
      $region66: #{decoder_forward.1} parent=55 // pred_check_branch
        %425 = sbr.rel (%p423) target = $region68
      $region67: #{decoder_forward.1} parent=55 // pred_region
        %p426 = scmp.lt.s32.totalorder %s20, 1
        %s427 = scalar_select %p426, %s20, 1
        %s428 = smul.addr %s427, 8
        %s429 = scalar_lea.vmem %s2, %s428
      $region68: #{decoder_forward.1} parent=55 // pred_fallthru
        _
      // Predicated region
      $region69: #{decoder_forward.1} parent=55 // pred_check
        %p430 = pneg %p118
      $region70: #{decoder_forward.1} parent=55 // pred_check_branch
        %432 = sbr.rel (%p430) target = $region72
      $region71: #{decoder_forward.1} parent=55 // pred_region
        %p433 = scmp.lt.s32.totalorder %s20, 1
        %s434 = scalar_select %p433, %s20, 1
        %s435 = smul.addr %s434, 2
        %s436 = smul.addr %s435, 8
        %s437 = scalar_lea.vmem %s3, %s436
      $region72: #{decoder_forward.1} parent=55 // pred_fallthru
        _
    $region56: #{decoder_forward.1} parent=5 // pred_fallthru
      _
    %p438 = scmp.le.s32.totalorder 1, %s20
    %p439 = scmp.lt.s32.totalorder %s20, 3
    %p440 = pnand %p438, %p439
    %p441 = pneg %p440
    // Predicated region
    $region73: #{decoder_forward.1} parent=5 // pred_check
      _
    $region74: #{decoder_forward.1} parent=5 // pred_check_branch
      %443 = sbr.rel (%p440) target = $region76
    $region75: #{decoder_forward.1} parent=5 // pred_region
      %s444 = ssub.s32 %s20, 1
      %p445 = scmp.lt.s32.totalorder %s25, 1
      %s446 = scalar_select %p445, %s25, 1
      %s447 = smul.addr %s446, 4
      %s448 = scalar_lea.vmem %s0, %s447
      %p449 = pneg %p46
      %p450 = pneg %p43
      %p451 = scmp.lt.s32.totalorder %s25, 1
      %s452 = scalar_select %p451, %s25, 1
      %s453 = smul.addr %s452, 4
      %s454 = scalar_lea.vmem %s1, %s453
      %p455 = pneg %p72
      %p456 = pneg %p69
      %p457 = scmp.lt.s32.totalorder %s25, 1
      %s458 = scalar_select %p457, %s25, 1
      %s459 = smul.addr %s458, 8
      %s460 = scalar_lea.vmem %s2, %s459
      %p461 = pneg %p98
      %p462 = pneg %p95
      %p463 = scmp.lt.s32.totalorder %s25, 1
      %s464 = scalar_select %p463, %s25, 1
      %s465 = smul.addr %s464, 2
      %s466 = smul.addr %s465, 8
      %s467 = scalar_lea.vmem %s3, %s466
      %p468 = pneg %p124
      %p469 = pneg %p121
      %p470 = pneg %p145
      %p471 = pneg %p142
      %p472 = pneg %p166
      %p473 = pneg %p163
      %p474 = pneg %p187
      %p475 = pneg %p184
      %p476 = pneg %p208
      %p477 = pneg %p205
      %p478 = pneg %p229
      %p479 = pneg %p226
      %p480 = pneg %p250
      %p481 = pneg %p247
      %p482 = pneg %p271
      %p483 = pneg %p268
      %p484 = pneg %p292
      %p485 = pneg %p289
      %p486 = pneg %p313
      %p487 = pneg %p310
      %p488 = pneg %p334
      %p489 = pneg %p331
      %p490 = pneg %p360
      %p491 = pneg %p357
      %p492 = scmp.lt.s32.totalorder %s25, 1
      %s493 = scalar_select %p492, %s25, 1
      %s494 = smul.addr %s493, 2
      %s495 = smul.addr %s494, 8
      %s496 = scalar_lea.vmem %s14, %s495
      %p497 = scmp.lt.s32.totalorder %s25, 1
      %s498 = scalar_select %p497, %s25, 1
      %s499 = smul.addr %s498, 4
      %s500 = scalar_lea.vmem %s0, %s499
      %p501 = scmp.lt.s32.totalorder %s25, 1
      %s502 = scalar_select %p501, %s25, 1
      %s503 = smul.addr %s502, 4
      %s504 = scalar_lea.vmem %s1, %s503
      %p505 = scmp.lt.s32.totalorder %s25, 1
      %s506 = scalar_select %p505, %s25, 1
      %s507 = smul.addr %s506, 8
      %s508 = scalar_lea.vmem %s2, %s507
      %p509 = scmp.lt.s32.totalorder %s25, 1
      %s510 = scalar_select %p509, %s25, 1
      %s511 = smul.addr %s510, 2
      %s512 = smul.addr %s511, 8
      %s513 = scalar_lea.vmem %s3, %s512
      %p514 = scmp.lt.s32.totalorder %s25, 1
      %s515 = scalar_select %p514, %s25, 1
      %s516 = smul.addr %s515, 2
      %s517 = smul.addr %s516, 8
      %s518 = scalar_lea.vmem %s14, %s517
      %v520 = vld [vmem:[%s500] sm:$0xf]
      %v521 = vld [vmem:[%s504] sm:$0xf]
      %v522 = vadd.f32 %v520, %v521
      %v523 = vld [vmem:[%s5] sm:$0x7]
      %vm524 = vcmask 516096
      %vm525 = vsmask.f32 256
      %vm526 = vmand %vm524, %vm525
      %v527 = vld [vmem:[#allocation2] sm:$0x1]
      %v528 = vsel %vm526, 0, %v527
      %529 = vst [vmem:[#allocation2] sm:$0x1] %v528
      %vm530 = vcmask 518146
      %vm531 = vsmask.f32 7946
      %vm532 = vmand %vm530, %vm531
      %v533 = vld [vmem:[#allocation2] sm:$0x4]
      %v534 = vsel %vm532, 0, %v533
      %535 = vst [vmem:[#allocation2] sm:$0x4] %v534
      %v536 = vpack.c.bf16 %v522, %v522
      %v538 = vunpack.c.l.b16 %v536
      %v539 = vpack.c.b16 %v538, %v538
      %v541 = vshrl.u32 %v539, 16
      %v543 = vrot.slane %v541, 7
      %v544 = vshll.u32 %v539, 16
      %v546 = vor.u32 %v543, %v544
      %vm548 = vcmask 518144
      %vm549 = vsmask.f32 2306
      %vm550 = vmand %vm548, %vm549
      %v551 = vld [vmem:[#allocation2] sm:$0x7]
      %v552 = vsel %vm550, %v546, %v551
      %553 = vst [vmem:[#allocation2] sm:$0x7] %v552
      %v554 = vld [vmem:[#allocation2] sm:$0x3]
      %v555 = vld [vmem:[%s4] sm:$0xf]
      %v556 = vld [vmem:[%s4 + $0x4] sm:$0xf]
      %v557 = vld [vmem:[%s4 + $0x8] sm:$0xf]
      %v558 = vld [vmem:[%s4 + $0xc] sm:$0xf]
      %v559 = vld [vmem:[%s4 + $0x10] sm:$0xf]
      %v560 = vld [vmem:[%s4 + $0x14] sm:$0xf]
      %v561 = vld [vmem:[%s4 + $0x18] sm:$0xf]
      %v562 = vld [vmem:[%s4 + $0x1c] sm:$0xf]
      %v563 = vld [vmem:[#allocation2] sm:$0x7]
      %s564 = scalar_lea.vmem %s4, 32
      %v565 = vld [vmem:[%s564] sm:$0xf]
      %v566 = vld [vmem:[%s564 + $0x4] sm:$0xf]
      %v567 = vld [vmem:[%s564 + $0x8] sm:$0xf]
      %v568 = vld [vmem:[%s564 + $0xc] sm:$0xf]
      %v569 = vld [vmem:[%s564 + $0x10] sm:$0xf]
      %v570 = vld [vmem:[%s564 + $0x14] sm:$0xf]
      %v571 = vld [vmem:[%s564 + $0x18] sm:$0xf]
      %v572 = vld [vmem:[%s564 + $0x1c] sm:$0xf]
      %v574 = vunpack.c.l.b16 %v563
      %v575 = vpack.c.b16 %v574, %v574
      %v577 = vshrl.u32 %v575, 16
      %v579 = vshll.u32 %v575, 16
      %v581 = vrot.slane %v579, 1
      %v582 = vor.u32 %v577, %v581
      %v591 = vunpack.c.l.b16 %v565
      %v592 = vunpack.c.l.b16 %v566
      %v593 = vunpack.c.l.b16 %v567
      %v594 = vunpack.c.l.b16 %v568
      %v595 = vunpack.c.l.b16 %v569
      %v596 = vunpack.c.l.b16 %v570
      %v597 = vunpack.c.l.b16 %v571
      %v598 = vunpack.c.l.b16 %v572
      %v599 = vpack.c.b16 %v592, %v591
      %v600 = vpack.c.b16 %v594, %v593
      %v601 = vpack.c.b16 %v596, %v595
      %v602 = vpack.c.b16 %v598, %v597
      %vm607 = vcmask 523264
      %v609 = vsel %vm607, %v582, 0
      %611 = vmatprep.subr.bf16.mxu0 0
      %612 = vmatpush1.bf16.msra.mxu0 %v599
      %613 = vmatprep.subr.bf16.mxu0 0
      %614 = vmatpush1.bf16.msra.mxu0 %v600
      %615 = vmatprep.subr.bf16.mxu0 0
      %616 = vmatpush1.bf16.msra.mxu0 %v601
      %617 = vmatprep.subr.bf16.mxu0 0
      %618 = vmatpush1.bf16.msra.mxu0 %v602
      %619 = vmatprep.subr.bf16.mxu0 0
      %620 = vmatpush1.bf16.msra.mxu0 0
      %621 = vmatprep.subr.bf16.mxu0 0
      %622 = vmatpush1.bf16.msra.mxu0 0
      %623 = vmatprep.subr.bf16.mxu0 0
      %624 = vmatpush1.bf16.msra.mxu0 0
      %625 = vmatprep.subr.bf16.mxu0 0
      %626 = vmatpush1.bf16.msra.mxu0 0
      %627 = vmatprep.subr.bf16.mxu0 0
      %628 = vmatpush1.bf16.msra.mxu0 0
      %629 = vmatprep.subr.bf16.mxu0 0
      %630 = vmatpush1.bf16.msra.mxu0 0
      %631 = vmatprep.subr.bf16.mxu0 0
      %632 = vmatpush1.bf16.msra.mxu0 0
      %633 = vmatprep.subr.bf16.mxu0 0
      %634 = vmatpush1.bf16.msra.mxu0 0
      %635 = vmatprep.subr.bf16.mxu0 0
      %636 = vmatpush1.bf16.msra.mxu0 0
      %637 = vmatprep.subr.bf16.mxu0 0
      %638 = vmatpush1.bf16.msra.mxu0 0
      %639 = vmatprep.subr.bf16.mxu0 0
      %640 = vmatpush1.bf16.msra.mxu0 0
      %641 = vmatprep.subr.bf16.mxu0 0
      %642 = vmatpush1.bf16.msra.mxu0 0
      %643 = vmatprep.mubr.bf16.mxu0 0
      %644 = vmatmul.mubr.bf16.gmra.mrb[0].mxu0 %v609
      %v645 = vpop.f32.mrb[0].mxu0
      %v646 = vadd.f32 0.0, %v645
      %v647 = vpop.f32.mrb[0].mxu0
      %v648 = vpop.f32.mrb[0].mxu0
      %v649 = vpop.f32.mrb[0].mxu0
      %650 = vdwg.mxu0
      %v659 = vunpack.c.l.b16 %v555
      %v660 = vunpack.c.l.b16 %v556
      %v661 = vunpack.c.l.b16 %v557
      %v662 = vunpack.c.l.b16 %v558
      %v663 = vunpack.c.l.b16 %v559
      %v664 = vunpack.c.l.b16 %v560
      %v665 = vunpack.c.l.b16 %v561
      %v666 = vunpack.c.l.b16 %v562
      %v667 = vpack.c.b16 %v660, %v659
      %v668 = vpack.c.b16 %v662, %v661
      %v669 = vpack.c.b16 %v664, %v663
      %v670 = vpack.c.b16 %v666, %v665
      %v676 = vsel %vm607, %v554, 0
      %678 = vmatprep.subr.bf16.mxu0 0
      %679 = vmatpush1.bf16.msra.mxu0 %v667
      %680 = vmatprep.subr.bf16.mxu0 0
      %681 = vmatpush1.bf16.msra.mxu0 %v668
      %682 = vmatprep.subr.bf16.mxu0 0
      %683 = vmatpush1.bf16.msra.mxu0 %v669
      %684 = vmatprep.subr.bf16.mxu0 0
      %685 = vmatpush1.bf16.msra.mxu0 %v670
      %686 = vmatprep.subr.bf16.mxu0 0
      %687 = vmatpush1.bf16.msra.mxu0 0
      %688 = vmatprep.subr.bf16.mxu0 0
      %689 = vmatpush1.bf16.msra.mxu0 0
      %690 = vmatprep.subr.bf16.mxu0 0
      %691 = vmatpush1.bf16.msra.mxu0 0
      %692 = vmatprep.subr.bf16.mxu0 0
      %693 = vmatpush1.bf16.msra.mxu0 0
      %694 = vmatprep.subr.bf16.mxu0 0
      %695 = vmatpush1.bf16.msra.mxu0 0
      %696 = vmatprep.subr.bf16.mxu0 0
      %697 = vmatpush1.bf16.msra.mxu0 0
      %698 = vmatprep.subr.bf16.mxu0 0
      %699 = vmatpush1.bf16.msra.mxu0 0
      %700 = vmatprep.subr.bf16.mxu0 0
      %701 = vmatpush1.bf16.msra.mxu0 0
      %702 = vmatprep.subr.bf16.mxu0 0
      %703 = vmatpush1.bf16.msra.mxu0 0
      %704 = vmatprep.subr.bf16.mxu0 0
      %705 = vmatpush1.bf16.msra.mxu0 0
      %706 = vmatprep.subr.bf16.mxu0 0
      %707 = vmatpush1.bf16.msra.mxu0 0
      %708 = vmatprep.subr.bf16.mxu0 0
      %709 = vmatpush1.bf16.msra.mxu0 0
      %710 = vmatprep.mubr.bf16.mxu0 0
      %711 = vmatmul.mubr.bf16.gmra.mrb[0].mxu0 %v676
      %v712 = vpop.f32.mrb[0].mxu0
      %v713 = vadd.f32 %v646, %v712
      %v714 = vpop.f32.mrb[0].mxu0
      %v715 = vpop.f32.mrb[0].mxu0
      %v716 = vpop.f32.mrb[0].mxu0
      %717 = vdwg.mxu0
      %v718 = vld [vmem:[#allocation2] sm:$0x6]
      %s719 = scalar_lea.vmem %s4, 64
      %v720 = vld [vmem:[%s719] sm:$0xf]
      %v721 = vld [vmem:[%s719 + $0x4] sm:$0xf]
      %v722 = vld [vmem:[%s719 + $0x8] sm:$0xf]
      %v723 = vld [vmem:[%s719 + $0xc] sm:$0xf]
      %v724 = vld [vmem:[%s719 + $0x10] sm:$0xf]
      %v725 = vld [vmem:[%s719 + $0x14] sm:$0xf]
      %v726 = vld [vmem:[%s719 + $0x18] sm:$0xf]
      %v727 = vld [vmem:[%s719 + $0x1c] sm:$0xf]
      %v729 = vunpack.c.l.b16 %v718
      %v730 = vpack.c.b16 %v729, %v729
      %v731 = vrot.slane %v730, 1
      %v740 = vunpack.c.l.b16 %v720
      %v741 = vunpack.c.l.b16 %v721
      %v742 = vunpack.c.l.b16 %v722
      %v743 = vunpack.c.l.b16 %v723
      %v744 = vunpack.c.l.b16 %v724
      %v745 = vunpack.c.l.b16 %v725
      %v746 = vunpack.c.l.b16 %v726
      %v747 = vunpack.c.l.b16 %v727
      %v748 = vpack.c.b16 %v741, %v740
      %v749 = vpack.c.b16 %v743, %v742
      %v750 = vpack.c.b16 %v745, %v744
      %v751 = vpack.c.b16 %v747, %v746
      %v757 = vsel %vm607, %v731, 0
      %759 = vmatprep.subr.bf16.mxu0 0
      %760 = vmatpush1.bf16.msra.mxu0 %v748
      %761 = vmatprep.subr.bf16.mxu0 0
      %762 = vmatpush1.bf16.msra.mxu0 %v749
      %763 = vmatprep.subr.bf16.mxu0 0
      %764 = vmatpush1.bf16.msra.mxu0 %v750
      %765 = vmatprep.subr.bf16.mxu0 0
      %766 = vmatpush1.bf16.msra.mxu0 %v751
      %767 = vmatprep.subr.bf16.mxu0 0
      %768 = vmatpush1.bf16.msra.mxu0 0
      %769 = vmatprep.subr.bf16.mxu0 0
      %770 = vmatpush1.bf16.msra.mxu0 0
      %771 = vmatprep.subr.bf16.mxu0 0
      %772 = vmatpush1.bf16.msra.mxu0 0
      %773 = vmatprep.subr.bf16.mxu0 0
      %774 = vmatpush1.bf16.msra.mxu0 0
      %775 = vmatprep.subr.bf16.mxu0 0
      %776 = vmatpush1.bf16.msra.mxu0 0
      %777 = vmatprep.subr.bf16.mxu0 0
      %778 = vmatpush1.bf16.msra.mxu0 0
      %779 = vmatprep.subr.bf16.mxu0 0
      %780 = vmatpush1.bf16.msra.mxu0 0
      %781 = vmatprep.subr.bf16.mxu0 0
      %782 = vmatpush1.bf16.msra.mxu0 0
      %783 = vmatprep.subr.bf16.mxu0 0
      %784 = vmatpush1.bf16.msra.mxu0 0
      %785 = vmatprep.subr.bf16.mxu0 0
      %786 = vmatpush1.bf16.msra.mxu0 0
      %787 = vmatprep.subr.bf16.mxu0 0
      %788 = vmatpush1.bf16.msra.mxu0 0
      %789 = vmatprep.subr.bf16.mxu0 0
      %790 = vmatpush1.bf16.msra.mxu0 0
      %791 = vmatprep.mubr.bf16.mxu0 0
      %792 = vmatmul.mubr.bf16.gmra.mrb[0].mxu0 %v757
      %v793 = vpop.f32.mrb[0].mxu0
      %v794 = vadd.f32 0.0, %v793
      %v795 = vpop.f32.mrb[0].mxu0
      %v796 = vpop.f32.mrb[0].mxu0
      %v797 = vpop.f32.mrb[0].mxu0
      %798 = vdwg.mxu0
      %v799 = vadd.f32 %v713, %v794
      %vm800 = vcmask 519168
      %v801 = vsel %vm800, %v799, 0.0
      %802 = vadd.xlane.f32.xlu0 %v801
      %v803 = vpop.xlane.xlu0 %802
      %v804 = vrot.slane %v803, 4
      %v805 = vadd.f32 %v803, %v804
      %v806 = vrot.slane %v805, 2
      %v807 = vadd.f32 %v805, %v806
      %v808 = vrot.slane %v807, 1
      %v809 = vadd.f32 %v807, %v808
      %s810 = vtos %v809
      %s811 = smul.f32 %s810, 0.00390625
      %v812 = vmul.f32 %v799, %v799
      %v813 = vsel %vm800, %v812, 0.0
      %814 = vadd.xlane.f32.xlu0 %v813
      %v815 = vpop.xlane.xlu0 %814
      %v816 = vrot.slane %v815, 4
      %v817 = vadd.f32 %v815, %v816
      %v818 = vrot.slane %v817, 2
      %v819 = vadd.f32 %v817, %v818
      %v820 = vrot.slane %v819, 1
      %v821 = vadd.f32 %v819, %v820
      %s822 = vtos %v821
      %s823 = smul.f32 %s822, 0.00390625
      %s824 = smul.f32 %s811, %s811
      %s825 = ssub.f32 %s823, %s824
      %v826 = vstv %s811
      %v827 = vsub.f32 %v799, %v826
      %s828 = sadd.f32 %s825, 1e-05
      %v829 = vstv %s828
      %v830 = vrsqrt.pop %v829
      %s831 = vtos %v830
      %v832 = vstv %s831
      %v833 = vmul.f32 %v827, %v832
      %v834 = vlaneseq
      %v835 = vshrl.u32 %v834, 7
      %v836 = vsub.s32 0, %v835
      %v837 = vrot.slane %v523, %v836
      %v838 = vmul.f32 %v833, %v837
      %v839 = vlaneseq
      %v840 = vshrl.u32 %v839, 7
      %v841 = vsub.s32 1, %v840
      %v842 = vrot.slane %v523, %v841
      %v843 = vadd.f32 %v838, %v842
      %vm844 = vcmp.ge.f32.partialorder %v843, 0.0
      %v845 = vlaneseq
      %v846 = vshrl.u32 %v845, 7
      %v847 = vsub.s32 2, %v846
      %v848 = vrot.slane %v523, %v847
      %v849 = vmul.f32 %v848, %v843
      %v850 = vsel %vm844, %v843, %v849
      %v851 = vpack.c.bf16 %v850, %v850
      %v853 = vunpack.c.l.b16 %v851
      %v854 = vpack.c.b16 %v853, %v853
      %v856 = vshrl.u32 %v854, 16
      %v858 = vrot.slane %v856, 7
      %v859 = vshll.u32 %v854, 16
      %v861 = vor.u32 %v858, %v859
      %v863 = vsel %vm550, %v861, %v563
      %864 = vst [vmem:[#allocation2] sm:$0x7] %v863
      %v865 = vld [vmem:[#allocation2] sm:$0x3]
      %s866 = scalar_lea.vmem %s4, 96
      %v867 = vld [vmem:[%s866] sm:$0xf]
      %v868 = vld [vmem:[%s866 + $0x4] sm:$0xf]
      %v869 = vld [vmem:[%s866 + $0x8] sm:$0xf]
      %v870 = vld [vmem:[%s866 + $0xc] sm:$0xf]
      %v871 = vld [vmem:[%s866 + $0x10] sm:$0xf]
      %v872 = vld [vmem:[%s866 + $0x14] sm:$0xf]
      %v873 = vld [vmem:[%s866 + $0x18] sm:$0xf]
      %v874 = vld [vmem:[%s866 + $0x1c] sm:$0xf]
      %v875 = vld [vmem:[#allocation2] sm:$0x7]
      %s876 = scalar_lea.vmem %s4, 128
      %v877 = vld [vmem:[%s876] sm:$0xf]
      %v878 = vld [vmem:[%s876 + $0x4] sm:$0xf]
      %v879 = vld [vmem:[%s876 + $0x8] sm:$0xf]
      %v880 = vld [vmem:[%s876 + $0xc] sm:$0xf]
      %v881 = vld [vmem:[%s876 + $0x10] sm:$0xf]
      %v882 = vld [vmem:[%s876 + $0x14] sm:$0xf]
      %v883 = vld [vmem:[%s876 + $0x18] sm:$0xf]
      %v884 = vld [vmem:[%s876 + $0x1c] sm:$0xf]
      %v886 = vunpack.c.l.b16 %v875
      %v887 = vpack.c.b16 %v886, %v886
      %v889 = vshrl.u32 %v887, 16
      %v891 = vshll.u32 %v887, 16
      %v893 = vrot.slane %v891, 1
      %v894 = vor.u32 %v889, %v893
      %v903 = vunpack.c.l.b16 %v877
      %v904 = vunpack.c.l.b16 %v878
      %v905 = vunpack.c.l.b16 %v879
      %v906 = vunpack.c.l.b16 %v880
      %v907 = vunpack.c.l.b16 %v881
      %v908 = vunpack.c.l.b16 %v882
      %v909 = vunpack.c.l.b16 %v883
      %v910 = vunpack.c.l.b16 %v884
      %v911 = vpack.c.b16 %v904, %v903
      %v912 = vpack.c.b16 %v906, %v905
      %v913 = vpack.c.b16 %v908, %v907
      %v914 = vpack.c.b16 %v910, %v909
      %v920 = vsel %vm607, %v894, 0
      %922 = vmatprep.subr.bf16.mxu0 0
      %923 = vmatpush1.bf16.msra.mxu0 %v911
      %924 = vmatprep.subr.bf16.mxu0 0
      %925 = vmatpush1.bf16.msra.mxu0 %v912
      %926 = vmatprep.subr.bf16.mxu0 0
      %927 = vmatpush1.bf16.msra.mxu0 %v913
      %928 = vmatprep.subr.bf16.mxu0 0
      %929 = vmatpush1.bf16.msra.mxu0 %v914
      %930 = vmatprep.subr.bf16.mxu0 0
      %931 = vmatpush1.bf16.msra.mxu0 0
      %932 = vmatprep.subr.bf16.mxu0 0
      %933 = vmatpush1.bf16.msra.mxu0 0
      %934 = vmatprep.subr.bf16.mxu0 0
      %935 = vmatpush1.bf16.msra.mxu0 0
      %936 = vmatprep.subr.bf16.mxu0 0
      %937 = vmatpush1.bf16.msra.mxu0 0
      %938 = vmatprep.subr.bf16.mxu0 0
      %939 = vmatpush1.bf16.msra.mxu0 0
      %940 = vmatprep.subr.bf16.mxu0 0
      %941 = vmatpush1.bf16.msra.mxu0 0
      %942 = vmatprep.subr.bf16.mxu0 0
      %943 = vmatpush1.bf16.msra.mxu0 0
      %944 = vmatprep.subr.bf16.mxu0 0
      %945 = vmatpush1.bf16.msra.mxu0 0
      %946 = vmatprep.subr.bf16.mxu0 0
      %947 = vmatpush1.bf16.msra.mxu0 0
      %948 = vmatprep.subr.bf16.mxu0 0
      %949 = vmatpush1.bf16.msra.mxu0 0
      %950 = vmatprep.subr.bf16.mxu0 0
      %951 = vmatpush1.bf16.msra.mxu0 0
      %952 = vmatprep.subr.bf16.mxu0 0
      %953 = vmatpush1.bf16.msra.mxu0 0
      %954 = vmatprep.mubr.bf16.mxu0 0
      %955 = vmatmul.mubr.bf16.gmra.mrb[0].mxu0 %v920
      %v956 = vpop.f32.mrb[0].mxu0
      %v957 = vadd.f32 0.0, %v956
      %v958 = vpop.f32.mrb[0].mxu0
      %v959 = vpop.f32.mrb[0].mxu0
      %v960 = vpop.f32.mrb[0].mxu0
      %961 = vdwg.mxu0
      %v970 = vunpack.c.l.b16 %v867
      %v971 = vunpack.c.l.b16 %v868
      %v972 = vunpack.c.l.b16 %v869
      %v973 = vunpack.c.l.b16 %v870
      %v974 = vunpack.c.l.b16 %v871
      %v975 = vunpack.c.l.b16 %v872
      %v976 = vunpack.c.l.b16 %v873
      %v977 = vunpack.c.l.b16 %v874
      %v978 = vpack.c.b16 %v971, %v970
      %v979 = vpack.c.b16 %v973, %v972
      %v980 = vpack.c.b16 %v975, %v974
      %v981 = vpack.c.b16 %v977, %v976
      %v987 = vsel %vm607, %v865, 0
      %989 = vmatprep.subr.bf16.mxu0 0
      %990 = vmatpush1.bf16.msra.mxu0 %v978
      %991 = vmatprep.subr.bf16.mxu0 0
      %992 = vmatpush1.bf16.msra.mxu0 %v979
      %993 = vmatprep.subr.bf16.mxu0 0
      %994 = vmatpush1.bf16.msra.mxu0 %v980
      %995 = vmatprep.subr.bf16.mxu0 0
      %996 = vmatpush1.bf16.msra.mxu0 %v981
      %997 = vmatprep.subr.bf16.mxu0 0
      %998 = vmatpush1.bf16.msra.mxu0 0
      %999 = vmatprep.subr.bf16.mxu0 0
      %1000 = vmatpush1.bf16.msra.mxu0 0
      %1001 = vmatprep.subr.bf16.mxu0 0
      %1002 = vmatpush1.bf16.msra.mxu0 0
      %1003 = vmatprep.subr.bf16.mxu0 0
      %1004 = vmatpush1.bf16.msra.mxu0 0
      %1005 = vmatprep.subr.bf16.mxu0 0
      %1006 = vmatpush1.bf16.msra.mxu0 0
      %1007 = vmatprep.subr.bf16.mxu0 0
      %1008 = vmatpush1.bf16.msra.mxu0 0
      %1009 = vmatprep.subr.bf16.mxu0 0
      %1010 = vmatpush1.bf16.msra.mxu0 0
      %1011 = vmatprep.subr.bf16.mxu0 0
      %1012 = vmatpush1.bf16.msra.mxu0 0
      %1013 = vmatprep.subr.bf16.mxu0 0
      %1014 = vmatpush1.bf16.msra.mxu0 0
      %1015 = vmatprep.subr.bf16.mxu0 0
      %1016 = vmatpush1.bf16.msra.mxu0 0
      %1017 = vmatprep.subr.bf16.mxu0 0
      %1018 = vmatpush1.bf16.msra.mxu0 0
      %1019 = vmatprep.subr.bf16.mxu0 0
      %1020 = vmatpush1.bf16.msra.mxu0 0
      %1021 = vmatprep.mubr.bf16.mxu0 0
      %1022 = vmatmul.mubr.bf16.gmra.mrb[0].mxu0 %v987
      %v1023 = vpop.f32.mrb[0].mxu0
      %v1024 = vadd.f32 %v957, %v1023
      %v1025 = vpop.f32.mrb[0].mxu0
      %v1026 = vpop.f32.mrb[0].mxu0
      %v1027 = vpop.f32.mrb[0].mxu0
      %1028 = vdwg.mxu0
      %v1029 = vld [vmem:[#allocation2] sm:$0x6]
      %s1030 = scalar_lea.vmem %s4, 160
      %v1031 = vld [vmem:[%s1030] sm:$0xf]
      %v1032 = vld [vmem:[%s1030 + $0x4] sm:$0xf]
      %v1033 = vld [vmem:[%s1030 + $0x8] sm:$0xf]
      %v1034 = vld [vmem:[%s1030 + $0xc] sm:$0xf]
      %v1035 = vld [vmem:[%s1030 + $0x10] sm:$0xf]
      %v1036 = vld [vmem:[%s1030 + $0x14] sm:$0xf]
      %v1037 = vld [vmem:[%s1030 + $0x18] sm:$0xf]
      %v1038 = vld [vmem:[%s1030 + $0x1c] sm:$0xf]
      %v1040 = vunpack.c.l.b16 %v1029
      %v1041 = vpack.c.b16 %v1040, %v1040
      %v1042 = vrot.slane %v1041, 1
      %v1051 = vunpack.c.l.b16 %v1031
      %v1052 = vunpack.c.l.b16 %v1032
      %v1053 = vunpack.c.l.b16 %v1033
      %v1054 = vunpack.c.l.b16 %v1034
      %v1055 = vunpack.c.l.b16 %v1035
      %v1056 = vunpack.c.l.b16 %v1036
      %v1057 = vunpack.c.l.b16 %v1037
      %v1058 = vunpack.c.l.b16 %v1038
      %v1059 = vpack.c.b16 %v1052, %v1051
      %v1060 = vpack.c.b16 %v1054, %v1053
      %v1061 = vpack.c.b16 %v1056, %v1055
      %v1062 = vpack.c.b16 %v1058, %v1057
      %v1068 = vsel %vm607, %v1042, 0
      %1070 = vmatprep.subr.bf16.mxu0 0
      %1071 = vmatpush1.bf16.msra.mxu0 %v1059
      %1072 = vmatprep.subr.bf16.mxu0 0
      %1073 = vmatpush1.bf16.msra.mxu0 %v1060
      %1074 = vmatprep.subr.bf16.mxu0 0
      %1075 = vmatpush1.bf16.msra.mxu0 %v1061
      %1076 = vmatprep.subr.bf16.mxu0 0
      %1077 = vmatpush1.bf16.msra.mxu0 %v1062
      %1078 = vmatprep.subr.bf16.mxu0 0
      %1079 = vmatpush1.bf16.msra.mxu0 0
      %1080 = vmatprep.subr.bf16.mxu0 0
      %1081 = vmatpush1.bf16.msra.mxu0 0
      %1082 = vmatprep.subr.bf16.mxu0 0
      %1083 = vmatpush1.bf16.msra.mxu0 0
      %1084 = vmatprep.subr.bf16.mxu0 0
      %1085 = vmatpush1.bf16.msra.mxu0 0
      %1086 = vmatprep.subr.bf16.mxu0 0
      %1087 = vmatpush1.bf16.msra.mxu0 0
      %1088 = vmatprep.subr.bf16.mxu0 0
      %1089 = vmatpush1.bf16.msra.mxu0 0
      %1090 = vmatprep.subr.bf16.mxu0 0
      %1091 = vmatpush1.bf16.msra.mxu0 0
      %1092 = vmatprep.subr.bf16.mxu0 0
      %1093 = vmatpush1.bf16.msra.mxu0 0
      %1094 = vmatprep.subr.bf16.mxu0 0
      %1095 = vmatpush1.bf16.msra.mxu0 0
      %1096 = vmatprep.subr.bf16.mxu0 0
      %1097 = vmatpush1.bf16.msra.mxu0 0
      %1098 = vmatprep.subr.bf16.mxu0 0
      %1099 = vmatpush1.bf16.msra.mxu0 0
      %1100 = vmatprep.subr.bf16.mxu0 0
      %1101 = vmatpush1.bf16.msra.mxu0 0
      %1102 = vmatprep.mubr.bf16.mxu0 0
      %1103 = vmatmul.mubr.bf16.gmra.mrb[0].mxu0 %v1068
      %v1104 = vpop.f32.mrb[0].mxu0
      %v1105 = vadd.f32 0.0, %v1104
      %v1106 = vpop.f32.mrb[0].mxu0
      %v1107 = vpop.f32.mrb[0].mxu0
      %v1108 = vpop.f32.mrb[0].mxu0
      %1109 = vdwg.mxu0
      %v1110 = vadd.f32 %v1024, %v1105
      %v1111 = vsel %vm800, %v1110, 0.0
      %1112 = vadd.xlane.f32.xlu0 %v1111
      %v1113 = vpop.xlane.xlu0 %1112
      %v1114 = vrot.slane %v1113, 4
      %v1115 = vadd.f32 %v1113, %v1114
      %v1116 = vrot.slane %v1115, 2
      %v1117 = vadd.f32 %v1115, %v1116
      %v1118 = vrot.slane %v1117, 1
      %v1119 = vadd.f32 %v1117, %v1118
      %s1120 = vtos %v1119
      %s1121 = smul.f32 %s1120, 0.00390625
      %v1122 = vmul.f32 %v1110, %v1110
      %v1123 = vsel %vm800, %v1122, 0.0
      %1124 = vadd.xlane.f32.xlu0 %v1123
      %v1125 = vpop.xlane.xlu0 %1124
      %v1126 = vrot.slane %v1125, 4
      %v1127 = vadd.f32 %v1125, %v1126
      %v1128 = vrot.slane %v1127, 2
      %v1129 = vadd.f32 %v1127, %v1128
      %v1130 = vrot.slane %v1129, 1
      %v1131 = vadd.f32 %v1129, %v1130
      %s1132 = vtos %v1131
      %s1133 = smul.f32 %s1132, 0.00390625
      %s1134 = smul.f32 %s1121, %s1121
      %s1135 = ssub.f32 %s1133, %s1134
      %v1136 = vstv %s1121
      %v1137 = vsub.f32 %v1110, %v1136
      %s1138 = sadd.f32 %s1135, 1e-05
      %v1139 = vstv %s1138
      %v1140 = vrsqrt.pop %v1139
      %s1141 = vtos %v1140
      %v1142 = vstv %s1141
      %v1143 = vmul.f32 %v1137, %v1142
      %v1144 = vmul.f32 %v1143, %v837
      %v1145 = vadd.f32 %v1144, %v842
      %vm1146 = vcmp.ge.f32.partialorder %v1145, 0.0
      %v1147 = vmul.f32 %v848, %v1145
      %v1148 = vsel %vm1146, %v1145, %v1147
      %v1149 = vpack.c.bf16 %v1148, %v1148
      %v1151 = vunpack.c.l.b16 %v1149
      %v1152 = vpack.c.b16 %v1151, %v1151
      %v1154 = vshrl.u32 %v1152, 16
      %v1156 = vrot.slane %v1154, 7
      %v1157 = vshll.u32 %v1152, 16
      %v1159 = vor.u32 %v1156, %v1157
      %v1161 = vsel %vm550, %v1159, %v875
      %1162 = vst [vmem:[#allocation2] sm:$0x7] %v1161
      %v1163 = vld [vmem:[#allocation2] sm:$0x3]
      %s1164 = scalar_lea.vmem %s4, 192
      %v1165 = vld [vmem:[%s1164] sm:$0xf]
      %v1166 = vld [vmem:[%s1164 + $0x4] sm:$0xf]
      %v1167 = vld [vmem:[%s1164 + $0x8] sm:$0xf]
      %v1168 = vld [vmem:[%s1164 + $0xc] sm:$0xf]
      %v1169 = vld [vmem:[%s1164 + $0x10] sm:$0xf]
      %v1170 = vld [vmem:[%s1164 + $0x14] sm:$0xf]
      %v1171 = vld [vmem:[%s1164 + $0x18] sm:$0xf]
      %v1172 = vld [vmem:[%s1164 + $0x1c] sm:$0xf]
      %v1173 = vld [vmem:[#allocation2] sm:$0x7]
      %s1174 = scalar_lea.vmem %s4, 224
      %v1175 = vld [vmem:[%s1174] sm:$0xf]
      %v1176 = vld [vmem:[%s1174 + $0x4] sm:$0xf]
      %v1177 = vld [vmem:[%s1174 + $0x8] sm:$0xf]
      %v1178 = vld [vmem:[%s1174 + $0xc] sm:$0xf]
      %v1179 = vld [vmem:[%s1174 + $0x10] sm:$0xf]
      %v1180 = vld [vmem:[%s1174 + $0x14] sm:$0xf]
      %v1181 = vld [vmem:[%s1174 + $0x18] sm:$0xf]
      %v1182 = vld [vmem:[%s1174 + $0x1c] sm:$0xf]
      %v1184 = vunpack.c.l.b16 %v1173
      %v1185 = vpack.c.b16 %v1184, %v1184
      %v1187 = vshrl.u32 %v1185, 16
      %v1189 = vshll.u32 %v1185, 16
      %v1191 = vrot.slane %v1189, 1
      %v1192 = vor.u32 %v1187, %v1191
      %v1201 = vunpack.c.l.b16 %v1175
      %v1202 = vunpack.c.l.b16 %v1176
      %v1203 = vunpack.c.l.b16 %v1177
      %v1204 = vunpack.c.l.b16 %v1178
      %v1205 = vunpack.c.l.b16 %v1179
      %v1206 = vunpack.c.l.b16 %v1180
      %v1207 = vunpack.c.l.b16 %v1181
      %v1208 = vunpack.c.l.b16 %v1182
      %v1209 = vpack.c.b16 %v1202, %v1201
      %v1210 = vpack.c.b16 %v1204, %v1203
      %v1211 = vpack.c.b16 %v1206, %v1205
      %v1212 = vpack.c.b16 %v1208, %v1207
      %v1218 = vsel %vm607, %v1192, 0
      %1220 = vmatprep.subr.bf16.mxu0 0
      %1221 = vmatpush1.bf16.msra.mxu0 %v1209
      %1222 = vmatprep.subr.bf16.mxu0 0
      %1223 = vmatpush1.bf16.msra.mxu0 %v1210
      %1224 = vmatprep.subr.bf16.mxu0 0
      %1225 = vmatpush1.bf16.msra.mxu0 %v1211
      %1226 = vmatprep.subr.bf16.mxu0 0
      %1227 = vmatpush1.bf16.msra.mxu0 %v1212
      %1228 = vmatprep.subr.bf16.mxu0 0
      %1229 = vmatpush1.bf16.msra.mxu0 0
      %1230 = vmatprep.subr.bf16.mxu0 0
      %1231 = vmatpush1.bf16.msra.mxu0 0
      %1232 = vmatprep.subr.bf16.mxu0 0
      %1233 = vmatpush1.bf16.msra.mxu0 0
      %1234 = vmatprep.subr.bf16.mxu0 0
      %1235 = vmatpush1.bf16.msra.mxu0 0
      %1236 = vmatprep.subr.bf16.mxu0 0
      %1237 = vmatpush1.bf16.msra.mxu0 0
      %1238 = vmatprep.subr.bf16.mxu0 0
      %1239 = vmatpush1.bf16.msra.mxu0 0
      %1240 = vmatprep.subr.bf16.mxu0 0
      %1241 = vmatpush1.bf16.msra.mxu0 0
      %1242 = vmatprep.subr.bf16.mxu0 0
      %1243 = vmatpush1.bf16.msra.mxu0 0
      %1244 = vmatprep.subr.bf16.mxu0 0
      %1245 = vmatpush1.bf16.msra.mxu0 0
      %1246 = vmatprep.subr.bf16.mxu0 0
      %1247 = vmatpush1.bf16.msra.mxu0 0
      %1248 = vmatprep.subr.bf16.mxu0 0
      %1249 = vmatpush1.bf16.msra.mxu0 0
      %1250 = vmatprep.subr.bf16.mxu0 0
      %1251 = vmatpush1.bf16.msra.mxu0 0
      %1252 = vmatprep.mubr.bf16.mxu0 0
      %1253 = vmatmul.mubr.bf16.gmra.mrb[0].mxu0 %v1218
      %v1254 = vpop.f32.mrb[0].mxu0
      %v1255 = vadd.f32 0.0, %v1254
      %v1256 = vpop.f32.mrb[0].mxu0
      %v1257 = vpop.f32.mrb[0].mxu0
      %v1258 = vpop.f32.mrb[0].mxu0
      %1259 = vdwg.mxu0
      %v1268 = vunpack.c.l.b16 %v1165
      %v1269 = vunpack.c.l.b16 %v1166
      %v1270 = vunpack.c.l.b16 %v1167
      %v1271 = vunpack.c.l.b16 %v1168
      %v1272 = vunpack.c.l.b16 %v1169
      %v1273 = vunpack.c.l.b16 %v1170
      %v1274 = vunpack.c.l.b16 %v1171
      %v1275 = vunpack.c.l.b16 %v1172
      %v1276 = vpack.c.b16 %v1269, %v1268
      %v1277 = vpack.c.b16 %v1271, %v1270
      %v1278 = vpack.c.b16 %v1273, %v1272
      %v1279 = vpack.c.b16 %v1275, %v1274
      %v1285 = vsel %vm607, %v1163, 0
      %1287 = vmatprep.subr.bf16.mxu0 0
      %1288 = vmatpush1.bf16.msra.mxu0 %v1276
      %1289 = vmatprep.subr.bf16.mxu0 0
      %1290 = vmatpush1.bf16.msra.mxu0 %v1277
      %1291 = vmatprep.subr.bf16.mxu0 0
      %1292 = vmatpush1.bf16.msra.mxu0 %v1278
      %1293 = vmatprep.subr.bf16.mxu0 0
      %1294 = vmatpush1.bf16.msra.mxu0 %v1279
      %1295 = vmatprep.subr.bf16.mxu0 0
      %1296 = vmatpush1.bf16.msra.mxu0 0
      %1297 = vmatprep.subr.bf16.mxu0 0
      %1298 = vmatpush1.bf16.msra.mxu0 0
      %1299 = vmatprep.subr.bf16.mxu0 0
      %1300 = vmatpush1.bf16.msra.mxu0 0
      %1301 = vmatprep.subr.bf16.mxu0 0
      %1302 = vmatpush1.bf16.msra.mxu0 0
      %1303 = vmatprep.subr.bf16.mxu0 0
      %1304 = vmatpush1.bf16.msra.mxu0 0
      %1305 = vmatprep.subr.bf16.mxu0 0
      %1306 = vmatpush1.bf16.msra.mxu0 0
      %1307 = vmatprep.subr.bf16.mxu0 0
      %1308 = vmatpush1.bf16.msra.mxu0 0
      %1309 = vmatprep.subr.bf16.mxu0 0
      %1310 = vmatpush1.bf16.msra.mxu0 0
      %1311 = vmatprep.subr.bf16.mxu0 0
      %1312 = vmatpush1.bf16.msra.mxu0 0
      %1313 = vmatprep.subr.bf16.mxu0 0
      %1314 = vmatpush1.bf16.msra.mxu0 0
      %1315 = vmatprep.subr.bf16.mxu0 0
      %1316 = vmatpush1.bf16.msra.mxu0 0
      %1317 = vmatprep.subr.bf16.mxu0 0
      %1318 = vmatpush1.bf16.msra.mxu0 0
      %1319 = vmatprep.mubr.bf16.mxu0 0
      %1320 = vmatmul.mubr.bf16.gmra.mrb[0].mxu0 %v1285
      %v1321 = vpop.f32.mrb[0].mxu0
      %v1322 = vadd.f32 %v1255, %v1321
      %v1323 = vpop.f32.mrb[0].mxu0
      %v1324 = vpop.f32.mrb[0].mxu0
      %v1325 = vpop.f32.mrb[0].mxu0
      %1326 = vdwg.mxu0
      %v1327 = vld [vmem:[#allocation2] sm:$0x6]
      %s1328 = scalar_lea.vmem %s4, 256
      %v1329 = vld [vmem:[%s1328] sm:$0xf]
      %v1330 = vld [vmem:[%s1328 + $0x4] sm:$0xf]
      %v1331 = vld [vmem:[%s1328 + $0x8] sm:$0xf]
      %v1332 = vld [vmem:[%s1328 + $0xc] sm:$0xf]
      %v1333 = vld [vmem:[%s1328 + $0x10] sm:$0xf]
      %v1334 = vld [vmem:[%s1328 + $0x14] sm:$0xf]
      %v1335 = vld [vmem:[%s1328 + $0x18] sm:$0xf]
      %v1336 = vld [vmem:[%s1328 + $0x1c] sm:$0xf]
      %v1338 = vunpack.c.l.b16 %v1327
      %v1339 = vpack.c.b16 %v1338, %v1338
      %v1340 = vrot.slane %v1339, 1
      %v1349 = vunpack.c.l.b16 %v1329
      %v1350 = vunpack.c.l.b16 %v1330
      %v1351 = vunpack.c.l.b16 %v1331
      %v1352 = vunpack.c.l.b16 %v1332
      %v1353 = vunpack.c.l.b16 %v1333
      %v1354 = vunpack.c.l.b16 %v1334
      %v1355 = vunpack.c.l.b16 %v1335
      %v1356 = vunpack.c.l.b16 %v1336
      %v1357 = vpack.c.b16 %v1350, %v1349
      %v1358 = vpack.c.b16 %v1352, %v1351
      %v1359 = vpack.c.b16 %v1354, %v1353
      %v1360 = vpack.c.b16 %v1356, %v1355
      %v1366 = vsel %vm607, %v1340, 0
      %1368 = vmatprep.subr.bf16.mxu0 0
      %1369 = vmatpush1.bf16.msra.mxu0 %v1357
      %1370 = vmatprep.subr.bf16.mxu0 0
      %1371 = vmatpush1.bf16.msra.mxu0 %v1358
      %1372 = vmatprep.subr.bf16.mxu0 0
      %1373 = vmatpush1.bf16.msra.mxu0 %v1359
      %1374 = vmatprep.subr.bf16.mxu0 0
      %1375 = vmatpush1.bf16.msra.mxu0 %v1360
      %1376 = vmatprep.subr.bf16.mxu0 0
      %1377 = vmatpush1.bf16.msra.mxu0 0
      %1378 = vmatprep.subr.bf16.mxu0 0
      %1379 = vmatpush1.bf16.msra.mxu0 0
      %1380 = vmatprep.subr.bf16.mxu0 0
      %1381 = vmatpush1.bf16.msra.mxu0 0
      %1382 = vmatprep.subr.bf16.mxu0 0
      %1383 = vmatpush1.bf16.msra.mxu0 0
      %1384 = vmatprep.subr.bf16.mxu0 0
      %1385 = vmatpush1.bf16.msra.mxu0 0
      %1386 = vmatprep.subr.bf16.mxu0 0
      %1387 = vmatpush1.bf16.msra.mxu0 0
      %1388 = vmatprep.subr.bf16.mxu0 0
      %1389 = vmatpush1.bf16.msra.mxu0 0
      %1390 = vmatprep.subr.bf16.mxu0 0
      %1391 = vmatpush1.bf16.msra.mxu0 0
      %1392 = vmatprep.subr.bf16.mxu0 0
      %1393 = vmatpush1.bf16.msra.mxu0 0
      %1394 = vmatprep.subr.bf16.mxu0 0
      %1395 = vmatpush1.bf16.msra.mxu0 0
      %1396 = vmatprep.subr.bf16.mxu0 0
      %1397 = vmatpush1.bf16.msra.mxu0 0
      %1398 = vmatprep.subr.bf16.mxu0 0
      %1399 = vmatpush1.bf16.msra.mxu0 0
      %1400 = vmatprep.mubr.bf16.mxu0 0
      %1401 = vmatmul.mubr.bf16.gmra.mrb[0].mxu0 %v1366
      %v1402 = vpop.f32.mrb[0].mxu0
      %v1403 = vadd.f32 0.0, %v1402
      %v1404 = vpop.f32.mrb[0].mxu0
      %v1405 = vpop.f32.mrb[0].mxu0
      %v1406 = vpop.f32.mrb[0].mxu0
      %1407 = vdwg.mxu0
      %v1408 = vadd.f32 %v1322, %v1403
      %v1409 = vsel %vm800, %v1408, 0.0
      %1410 = vadd.xlane.f32.xlu0 %v1409
      %v1411 = vpop.xlane.xlu0 %1410
      %v1412 = vrot.slane %v1411, 4
      %v1413 = vadd.f32 %v1411, %v1412
      %v1414 = vrot.slane %v1413, 2
      %v1415 = vadd.f32 %v1413, %v1414
      %v1416 = vrot.slane %v1415, 1
      %v1417 = vadd.f32 %v1415, %v1416
      %s1418 = vtos %v1417
      %s1419 = smul.f32 %s1418, 0.00390625
      %v1420 = vmul.f32 %v1408, %v1408
      %v1421 = vsel %vm800, %v1420, 0.0
      %1422 = vadd.xlane.f32.xlu0 %v1421
      %v1423 = vpop.xlane.xlu0 %1422
      %v1424 = vrot.slane %v1423, 4
      %v1425 = vadd.f32 %v1423, %v1424
      %v1426 = vrot.slane %v1425, 2
      %v1427 = vadd.f32 %v1425, %v1426
      %v1428 = vrot.slane %v1427, 1
      %v1429 = vadd.f32 %v1427, %v1428
      %s1430 = vtos %v1429
      %s1431 = smul.f32 %s1430, 0.00390625
      %s1432 = smul.f32 %s1419, %s1419
      %s1433 = ssub.f32 %s1431, %s1432
      %v1434 = vstv %s1419
      %v1435 = vsub.f32 %v1408, %v1434
      %s1436 = sadd.f32 %s1433, 1e-05
      %v1437 = vstv %s1436
      %v1438 = vrsqrt.pop %v1437
      %s1439 = vtos %v1438
      %v1440 = vstv %s1439
      %v1441 = vmul.f32 %v1435, %v1440
      %v1442 = vmul.f32 %v1441, %v837
      %v1443 = vadd.f32 %v1442, %v842
      %v1444 = vadd.f32 %v1443, %v522
      %vm1445 = vcmp.ge.f32.partialorder %v1444, 0.0
      %v1446 = vmul.f32 %v848, %v1444
      %v1447 = vsel %vm1445, %v1444, %v1446
      %v1448 = vpack.c.bf16 %v1447, %v1447
      %v1449 = vld [vmem:[%s7] sm:$0xf]
      %v1450 = vld [vmem:[%s7 + $0x4] sm:$0xf]
      %v1451 = vld [vmem:[%s7 + $0x8] sm:$0xf]
      %v1452 = vld [vmem:[%s7 + $0xc] sm:$0xf]
      %v1453 = vld [vmem:[%s7 + $0x10] sm:$0xf]
      %v1454 = vld [vmem:[%s7 + $0x14] sm:$0xf]
      %v1455 = vld [vmem:[%s7 + $0x18] sm:$0xf]
      %v1456 = vld [vmem:[%s7 + $0x1c] sm:$0xf]
      %v1465 = vunpack.c.l.b16 %v1449
      %v1466 = vunpack.c.l.b16 %v1450
      %v1467 = vunpack.c.l.b16 %v1451
      %v1468 = vunpack.c.l.b16 %v1452
      %v1469 = vunpack.c.l.b16 %v1453
      %v1470 = vunpack.c.l.b16 %v1454
      %v1471 = vunpack.c.l.b16 %v1455
      %v1472 = vunpack.c.l.b16 %v1456
      %v1473 = vpack.c.b16 %v1466, %v1465
      %v1474 = vpack.c.b16 %v1468, %v1467
      %v1475 = vpack.c.b16 %v1470, %v1469
      %v1476 = vpack.c.b16 %v1472, %v1471
      %v1482 = vsel %vm607, %v1448, 0
      %1484 = vmatprep.subr.bf16.mxu0 0
      %1485 = vmatpush1.bf16.msra.mxu0 %v1473
      %1486 = vmatprep.subr.bf16.mxu0 0
      %1487 = vmatpush1.bf16.msra.mxu0 %v1474
      %1488 = vmatprep.subr.bf16.mxu0 0
      %1489 = vmatpush1.bf16.msra.mxu0 %v1475
      %1490 = vmatprep.subr.bf16.mxu0 0
      %1491 = vmatpush1.bf16.msra.mxu0 %v1476
      %1492 = vmatprep.subr.bf16.mxu0 0
      %1493 = vmatpush1.bf16.msra.mxu0 0
      %1494 = vmatprep.subr.bf16.mxu0 0
      %1495 = vmatpush1.bf16.msra.mxu0 0
      %1496 = vmatprep.subr.bf16.mxu0 0
      %1497 = vmatpush1.bf16.msra.mxu0 0
      %1498 = vmatprep.subr.bf16.mxu0 0
      %1499 = vmatpush1.bf16.msra.mxu0 0
      %1500 = vmatprep.subr.bf16.mxu0 0
      %1501 = vmatpush1.bf16.msra.mxu0 0
      %1502 = vmatprep.subr.bf16.mxu0 0
      %1503 = vmatpush1.bf16.msra.mxu0 0
      %1504 = vmatprep.subr.bf16.mxu0 0
      %1505 = vmatpush1.bf16.msra.mxu0 0
      %1506 = vmatprep.subr.bf16.mxu0 0
      %1507 = vmatpush1.bf16.msra.mxu0 0
      %1508 = vmatprep.subr.bf16.mxu0 0
      %1509 = vmatpush1.bf16.msra.mxu0 0
      %1510 = vmatprep.subr.bf16.mxu0 0
      %1511 = vmatpush1.bf16.msra.mxu0 0
      %1512 = vmatprep.subr.bf16.mxu0 0
      %1513 = vmatpush1.bf16.msra.mxu0 0
      %1514 = vmatprep.subr.bf16.mxu0 0
      %1515 = vmatpush1.bf16.msra.mxu0 0
      %1516 = vmatprep.mubr.bf16.mxu0 0
      %1517 = vmatmul.mubr.bf16.gmra.mrb[0].mxu0 %v1482
      %v1518 = vpop.f32.mrb[0].mxu0
      %v1519 = vadd.f32 0.0, %v1518
      %v1520 = vpop.f32.mrb[0].mxu0
      %v1521 = vpop.f32.mrb[0].mxu0
      %v1522 = vpop.f32.mrb[0].mxu0
      %1523 = vdwg.mxu0
      %v1524 = vld [vmem:[%s6] sm:$0xf]
      %v1525 = vpack.c.bf16 %v1519, %v1519
      %v1526 = vld [vmem:[%s508] sm:$0xff]
      %vm1527 = vcmask 31744
      %v1529 = vsel %vm1527, %v1524, 0
      %vm1531 = vcmask 1041408
      %v1533 = vsel %vm1531, %v1525, 0
      %1535 = vmatprep.subr.bf16.mxu0 0
      %1536 = vmatpush1.bf16.msra.mxu0 %v1533
      %1537 = vmatprep.subr.bf16.mxu0 0
      %1538 = vmatpush1.bf16.msra.mxu0 0
      %1539 = vmatprep.subr.bf16.mxu0 0
      %1540 = vmatpush1.bf16.msra.mxu0 0
      %1541 = vmatprep.subr.bf16.mxu0 0
      %1542 = vmatpush1.bf16.msra.mxu0 0
      %1543 = vmatprep.subr.bf16.mxu0 0
      %1544 = vmatpush1.bf16.msra.mxu0 0
      %1545 = vmatprep.subr.bf16.mxu0 0
      %1546 = vmatpush1.bf16.msra.mxu0 0
      %1547 = vmatprep.subr.bf16.mxu0 0
      %1548 = vmatpush1.bf16.msra.mxu0 0
      %1549 = vmatprep.subr.bf16.mxu0 0
      %1550 = vmatpush1.bf16.msra.mxu0 0
      %1551 = vmatprep.subr.bf16.mxu0 0
      %1552 = vmatpush1.bf16.msra.mxu0 0
      %1553 = vmatprep.subr.bf16.mxu0 0
      %1554 = vmatpush1.bf16.msra.mxu0 0
      %1555 = vmatprep.subr.bf16.mxu0 0
      %1556 = vmatpush1.bf16.msra.mxu0 0
      %1557 = vmatprep.subr.bf16.mxu0 0
      %1558 = vmatpush1.bf16.msra.mxu0 0
      %1559 = vmatprep.subr.bf16.mxu0 0
      %1560 = vmatpush1.bf16.msra.mxu0 0
      %1561 = vmatprep.subr.bf16.mxu0 0
      %1562 = vmatpush1.bf16.msra.mxu0 0
      %1563 = vmatprep.subr.bf16.mxu0 0
      %1564 = vmatpush1.bf16.msra.mxu0 0
      %1565 = vmatprep.subr.bf16.mxu0 0
      %1566 = vmatpush1.bf16.msra.mxu0 0
      %1567 = vmatprep.mubr.bf16.mxu0 0
      %1568 = vmatmul.mubr.bf16.gmra.mrb[0].mxu0 %v1529
      %v1569 = vpop.f32.mrb[0].mxu0
      %v1570 = vadd.f32 %v1526, %v1569
      %v1571 = vpop.f32.mrb[0].mxu0
      %v1572 = vpop.f32.mrb[0].mxu0
      %v1573 = vpop.f32.mrb[0].mxu0
      %1574 = vdwg.mxu0
      %v1575 = vld [vmem:[%s9] sm:$0x7]
      %v1576 = vld [vmem:[#allocation3] sm:$0x1]
      %v1577 = vsel %vm526, 0, %v1576
      %1578 = vst [vmem:[#allocation3] sm:$0x1] %v1577
      %vm1579 = vsmask.f32 7938
      %vm1580 = vmand %vm524, %vm1579
      %v1581 = vld [vmem:[#allocation3 + $0x4] sm:$0x1]
      %v1582 = vsel %vm1580, 0, %v1581
      %1583 = vst [vmem:[#allocation3 + $0x4] sm:$0x1] %v1582
      %v1584 = vpack.c.bf16 %v1570, %v1570
      %v1586 = vunpack.c.l.b16 %v1584
      %v1587 = vpack.c.b16 %v1586, %v1586
      %v1589 = vshrl.u32 %v1587, 16
      %v1591 = vrot.slane %v1589, 7
      %v1592 = vshll.u32 %v1587, 16
      %v1594 = vor.u32 %v1591, %v1592
      %v1595 = vrot.slane %v1591, 4
      %vm1598 = vcmask 519168
      %vm1599 = vmand %vm1598, %vm1579
      %v1600 = vld [vmem:[#allocation3] sm:$0xf]
      %v1601 = vsel %vm1599, %v1594, %v1600
      %1602 = vst [vmem:[#allocation3] sm:$0xf] %v1601
      %v1603 = vld [vmem:[#allocation3 + $0x4] sm:$0x1]
      %v1604 = vsel %vm526, %v1595, %v1603
      %1605 = vst [vmem:[#allocation3 + $0x4] sm:$0x1] %v1604
      %v1606 = vld [vmem:[#allocation3] sm:$0xf]
      %v1607 = vld [vmem:[%s8] sm:$0xf]
      %v1608 = vld [vmem:[%s8 + $0x4] sm:$0xf]
      %v1609 = vld [vmem:[%s8 + $0x8] sm:$0xf]
      %v1610 = vld [vmem:[%s8 + $0xc] sm:$0xf]
      %v1611 = vld [vmem:[%s8 + $0x10] sm:$0xf]
      %v1612 = vld [vmem:[%s8 + $0x14] sm:$0xf]
      %v1613 = vld [vmem:[%s8 + $0x18] sm:$0xf]
      %v1614 = vld [vmem:[%s8 + $0x1c] sm:$0xf]
      %v1615 = vld [vmem:[#allocation3 + $0x4] sm:$0x1]
      %s1616 = scalar_lea.vmem %s8, 32
      %v1617 = vld [vmem:[%s1616] sm:$0xf]
      %v1618 = vld [vmem:[%s1616 + $0x4] sm:$0xf]
      %v1619 = vld [vmem:[%s1616 + $0x8] sm:$0xf]
      %v1620 = vld [vmem:[%s1616 + $0xc] sm:$0xf]
      %v1621 = vld [vmem:[%s1616 + $0x10] sm:$0xf]
      %v1622 = vld [vmem:[%s1616 + $0x14] sm:$0xf]
      %v1623 = vld [vmem:[%s1616 + $0x18] sm:$0xf]
      %v1624 = vld [vmem:[%s1616 + $0x1c] sm:$0xf]
      %v1627 = vunpack.c.l.b16 %v1606
      %v1628 = vunpack.c.l.b16 %v1615
      %v1629 = vpack.c.b16 %v1628, %v1627
      %v1631 = vshrl.u32 %v1629, 16
      %v1633 = vshll.u32 %v1629, 16
      %v1635 = vrot.slane %v1633, 1
      %v1636 = vor.u32 %v1631, %v1635
      %v1645 = vunpack.c.l.b16 %v1617
      %v1646 = vunpack.c.l.b16 %v1618
      %v1647 = vunpack.c.l.b16 %v1619
      %v1648 = vunpack.c.l.b16 %v1620
      %v1649 = vunpack.c.l.b16 %v1621
      %v1650 = vunpack.c.l.b16 %v1622
      %v1651 = vunpack.c.l.b16 %v1623
      %v1652 = vunpack.c.l.b16 %v1624
      %v1653 = vpack.c.b16 %v1646, %v1645
      %v1654 = vpack.c.b16 %v1648, %v1647
      %v1655 = vpack.c.b16 %v1650, %v1649
      %v1656 = vpack.c.b16 %v1652, %v1651
      %v1662 = vsel %vm607, %v1636, 0
      %1664 = vmatprep.subr.bf16.mxu0 0
      %1665 = vmatpush1.bf16.msra.mxu0 %v1653
      %1666 = vmatprep.subr.bf16.mxu0 0
      %1667 = vmatpush1.bf16.msra.mxu0 %v1654
      %1668 = vmatprep.subr.bf16.mxu0 0
      %1669 = vmatpush1.bf16.msra.mxu0 %v1655
      %1670 = vmatprep.subr.bf16.mxu0 0
      %1671 = vmatpush1.bf16.msra.mxu0 %v1656
      %1672 = vmatprep.subr.bf16.mxu0 0
      %1673 = vmatpush1.bf16.msra.mxu0 0
      %1674 = vmatprep.subr.bf16.mxu0 0
      %1675 = vmatpush1.bf16.msra.mxu0 0
      %1676 = vmatprep.subr.bf16.mxu0 0
      %1677 = vmatpush1.bf16.msra.mxu0 0
      %1678 = vmatprep.subr.bf16.mxu0 0
      %1679 = vmatpush1.bf16.msra.mxu0 0
      %1680 = vmatprep.subr.bf16.mxu0 0
      %1681 = vmatpush1.bf16.msra.mxu0 0
      %1682 = vmatprep.subr.bf16.mxu0 0
      %1683 = vmatpush1.bf16.msra.mxu0 0
      %1684 = vmatprep.subr.bf16.mxu0 0
      %1685 = vmatpush1.bf16.msra.mxu0 0
      %1686 = vmatprep.subr.bf16.mxu0 0
      %1687 = vmatpush1.bf16.msra.mxu0 0
      %1688 = vmatprep.subr.bf16.mxu0 0
      %1689 = vmatpush1.bf16.msra.mxu0 0
      %1690 = vmatprep.subr.bf16.mxu0 0
      %1691 = vmatpush1.bf16.msra.mxu0 0
      %1692 = vmatprep.subr.bf16.mxu0 0
      %1693 = vmatpush1.bf16.msra.mxu0 0
      %1694 = vmatprep.subr.bf16.mxu0 0
      %1695 = vmatpush1.bf16.msra.mxu0 0
      %1696 = vmatprep.mubr.bf16.mxu0 0
      %1697 = vmatmul.mubr.bf16.gmra.mrb[0].mxu0 %v1662
      %v1698 = vpop.f32.mrb[0].mxu0
      %v1699 = vadd.f32 0.0, %v1698
      %v1700 = vpop.f32.mrb[0].mxu0
      %v1701 = vpop.f32.mrb[0].mxu0
      %v1702 = vpop.f32.mrb[0].mxu0
      %1703 = vdwg.mxu0
      %v1712 = vunpack.c.l.b16 %v1607
      %v1713 = vunpack.c.l.b16 %v1608
      %v1714 = vunpack.c.l.b16 %v1609
      %v1715 = vunpack.c.l.b16 %v1610
      %v1716 = vunpack.c.l.b16 %v1611
      %v1717 = vunpack.c.l.b16 %v1612
      %v1718 = vunpack.c.l.b16 %v1613
      %v1719 = vunpack.c.l.b16 %v1614
      %v1720 = vpack.c.b16 %v1713, %v1712
      %v1721 = vpack.c.b16 %v1715, %v1714
      %v1722 = vpack.c.b16 %v1717, %v1716
      %v1723 = vpack.c.b16 %v1719, %v1718
      %v1729 = vsel %vm607, %v1606, 0
      %1731 = vmatprep.subr.bf16.mxu0 0
      %1732 = vmatpush1.bf16.msra.mxu0 %v1720
      %1733 = vmatprep.subr.bf16.mxu0 0
      %1734 = vmatpush1.bf16.msra.mxu0 %v1721
      %1735 = vmatprep.subr.bf16.mxu0 0
      %1736 = vmatpush1.bf16.msra.mxu0 %v1722
      %1737 = vmatprep.subr.bf16.mxu0 0
      %1738 = vmatpush1.bf16.msra.mxu0 %v1723
      %1739 = vmatprep.subr.bf16.mxu0 0
      %1740 = vmatpush1.bf16.msra.mxu0 0
      %1741 = vmatprep.subr.bf16.mxu0 0
      %1742 = vmatpush1.bf16.msra.mxu0 0
      %1743 = vmatprep.subr.bf16.mxu0 0
      %1744 = vmatpush1.bf16.msra.mxu0 0
      %1745 = vmatprep.subr.bf16.mxu0 0
      %1746 = vmatpush1.bf16.msra.mxu0 0
      %1747 = vmatprep.subr.bf16.mxu0 0
      %1748 = vmatpush1.bf16.msra.mxu0 0
      %1749 = vmatprep.subr.bf16.mxu0 0
      %1750 = vmatpush1.bf16.msra.mxu0 0
      %1751 = vmatprep.subr.bf16.mxu0 0
      %1752 = vmatpush1.bf16.msra.mxu0 0
      %1753 = vmatprep.subr.bf16.mxu0 0
      %1754 = vmatpush1.bf16.msra.mxu0 0
      %1755 = vmatprep.subr.bf16.mxu0 0
      %1756 = vmatpush1.bf16.msra.mxu0 0
      %1757 = vmatprep.subr.bf16.mxu0 0
      %1758 = vmatpush1.bf16.msra.mxu0 0
      %1759 = vmatprep.subr.bf16.mxu0 0
      %1760 = vmatpush1.bf16.msra.mxu0 0
      %1761 = vmatprep.subr.bf16.mxu0 0
      %1762 = vmatpush1.bf16.msra.mxu0 0
      %1763 = vmatprep.mubr.bf16.mxu0 0
      %1764 = vmatmul.mubr.bf16.gmra.mrb[0].mxu0 %v1729
      %v1765 = vpop.f32.mrb[0].mxu0
      %v1766 = vadd.f32 %v1699, %v1765
      %v1767 = vpop.f32.mrb[0].mxu0
      %v1768 = vpop.f32.mrb[0].mxu0
      %v1769 = vpop.f32.mrb[0].mxu0
      %1770 = vdwg.mxu0
      %v1771 = vld [vmem:[#allocation3] sm:$0xe]
      %s1772 = scalar_lea.vmem %s8, 64
      %v1773 = vld [vmem:[%s1772] sm:$0xf]
      %v1774 = vld [vmem:[%s1772 + $0x4] sm:$0xf]
      %v1775 = vld [vmem:[%s1772 + $0x8] sm:$0xf]
      %v1776 = vld [vmem:[%s1772 + $0xc] sm:$0xf]
      %v1777 = vld [vmem:[%s1772 + $0x10] sm:$0xf]
      %v1778 = vld [vmem:[%s1772 + $0x14] sm:$0xf]
      %v1779 = vld [vmem:[%s1772 + $0x18] sm:$0xf]
      %v1780 = vld [vmem:[%s1772 + $0x1c] sm:$0xf]
      %v1782 = vunpack.c.l.b16 %v1771
      %v1783 = vpack.c.b16 %v1628, %v1782
      %v1784 = vrot.slane %v1783, 1
      %v1793 = vunpack.c.l.b16 %v1773
      %v1794 = vunpack.c.l.b16 %v1774
      %v1795 = vunpack.c.l.b16 %v1775
      %v1796 = vunpack.c.l.b16 %v1776
      %v1797 = vunpack.c.l.b16 %v1777
      %v1798 = vunpack.c.l.b16 %v1778
      %v1799 = vunpack.c.l.b16 %v1779
      %v1800 = vunpack.c.l.b16 %v1780
      %v1801 = vpack.c.b16 %v1794, %v1793
      %v1802 = vpack.c.b16 %v1796, %v1795
      %v1803 = vpack.c.b16 %v1798, %v1797
      %v1804 = vpack.c.b16 %v1800, %v1799
      %v1810 = vsel %vm607, %v1784, 0
      %1812 = vmatprep.subr.bf16.mxu0 0
      %1813 = vmatpush1.bf16.msra.mxu0 %v1801
      %1814 = vmatprep.subr.bf16.mxu0 0
      %1815 = vmatpush1.bf16.msra.mxu0 %v1802
      %1816 = vmatprep.subr.bf16.mxu0 0
      %1817 = vmatpush1.bf16.msra.mxu0 %v1803
      %1818 = vmatprep.subr.bf16.mxu0 0
      %1819 = vmatpush1.bf16.msra.mxu0 %v1804
      %1820 = vmatprep.subr.bf16.mxu0 0
      %1821 = vmatpush1.bf16.msra.mxu0 0
      %1822 = vmatprep.subr.bf16.mxu0 0
      %1823 = vmatpush1.bf16.msra.mxu0 0
      %1824 = vmatprep.subr.bf16.mxu0 0
      %1825 = vmatpush1.bf16.msra.mxu0 0
      %1826 = vmatprep.subr.bf16.mxu0 0
      %1827 = vmatpush1.bf16.msra.mxu0 0
      %1828 = vmatprep.subr.bf16.mxu0 0
      %1829 = vmatpush1.bf16.msra.mxu0 0
      %1830 = vmatprep.subr.bf16.mxu0 0
      %1831 = vmatpush1.bf16.msra.mxu0 0
      %1832 = vmatprep.subr.bf16.mxu0 0
      %1833 = vmatpush1.bf16.msra.mxu0 0
      %1834 = vmatprep.subr.bf16.mxu0 0
      %1835 = vmatpush1.bf16.msra.mxu0 0
      %1836 = vmatprep.subr.bf16.mxu0 0
      %1837 = vmatpush1.bf16.msra.mxu0 0
      %1838 = vmatprep.subr.bf16.mxu0 0
      %1839 = vmatpush1.bf16.msra.mxu0 0
      %1840 = vmatprep.subr.bf16.mxu0 0
      %1841 = vmatpush1.bf16.msra.mxu0 0
      %1842 = vmatprep.subr.bf16.mxu0 0
      %1843 = vmatpush1.bf16.msra.mxu0 0
      %1844 = vmatprep.mubr.bf16.mxu0 0
      %1845 = vmatmul.mubr.bf16.gmra.mrb[0].mxu0 %v1810
      %v1846 = vpop.f32.mrb[0].mxu0
      %v1847 = vadd.f32 0.0, %v1846
      %v1848 = vpop.f32.mrb[0].mxu0
      %v1849 = vpop.f32.mrb[0].mxu0
      %v1850 = vpop.f32.mrb[0].mxu0
      %1851 = vdwg.mxu0
      %v1852 = vadd.f32 %v1766, %v1847
      %v1853 = vsel %vm607, %v1852, 0.0
      %1854 = vadd.xlane.f32.xlu0 %v1853
      %v1855 = vpop.xlane.xlu0 %1854
      %v1856 = vrot.slane %v1855, 4
      %v1857 = vadd.f32 %v1855, %v1856
      %v1858 = vrot.slane %v1857, 2
      %v1859 = vadd.f32 %v1857, %v1858
      %v1860 = vrot.slane %v1859, 1
      %v1861 = vadd.f32 %v1859, %v1860
      %s1862 = vtos %v1861
      %s1863 = smul.f32 %s1862, 0.001953125
      %v1864 = vmul.f32 %v1852, %v1852
      %v1865 = vsel %vm607, %v1864, 0.0
      %1866 = vadd.xlane.f32.xlu0 %v1865
      %v1867 = vpop.xlane.xlu0 %1866
      %v1868 = vrot.slane %v1867, 4
      %v1869 = vadd.f32 %v1867, %v1868
      %v1870 = vrot.slane %v1869, 2
      %v1871 = vadd.f32 %v1869, %v1870
      %v1872 = vrot.slane %v1871, 1
      %v1873 = vadd.f32 %v1871, %v1872
      %s1874 = vtos %v1873
      %s1875 = smul.f32 %s1874, 0.001953125
      %s1876 = smul.f32 %s1863, %s1863
      %s1877 = ssub.f32 %s1875, %s1876
      %v1878 = vstv %s1863
      %v1879 = vsub.f32 %v1852, %v1878
      %s1880 = sadd.f32 %s1877, 1e-05
      %v1881 = vstv %s1880
      %v1882 = vrsqrt.pop %v1881
      %s1883 = vtos %v1882
      %v1884 = vstv %s1883
      %v1885 = vmul.f32 %v1879, %v1884
      %v1886 = vlaneseq
      %v1887 = vshrl.u32 %v1886, 7
      %v1888 = vsub.s32 0, %v1887
      %v1889 = vrot.slane %v1575, %v1888
      %v1890 = vmul.f32 %v1885, %v1889
      %v1891 = vlaneseq
      %v1892 = vshrl.u32 %v1891, 7
      %v1893 = vsub.s32 1, %v1892
      %v1894 = vrot.slane %v1575, %v1893
      %v1895 = vadd.f32 %v1890, %v1894
      %vm1896 = vcmp.ge.f32.partialorder %v1895, 0.0
      %v1897 = vlaneseq
      %v1898 = vshrl.u32 %v1897, 7
      %v1899 = vsub.s32 2, %v1898
      %v1900 = vrot.slane %v1575, %v1899
      %v1901 = vmul.f32 %v1900, %v1895
      %v1902 = vsel %vm1896, %v1895, %v1901
      %v1903 = vpack.c.bf16 %v1902, %v1902
      %v1905 = vunpack.c.l.b16 %v1903
      %v1906 = vpack.c.b16 %v1905, %v1905
      %v1908 = vshrl.u32 %v1906, 16
      %v1910 = vrot.slane %v1908, 7
      %v1911 = vshll.u32 %v1906, 16
      %v1913 = vor.u32 %v1910, %v1911
      %v1914 = vrot.slane %v1910, 4
      %v1917 = vsel %vm1599, %v1913, %v1606
      %1918 = vst [vmem:[#allocation3] sm:$0xf] %v1917
      %v1919 = vld [vmem:[#allocation3 + $0x4] sm:$0x1]
      %v1920 = vsel %vm526, %v1914, %v1919
      %1921 = vst [vmem:[#allocation3 + $0x4] sm:$0x1] %v1920
      %v1922 = vld [vmem:[#allocation3] sm:$0xf]
      %s1923 = scalar_lea.vmem %s8, 96
      %v1924 = vld [vmem:[%s1923] sm:$0xf]
      %v1925 = vld [vmem:[%s1923 + $0x4] sm:$0xf]
      %v1926 = vld [vmem:[%s1923 + $0x8] sm:$0xf]
      %v1927 = vld [vmem:[%s1923 + $0xc] sm:$0xf]
      %v1928 = vld [vmem:[%s1923 + $0x10] sm:$0xf]
      %v1929 = vld [vmem:[%s1923 + $0x14] sm:$0xf]
      %v1930 = vld [vmem:[%s1923 + $0x18] sm:$0xf]
      %v1931 = vld [vmem:[%s1923 + $0x1c] sm:$0xf]
      %v1932 = vld [vmem:[#allocation3 + $0x4] sm:$0x1]
      %s1933 = scalar_lea.vmem %s8, 128
      %v1934 = vld [vmem:[%s1933] sm:$0xf]
      %v1935 = vld [vmem:[%s1933 + $0x4] sm:$0xf]
      %v1936 = vld [vmem:[%s1933 + $0x8] sm:$0xf]
      %v1937 = vld [vmem:[%s1933 + $0xc] sm:$0xf]
      %v1938 = vld [vmem:[%s1933 + $0x10] sm:$0xf]
      %v1939 = vld [vmem:[%s1933 + $0x14] sm:$0xf]
      %v1940 = vld [vmem:[%s1933 + $0x18] sm:$0xf]
      %v1941 = vld [vmem:[%s1933 + $0x1c] sm:$0xf]
      %v1944 = vunpack.c.l.b16 %v1922
      %v1945 = vunpack.c.l.b16 %v1932
      %v1946 = vpack.c.b16 %v1945, %v1944
      %v1948 = vshrl.u32 %v1946, 16
      %v1950 = vshll.u32 %v1946, 16
      %v1952 = vrot.slane %v1950, 1
      %v1953 = vor.u32 %v1948, %v1952
      %v1962 = vunpack.c.l.b16 %v1934
      %v1963 = vunpack.c.l.b16 %v1935
      %v1964 = vunpack.c.l.b16 %v1936
      %v1965 = vunpack.c.l.b16 %v1937
      %v1966 = vunpack.c.l.b16 %v1938
      %v1967 = vunpack.c.l.b16 %v1939
      %v1968 = vunpack.c.l.b16 %v1940
      %v1969 = vunpack.c.l.b16 %v1941
      %v1970 = vpack.c.b16 %v1963, %v1962
      %v1971 = vpack.c.b16 %v1965, %v1964
      %v1972 = vpack.c.b16 %v1967, %v1966
      %v1973 = vpack.c.b16 %v1969, %v1968
      %v1979 = vsel %vm607, %v1953, 0
      %1981 = vmatprep.subr.bf16.mxu0 0
      %1982 = vmatpush1.bf16.msra.mxu0 %v1970
      %1983 = vmatprep.subr.bf16.mxu0 0
      %1984 = vmatpush1.bf16.msra.mxu0 %v1971
      %1985 = vmatprep.subr.bf16.mxu0 0
      %1986 = vmatpush1.bf16.msra.mxu0 %v1972
      %1987 = vmatprep.subr.bf16.mxu0 0
      %1988 = vmatpush1.bf16.msra.mxu0 %v1973
      %1989 = vmatprep.subr.bf16.mxu0 0
      %1990 = vmatpush1.bf16.msra.mxu0 0
      %1991 = vmatprep.subr.bf16.mxu0 0
      %1992 = vmatpush1.bf16.msra.mxu0 0
      %1993 = vmatprep.subr.bf16.mxu0 0
      %1994 = vmatpush1.bf16.msra.mxu0 0
      %1995 = vmatprep.subr.bf16.mxu0 0
      %1996 = vmatpush1.bf16.msra.mxu0 0
      %1997 = vmatprep.subr.bf16.mxu0 0
      %1998 = vmatpush1.bf16.msra.mxu0 0
      %1999 = vmatprep.subr.bf16.mxu0 0
      %2000 = vmatpush1.bf16.msra.mxu0 0
      %2001 = vmatprep.subr.bf16.mxu0 0
      %2002 = vmatpush1.bf16.msra.mxu0 0
      %2003 = vmatprep.subr.bf16.mxu0 0
      %2004 = vmatpush1.bf16.msra.mxu0 0
      %2005 = vmatprep.subr.bf16.mxu0 0
      %2006 = vmatpush1.bf16.msra.mxu0 0
      %2007 = vmatprep.subr.bf16.mxu0 0
      %2008 = vmatpush1.bf16.msra.mxu0 0
      %2009 = vmatprep.subr.bf16.mxu0 0
      %2010 = vmatpush1.bf16.msra.mxu0 0
      %2011 = vmatprep.subr.bf16.mxu0 0
      %2012 = vmatpush1.bf16.msra.mxu0 0
      %2013 = vmatprep.mubr.bf16.mxu0 0
      %2014 = vmatmul.mubr.bf16.gmra.mrb[0].mxu0 %v1979
      %v2015 = vpop.f32.mrb[0].mxu0
      %v2016 = vadd.f32 0.0, %v2015
      %v2017 = vpop.f32.mrb[0].mxu0
      %v2018 = vpop.f32.mrb[0].mxu0
      %v2019 = vpop.f32.mrb[0].mxu0
      %2020 = vdwg.mxu0
      %v2029 = vunpack.c.l.b16 %v1924
      %v2030 = vunpack.c.l.b16 %v1925
      %v2031 = vunpack.c.l.b16 %v1926
      %v2032 = vunpack.c.l.b16 %v1927
      %v2033 = vunpack.c.l.b16 %v1928
      %v2034 = vunpack.c.l.b16 %v1929
      %v2035 = vunpack.c.l.b16 %v1930
      %v2036 = vunpack.c.l.b16 %v1931
      %v2037 = vpack.c.b16 %v2030, %v2029
      %v2038 = vpack.c.b16 %v2032, %v2031
      %v2039 = vpack.c.b16 %v2034, %v2033
      %v2040 = vpack.c.b16 %v2036, %v2035
      %v2046 = vsel %vm607, %v1922, 0
      %2048 = vmatprep.subr.bf16.mxu0 0
      %2049 = vmatpush1.bf16.msra.mxu0 %v2037
      %2050 = vmatprep.subr.bf16.mxu0 0
      %2051 = vmatpush1.bf16.msra.mxu0 %v2038
      %2052 = vmatprep.subr.bf16.mxu0 0
      %2053 = vmatpush1.bf16.msra.mxu0 %v2039
      %2054 = vmatprep.subr.bf16.mxu0 0
      %2055 = vmatpush1.bf16.msra.mxu0 %v2040
      %2056 = vmatprep.subr.bf16.mxu0 0
      %2057 = vmatpush1.bf16.msra.mxu0 0
      %2058 = vmatprep.subr.bf16.mxu0 0
      %2059 = vmatpush1.bf16.msra.mxu0 0
      %2060 = vmatprep.subr.bf16.mxu0 0
      %2061 = vmatpush1.bf16.msra.mxu0 0
      %2062 = vmatprep.subr.bf16.mxu0 0
      %2063 = vmatpush1.bf16.msra.mxu0 0
      %2064 = vmatprep.subr.bf16.mxu0 0
      %2065 = vmatpush1.bf16.msra.mxu0 0
      %2066 = vmatprep.subr.bf16.mxu0 0
      %2067 = vmatpush1.bf16.msra.mxu0 0
      %2068 = vmatprep.subr.bf16.mxu0 0
      %2069 = vmatpush1.bf16.msra.mxu0 0
      %2070 = vmatprep.subr.bf16.mxu0 0
      %2071 = vmatpush1.bf16.msra.mxu0 0
      %2072 = vmatprep.subr.bf16.mxu0 0
      %2073 = vmatpush1.bf16.msra.mxu0 0
      %2074 = vmatprep.subr.bf16.mxu0 0
      %2075 = vmatpush1.bf16.msra.mxu0 0
      %2076 = vmatprep.subr.bf16.mxu0 0
      %2077 = vmatpush1.bf16.msra.mxu0 0
      %2078 = vmatprep.subr.bf16.mxu0 0
      %2079 = vmatpush1.bf16.msra.mxu0 0
      %2080 = vmatprep.mubr.bf16.mxu0 0
      %2081 = vmatmul.mubr.bf16.gmra.mrb[0].mxu0 %v2046
      %v2082 = vpop.f32.mrb[0].mxu0
      %v2083 = vadd.f32 %v2016, %v2082
      %v2084 = vpop.f32.mrb[0].mxu0
      %v2085 = vpop.f32.mrb[0].mxu0
      %v2086 = vpop.f32.mrb[0].mxu0
      %2087 = vdwg.mxu0
      %v2088 = vld [vmem:[#allocation3] sm:$0xe]
      %s2089 = scalar_lea.vmem %s8, 160
      %v2090 = vld [vmem:[%s2089] sm:$0xf]
      %v2091 = vld [vmem:[%s2089 + $0x4] sm:$0xf]
      %v2092 = vld [vmem:[%s2089 + $0x8] sm:$0xf]
      %v2093 = vld [vmem:[%s2089 + $0xc] sm:$0xf]
      %v2094 = vld [vmem:[%s2089 + $0x10] sm:$0xf]
      %v2095 = vld [vmem:[%s2089 + $0x14] sm:$0xf]
      %v2096 = vld [vmem:[%s2089 + $0x18] sm:$0xf]
      %v2097 = vld [vmem:[%s2089 + $0x1c] sm:$0xf]
      %v2099 = vunpack.c.l.b16 %v2088
      %v2100 = vpack.c.b16 %v1945, %v2099
      %v2101 = vrot.slane %v2100, 1
      %v2110 = vunpack.c.l.b16 %v2090
      %v2111 = vunpack.c.l.b16 %v2091
      %v2112 = vunpack.c.l.b16 %v2092
      %v2113 = vunpack.c.l.b16 %v2093
      %v2114 = vunpack.c.l.b16 %v2094
      %v2115 = vunpack.c.l.b16 %v2095
      %v2116 = vunpack.c.l.b16 %v2096
      %v2117 = vunpack.c.l.b16 %v2097
      %v2118 = vpack.c.b16 %v2111, %v2110
      %v2119 = vpack.c.b16 %v2113, %v2112
      %v2120 = vpack.c.b16 %v2115, %v2114
      %v2121 = vpack.c.b16 %v2117, %v2116
      %v2127 = vsel %vm607, %v2101, 0
      %2129 = vmatprep.subr.bf16.mxu0 0
      %2130 = vmatpush1.bf16.msra.mxu0 %v2118
      %2131 = vmatprep.subr.bf16.mxu0 0
      %2132 = vmatpush1.bf16.msra.mxu0 %v2119
      %2133 = vmatprep.subr.bf16.mxu0 0
      %2134 = vmatpush1.bf16.msra.mxu0 %v2120
      %2135 = vmatprep.subr.bf16.mxu0 0
      %2136 = vmatpush1.bf16.msra.mxu0 %v2121
      %2137 = vmatprep.subr.bf16.mxu0 0
      %2138 = vmatpush1.bf16.msra.mxu0 0
      %2139 = vmatprep.subr.bf16.mxu0 0
      %2140 = vmatpush1.bf16.msra.mxu0 0
      %2141 = vmatprep.subr.bf16.mxu0 0
      %2142 = vmatpush1.bf16.msra.mxu0 0
      %2143 = vmatprep.subr.bf16.mxu0 0
      %2144 = vmatpush1.bf16.msra.mxu0 0
      %2145 = vmatprep.subr.bf16.mxu0 0
      %2146 = vmatpush1.bf16.msra.mxu0 0
      %2147 = vmatprep.subr.bf16.mxu0 0
      %2148 = vmatpush1.bf16.msra.mxu0 0
      %2149 = vmatprep.subr.bf16.mxu0 0
      %2150 = vmatpush1.bf16.msra.mxu0 0
      %2151 = vmatprep.subr.bf16.mxu0 0
      %2152 = vmatpush1.bf16.msra.mxu0 0
      %2153 = vmatprep.subr.bf16.mxu0 0
      %2154 = vmatpush1.bf16.msra.mxu0 0
      %2155 = vmatprep.subr.bf16.mxu0 0
      %2156 = vmatpush1.bf16.msra.mxu0 0
      %2157 = vmatprep.subr.bf16.mxu0 0
      %2158 = vmatpush1.bf16.msra.mxu0 0
      %2159 = vmatprep.subr.bf16.mxu0 0
      %2160 = vmatpush1.bf16.msra.mxu0 0
      %2161 = vmatprep.mubr.bf16.mxu0 0
      %2162 = vmatmul.mubr.bf16.gmra.mrb[0].mxu0 %v2127
      %v2163 = vpop.f32.mrb[0].mxu0
      %v2164 = vadd.f32 0.0, %v2163
      %v2165 = vpop.f32.mrb[0].mxu0
      %v2166 = vpop.f32.mrb[0].mxu0
      %v2167 = vpop.f32.mrb[0].mxu0
      %2168 = vdwg.mxu0
      %v2169 = vadd.f32 %v2083, %v2164
      %v2170 = vsel %vm607, %v2169, 0.0
      %2171 = vadd.xlane.f32.xlu0 %v2170
      %v2172 = vpop.xlane.xlu0 %2171
      %v2173 = vrot.slane %v2172, 4
      %v2174 = vadd.f32 %v2172, %v2173
      %v2175 = vrot.slane %v2174, 2
      %v2176 = vadd.f32 %v2174, %v2175
      %v2177 = vrot.slane %v2176, 1
      %v2178 = vadd.f32 %v2176, %v2177
      %s2179 = vtos %v2178
      %s2180 = smul.f32 %s2179, 0.001953125
      %v2181 = vmul.f32 %v2169, %v2169
      %v2182 = vsel %vm607, %v2181, 0.0
      %2183 = vadd.xlane.f32.xlu0 %v2182
      %v2184 = vpop.xlane.xlu0 %2183
      %v2185 = vrot.slane %v2184, 4
      %v2186 = vadd.f32 %v2184, %v2185
      %v2187 = vrot.slane %v2186, 2
      %v2188 = vadd.f32 %v2186, %v2187
      %v2189 = vrot.slane %v2188, 1
      %v2190 = vadd.f32 %v2188, %v2189
      %s2191 = vtos %v2190
      %s2192 = smul.f32 %s2191, 0.001953125
      %s2193 = smul.f32 %s2180, %s2180
      %s2194 = ssub.f32 %s2192, %s2193
      %v2195 = vstv %s2180
      %v2196 = vsub.f32 %v2169, %v2195
      %s2197 = sadd.f32 %s2194, 1e-05
      %v2198 = vstv %s2197
      %v2199 = vrsqrt.pop %v2198
      %s2200 = vtos %v2199
      %v2201 = vstv %s2200
      %v2202 = vmul.f32 %v2196, %v2201
      %v2203 = vmul.f32 %v2202, %v1889
      %v2204 = vadd.f32 %v2203, %v1894
      %vm2205 = vcmp.ge.f32.partialorder %v2204, 0.0
      %v2206 = vmul.f32 %v1900, %v2204
      %v2207 = vsel %vm2205, %v2204, %v2206
      %v2208 = vpack.c.bf16 %v2207, %v2207
      %v2210 = vunpack.c.l.b16 %v2208
      %v2211 = vpack.c.b16 %v2210, %v2210
      %v2213 = vshrl.u32 %v2211, 16
      %v2215 = vrot.slane %v2213, 7
      %v2216 = vshll.u32 %v2211, 16
      %v2218 = vor.u32 %v2215, %v2216
      %v2219 = vrot.slane %v2215, 4
      %v2222 = vsel %vm1599, %v2218, %v1922
      %2223 = vst [vmem:[#allocation3] sm:$0xf] %v2222
      %v2224 = vld [vmem:[#allocation3 + $0x4] sm:$0x1]
      %v2225 = vsel %vm526, %v2219, %v2224
      %2226 = vst [vmem:[#allocation3 + $0x4] sm:$0x1] %v2225
      %v2227 = vld [vmem:[#allocation3] sm:$0xf]
      %s2228 = scalar_lea.vmem %s8, 192
      %v2229 = vld [vmem:[%s2228] sm:$0xf]
      %v2230 = vld [vmem:[%s2228 + $0x4] sm:$0xf]
      %v2231 = vld [vmem:[%s2228 + $0x8] sm:$0xf]
      %v2232 = vld [vmem:[%s2228 + $0xc] sm:$0xf]
      %v2233 = vld [vmem:[%s2228 + $0x10] sm:$0xf]
      %v2234 = vld [vmem:[%s2228 + $0x14] sm:$0xf]
      %v2235 = vld [vmem:[%s2228 + $0x18] sm:$0xf]
      %v2236 = vld [vmem:[%s2228 + $0x1c] sm:$0xf]
      %v2237 = vld [vmem:[#allocation3 + $0x4] sm:$0x1]
      %s2238 = scalar_lea.vmem %s8, 224
      %v2239 = vld [vmem:[%s2238] sm:$0xf]
      %v2240 = vld [vmem:[%s2238 + $0x4] sm:$0xf]
      %v2241 = vld [vmem:[%s2238 + $0x8] sm:$0xf]
      %v2242 = vld [vmem:[%s2238 + $0xc] sm:$0xf]
      %v2243 = vld [vmem:[%s2238 + $0x10] sm:$0xf]
      %v2244 = vld [vmem:[%s2238 + $0x14] sm:$0xf]
      %v2245 = vld [vmem:[%s2238 + $0x18] sm:$0xf]
      %v2246 = vld [vmem:[%s2238 + $0x1c] sm:$0xf]
      %v2249 = vunpack.c.l.b16 %v2227
      %v2250 = vunpack.c.l.b16 %v2237
      %v2251 = vpack.c.b16 %v2250, %v2249
      %v2253 = vshrl.u32 %v2251, 16
      %v2255 = vshll.u32 %v2251, 16
      %v2257 = vrot.slane %v2255, 1
      %v2258 = vor.u32 %v2253, %v2257
      %v2267 = vunpack.c.l.b16 %v2239
      %v2268 = vunpack.c.l.b16 %v2240
      %v2269 = vunpack.c.l.b16 %v2241
      %v2270 = vunpack.c.l.b16 %v2242
      %v2271 = vunpack.c.l.b16 %v2243
      %v2272 = vunpack.c.l.b16 %v2244
      %v2273 = vunpack.c.l.b16 %v2245
      %v2274 = vunpack.c.l.b16 %v2246
      %v2275 = vpack.c.b16 %v2268, %v2267
      %v2276 = vpack.c.b16 %v2270, %v2269
      %v2277 = vpack.c.b16 %v2272, %v2271
      %v2278 = vpack.c.b16 %v2274, %v2273
      %v2284 = vsel %vm607, %v2258, 0
      %2286 = vmatprep.subr.bf16.mxu0 0
      %2287 = vmatpush1.bf16.msra.mxu0 %v2275
      %2288 = vmatprep.subr.bf16.mxu0 0
      %2289 = vmatpush1.bf16.msra.mxu0 %v2276
      %2290 = vmatprep.subr.bf16.mxu0 0
      %2291 = vmatpush1.bf16.msra.mxu0 %v2277
      %2292 = vmatprep.subr.bf16.mxu0 0
      %2293 = vmatpush1.bf16.msra.mxu0 %v2278
      %2294 = vmatprep.subr.bf16.mxu0 0
      %2295 = vmatpush1.bf16.msra.mxu0 0
      %2296 = vmatprep.subr.bf16.mxu0 0
      %2297 = vmatpush1.bf16.msra.mxu0 0
      %2298 = vmatprep.subr.bf16.mxu0 0
      %2299 = vmatpush1.bf16.msra.mxu0 0
      %2300 = vmatprep.subr.bf16.mxu0 0
      %2301 = vmatpush1.bf16.msra.mxu0 0
      %2302 = vmatprep.subr.bf16.mxu0 0
      %2303 = vmatpush1.bf16.msra.mxu0 0
      %2304 = vmatprep.subr.bf16.mxu0 0
      %2305 = vmatpush1.bf16.msra.mxu0 0
      %2306 = vmatprep.subr.bf16.mxu0 0
      %2307 = vmatpush1.bf16.msra.mxu0 0
      %2308 = vmatprep.subr.bf16.mxu0 0
      %2309 = vmatpush1.bf16.msra.mxu0 0
      %2310 = vmatprep.subr.bf16.mxu0 0
      %2311 = vmatpush1.bf16.msra.mxu0 0
      %2312 = vmatprep.subr.bf16.mxu0 0
      %2313 = vmatpush1.bf16.msra.mxu0 0
      %2314 = vmatprep.subr.bf16.mxu0 0
      %2315 = vmatpush1.bf16.msra.mxu0 0
      %2316 = vmatprep.subr.bf16.mxu0 0
      %2317 = vmatpush1.bf16.msra.mxu0 0
      %2318 = vmatprep.mubr.bf16.mxu0 0
      %2319 = vmatmul.mubr.bf16.gmra.mrb[0].mxu0 %v2284
      %v2320 = vpop.f32.mrb[0].mxu0
      %v2321 = vadd.f32 0.0, %v2320
      %v2322 = vpop.f32.mrb[0].mxu0
      %v2323 = vpop.f32.mrb[0].mxu0
      %v2324 = vpop.f32.mrb[0].mxu0
      %2325 = vdwg.mxu0
      %v2334 = vunpack.c.l.b16 %v2229
      %v2335 = vunpack.c.l.b16 %v2230
      %v2336 = vunpack.c.l.b16 %v2231
      %v2337 = vunpack.c.l.b16 %v2232
      %v2338 = vunpack.c.l.b16 %v2233
      %v2339 = vunpack.c.l.b16 %v2234
      %v2340 = vunpack.c.l.b16 %v2235
      %v2341 = vunpack.c.l.b16 %v2236
      %v2342 = vpack.c.b16 %v2335, %v2334
      %v2343 = vpack.c.b16 %v2337, %v2336
      %v2344 = vpack.c.b16 %v2339, %v2338
      %v2345 = vpack.c.b16 %v2341, %v2340
      %v2351 = vsel %vm607, %v2227, 0
      %2353 = vmatprep.subr.bf16.mxu0 0
      %2354 = vmatpush1.bf16.msra.mxu0 %v2342
      %2355 = vmatprep.subr.bf16.mxu0 0
      %2356 = vmatpush1.bf16.msra.mxu0 %v2343
      %2357 = vmatprep.subr.bf16.mxu0 0
      %2358 = vmatpush1.bf16.msra.mxu0 %v2344
      %2359 = vmatprep.subr.bf16.mxu0 0
      %2360 = vmatpush1.bf16.msra.mxu0 %v2345
      %2361 = vmatprep.subr.bf16.mxu0 0
      %2362 = vmatpush1.bf16.msra.mxu0 0
      %2363 = vmatprep.subr.bf16.mxu0 0
      %2364 = vmatpush1.bf16.msra.mxu0 0
      %2365 = vmatprep.subr.bf16.mxu0 0
      %2366 = vmatpush1.bf16.msra.mxu0 0
      %2367 = vmatprep.subr.bf16.mxu0 0
      %2368 = vmatpush1.bf16.msra.mxu0 0
      %2369 = vmatprep.subr.bf16.mxu0 0
      %2370 = vmatpush1.bf16.msra.mxu0 0
      %2371 = vmatprep.subr.bf16.mxu0 0
      %2372 = vmatpush1.bf16.msra.mxu0 0
      %2373 = vmatprep.subr.bf16.mxu0 0
      %2374 = vmatpush1.bf16.msra.mxu0 0
      %2375 = vmatprep.subr.bf16.mxu0 0
      %2376 = vmatpush1.bf16.msra.mxu0 0
      %2377 = vmatprep.subr.bf16.mxu0 0
      %2378 = vmatpush1.bf16.msra.mxu0 0
      %2379 = vmatprep.subr.bf16.mxu0 0
      %2380 = vmatpush1.bf16.msra.mxu0 0
      %2381 = vmatprep.subr.bf16.mxu0 0
      %2382 = vmatpush1.bf16.msra.mxu0 0
      %2383 = vmatprep.subr.bf16.mxu0 0
      %2384 = vmatpush1.bf16.msra.mxu0 0
      %2385 = vmatprep.mubr.bf16.mxu0 0
      %2386 = vmatmul.mubr.bf16.gmra.mrb[0].mxu0 %v2351
      %v2387 = vpop.f32.mrb[0].mxu0
      %v2388 = vadd.f32 %v2321, %v2387
      %v2389 = vpop.f32.mrb[0].mxu0
      %v2390 = vpop.f32.mrb[0].mxu0
      %v2391 = vpop.f32.mrb[0].mxu0
      %2392 = vdwg.mxu0
      %v2393 = vld [vmem:[#allocation3] sm:$0xe]
      %s2394 = scalar_lea.vmem %s8, 256
      %v2395 = vld [vmem:[%s2394] sm:$0xf]
      %v2396 = vld [vmem:[%s2394 + $0x4] sm:$0xf]
      %v2397 = vld [vmem:[%s2394 + $0x8] sm:$0xf]
      %v2398 = vld [vmem:[%s2394 + $0xc] sm:$0xf]
      %v2399 = vld [vmem:[%s2394 + $0x10] sm:$0xf]
      %v2400 = vld [vmem:[%s2394 + $0x14] sm:$0xf]
      %v2401 = vld [vmem:[%s2394 + $0x18] sm:$0xf]
      %v2402 = vld [vmem:[%s2394 + $0x1c] sm:$0xf]
      %v2404 = vunpack.c.l.b16 %v2393
      %v2405 = vpack.c.b16 %v2250, %v2404
      %v2406 = vrot.slane %v2405, 1
      %v2415 = vunpack.c.l.b16 %v2395
      %v2416 = vunpack.c.l.b16 %v2396
      %v2417 = vunpack.c.l.b16 %v2397
      %v2418 = vunpack.c.l.b16 %v2398
      %v2419 = vunpack.c.l.b16 %v2399
      %v2420 = vunpack.c.l.b16 %v2400
      %v2421 = vunpack.c.l.b16 %v2401
      %v2422 = vunpack.c.l.b16 %v2402
      %v2423 = vpack.c.b16 %v2416, %v2415
      %v2424 = vpack.c.b16 %v2418, %v2417
      %v2425 = vpack.c.b16 %v2420, %v2419
      %v2426 = vpack.c.b16 %v2422, %v2421
      %v2432 = vsel %vm607, %v2406, 0
      %2434 = vmatprep.subr.bf16.mxu0 0
      %2435 = vmatpush1.bf16.msra.mxu0 %v2423
      %2436 = vmatprep.subr.bf16.mxu0 0
      %2437 = vmatpush1.bf16.msra.mxu0 %v2424
      %2438 = vmatprep.subr.bf16.mxu0 0
      %2439 = vmatpush1.bf16.msra.mxu0 %v2425
      %2440 = vmatprep.subr.bf16.mxu0 0
      %2441 = vmatpush1.bf16.msra.mxu0 %v2426
      %2442 = vmatprep.subr.bf16.mxu0 0
      %2443 = vmatpush1.bf16.msra.mxu0 0
      %2444 = vmatprep.subr.bf16.mxu0 0
      %2445 = vmatpush1.bf16.msra.mxu0 0
      %2446 = vmatprep.subr.bf16.mxu0 0
      %2447 = vmatpush1.bf16.msra.mxu0 0
      %2448 = vmatprep.subr.bf16.mxu0 0
      %2449 = vmatpush1.bf16.msra.mxu0 0
      %2450 = vmatprep.subr.bf16.mxu0 0
      %2451 = vmatpush1.bf16.msra.mxu0 0
      %2452 = vmatprep.subr.bf16.mxu0 0
      %2453 = vmatpush1.bf16.msra.mxu0 0
      %2454 = vmatprep.subr.bf16.mxu0 0
      %2455 = vmatpush1.bf16.msra.mxu0 0
      %2456 = vmatprep.subr.bf16.mxu0 0
      %2457 = vmatpush1.bf16.msra.mxu0 0
      %2458 = vmatprep.subr.bf16.mxu0 0
      %2459 = vmatpush1.bf16.msra.mxu0 0
      %2460 = vmatprep.subr.bf16.mxu0 0
      %2461 = vmatpush1.bf16.msra.mxu0 0
      %2462 = vmatprep.subr.bf16.mxu0 0
      %2463 = vmatpush1.bf16.msra.mxu0 0
      %2464 = vmatprep.subr.bf16.mxu0 0
      %2465 = vmatpush1.bf16.msra.mxu0 0
      %2466 = vmatprep.mubr.bf16.mxu0 0
      %2467 = vmatmul.mubr.bf16.gmra.mrb[0].mxu0 %v2432
      %v2468 = vpop.f32.mrb[0].mxu0
      %v2469 = vadd.f32 0.0, %v2468
      %v2470 = vpop.f32.mrb[0].mxu0
      %v2471 = vpop.f32.mrb[0].mxu0
      %v2472 = vpop.f32.mrb[0].mxu0
      %2473 = vdwg.mxu0
      %v2474 = vadd.f32 %v2388, %v2469
      %v2475 = vsel %vm607, %v2474, 0.0
      %2476 = vadd.xlane.f32.xlu0 %v2475
      %v2477 = vpop.xlane.xlu0 %2476
      %v2478 = vrot.slane %v2477, 4
      %v2479 = vadd.f32 %v2477, %v2478
      %v2480 = vrot.slane %v2479, 2
      %v2481 = vadd.f32 %v2479, %v2480
      %v2482 = vrot.slane %v2481, 1
      %v2483 = vadd.f32 %v2481, %v2482
      %s2484 = vtos %v2483
      %s2485 = smul.f32 %s2484, 0.001953125
      %v2486 = vmul.f32 %v2474, %v2474
      %v2487 = vsel %vm607, %v2486, 0.0
      %2488 = vadd.xlane.f32.xlu0 %v2487
      %v2489 = vpop.xlane.xlu0 %2488
      %v2490 = vrot.slane %v2489, 4
      %v2491 = vadd.f32 %v2489, %v2490
      %v2492 = vrot.slane %v2491, 2
      %v2493 = vadd.f32 %v2491, %v2492
      %v2494 = vrot.slane %v2493, 1
      %v2495 = vadd.f32 %v2493, %v2494
      %s2496 = vtos %v2495
      %s2497 = smul.f32 %s2496, 0.001953125
      %s2498 = smul.f32 %s2485, %s2485
      %s2499 = ssub.f32 %s2497, %s2498
      %v2500 = vstv %s2485
      %v2501 = vsub.f32 %v2474, %v2500
      %s2502 = sadd.f32 %s2499, 1e-05
      %v2503 = vstv %s2502
      %v2504 = vrsqrt.pop %v2503
      %s2505 = vtos %v2504
      %v2506 = vstv %s2505
      %v2507 = vmul.f32 %v2501, %v2506
      %v2508 = vmul.f32 %v2507, %v1889
      %v2509 = vadd.f32 %v2508, %v1894
      %v2510 = vadd.f32 %v2509, %v1570
      %vm2511 = vcmp.ge.f32.partialorder %v2510, 0.0
      %v2512 = vmul.f32 %v1900, %v2510
      %v2513 = vsel %vm2511, %v2510, %v2512
      %v2514 = vpack.c.bf16 %v2513, %v2513
      %v2515 = vld [vmem:[%s11] sm:$0xf]
      %v2516 = vld [vmem:[%s11 + $0x4] sm:$0xf]
      %v2517 = vld [vmem:[%s11 + $0x8] sm:$0xf]
      %v2518 = vld [vmem:[%s11 + $0xc] sm:$0xf]
      %v2519 = vld [vmem:[%s11 + $0x10] sm:$0xf]
      %v2520 = vld [vmem:[%s11 + $0x14] sm:$0xf]
      %v2521 = vld [vmem:[%s11 + $0x18] sm:$0xf]
      %v2522 = vld [vmem:[%s11 + $0x1c] sm:$0xf]
      %v2531 = vunpack.c.l.b16 %v2515
      %v2532 = vunpack.c.l.b16 %v2516
      %v2533 = vunpack.c.l.b16 %v2517
      %v2534 = vunpack.c.l.b16 %v2518
      %v2535 = vunpack.c.l.b16 %v2519
      %v2536 = vunpack.c.l.b16 %v2520
      %v2537 = vunpack.c.l.b16 %v2521
      %v2538 = vunpack.c.l.b16 %v2522
      %v2539 = vpack.c.b16 %v2532, %v2531
      %v2540 = vpack.c.b16 %v2534, %v2533
      %v2541 = vpack.c.b16 %v2536, %v2535
      %v2542 = vpack.c.b16 %v2538, %v2537
      %v2548 = vsel %vm607, %v2514, 0
      %2550 = vmatprep.subr.bf16.mxu0 0
      %2551 = vmatpush1.bf16.msra.mxu0 %v2539
      %2552 = vmatprep.subr.bf16.mxu0 0
      %2553 = vmatpush1.bf16.msra.mxu0 %v2540
      %2554 = vmatprep.subr.bf16.mxu0 0
      %2555 = vmatpush1.bf16.msra.mxu0 %v2541
      %2556 = vmatprep.subr.bf16.mxu0 0
      %2557 = vmatpush1.bf16.msra.mxu0 %v2542
      %2558 = vmatprep.subr.bf16.mxu0 0
      %2559 = vmatpush1.bf16.msra.mxu0 0
      %2560 = vmatprep.subr.bf16.mxu0 0
      %2561 = vmatpush1.bf16.msra.mxu0 0
      %2562 = vmatprep.subr.bf16.mxu0 0
      %2563 = vmatpush1.bf16.msra.mxu0 0
      %2564 = vmatprep.subr.bf16.mxu0 0
      %2565 = vmatpush1.bf16.msra.mxu0 0
      %2566 = vmatprep.subr.bf16.mxu0 0
      %2567 = vmatpush1.bf16.msra.mxu0 0
      %2568 = vmatprep.subr.bf16.mxu0 0
      %2569 = vmatpush1.bf16.msra.mxu0 0
      %2570 = vmatprep.subr.bf16.mxu0 0
      %2571 = vmatpush1.bf16.msra.mxu0 0
      %2572 = vmatprep.subr.bf16.mxu0 0
      %2573 = vmatpush1.bf16.msra.mxu0 0
      %2574 = vmatprep.subr.bf16.mxu0 0
      %2575 = vmatpush1.bf16.msra.mxu0 0
      %2576 = vmatprep.subr.bf16.mxu0 0
      %2577 = vmatpush1.bf16.msra.mxu0 0
      %2578 = vmatprep.subr.bf16.mxu0 0
      %2579 = vmatpush1.bf16.msra.mxu0 0
      %2580 = vmatprep.subr.bf16.mxu0 0
      %2581 = vmatpush1.bf16.msra.mxu0 0
      %2582 = vmatprep.mubr.bf16.mxu0 0
      %2583 = vmatmul.mubr.bf16.gmra.mrb[0].mxu0 %v2548
      %v2584 = vpop.f32.mrb[0].mxu0
      %v2585 = vadd.f32 0.0, %v2584
      %v2586 = vpop.f32.mrb[0].mxu0
      %v2587 = vpop.f32.mrb[0].mxu0
      %v2588 = vpop.f32.mrb[0].mxu0
      %2589 = vdwg.mxu0
      %v2590 = vld [vmem:[%s10] sm:$0xf]
      %v2591 = vld [vmem:[%s10 + $0x4] sm:$0xf]
      %v2592 = vpack.c.bf16 %v2585, %v2585
      %v2593 = vld [vmem:[%s513] sm:$0xff]
      %v2594 = vld [vmem:[%s513 + $0x8] sm:$0xff]
      %v2597 = vunpack.c.l.b16 %v2590
      %v2598 = vunpack.c.l.b16 %v2591
      %v2599 = vpack.c.b16 %v2598, %v2597
      %vm2600 = vcmask 64512
      %v2602 = vsel %vm2600, %v2599, 0
      %vm2604 = vcmask 1043456
      %v2606 = vsel %vm2604, %v2592, 0
      %2608 = vmatprep.subr.bf16.mxu0 0
      %2609 = vmatpush1.bf16.msra.mxu0 %v2606
      %2610 = vmatprep.subr.bf16.mxu0 0
      %2611 = vmatpush1.bf16.msra.mxu0 0
      %2612 = vmatprep.subr.bf16.mxu0 0
      %2613 = vmatpush1.bf16.msra.mxu0 0
      %2614 = vmatprep.subr.bf16.mxu0 0
      %2615 = vmatpush1.bf16.msra.mxu0 0
      %2616 = vmatprep.subr.bf16.mxu0 0
      %2617 = vmatpush1.bf16.msra.mxu0 0
      %2618 = vmatprep.subr.bf16.mxu0 0
      %2619 = vmatpush1.bf16.msra.mxu0 0
      %2620 = vmatprep.subr.bf16.mxu0 0
      %2621 = vmatpush1.bf16.msra.mxu0 0
      %2622 = vmatprep.subr.bf16.mxu0 0
      %2623 = vmatpush1.bf16.msra.mxu0 0
      %2624 = vmatprep.subr.bf16.mxu0 0
      %2625 = vmatpush1.bf16.msra.mxu0 0
      %2626 = vmatprep.subr.bf16.mxu0 0
      %2627 = vmatpush1.bf16.msra.mxu0 0
      %2628 = vmatprep.subr.bf16.mxu0 0
      %2629 = vmatpush1.bf16.msra.mxu0 0
      %2630 = vmatprep.subr.bf16.mxu0 0
      %2631 = vmatpush1.bf16.msra.mxu0 0
      %2632 = vmatprep.subr.bf16.mxu0 0
      %2633 = vmatpush1.bf16.msra.mxu0 0
      %2634 = vmatprep.subr.bf16.mxu0 0
      %2635 = vmatpush1.bf16.msra.mxu0 0
      %2636 = vmatprep.subr.bf16.mxu0 0
      %2637 = vmatpush1.bf16.msra.mxu0 0
      %2638 = vmatprep.subr.bf16.mxu0 0
      %2639 = vmatpush1.bf16.msra.mxu0 0
      %2640 = vmatprep.mubr.bf16.mxu0 0
      %2641 = vmatmul.mubr.bf16.gmra.mrb[0].mxu0 %v2602
      %v2642 = vpop.f32.mrb[0].mxu0
      %v2643 = vadd.f32 %v2593, %v2642
      %v2644 = vpop.f32.mrb[0].mxu0
      %v2645 = vpop.f32.mrb[0].mxu0
      %v2646 = vadd.f32 %v2594, %v2645
      %v2647 = vpop.f32.mrb[0].mxu0
      %2648 = vdwg.mxu0
      %v2649 = vld [vmem:[%s13] sm:$0x7]
      %v2650 = vld [vmem:[#allocation4] sm:$0x1]
      %v2651 = vsel %vm526, 0, %v2650
      %2652 = vst [vmem:[#allocation4] sm:$0x1] %v2651
      %v2653 = vld [vmem:[#allocation4 + $0x8] sm:$0x1]
      %v2654 = vsel %vm1580, 0, %v2653
      %2655 = vst [vmem:[#allocation4 + $0x8] sm:$0x1] %v2654
      %v2656 = vpack.c.bf16 %v2646, %v2643
      %v2658 = vunpack.c.l.b16 %v2656
      %v2659 = vunpack.c.h.b16 %v2656
      %v2660 = vpack.c.b16 %v2658, %v2658
      %v2661 = vpack.c.b16 %v2659, %v2659
      %vm2662 = vsmask.f32 4368
      %vm2663 = vmor %vm525, %vm2662
      %v2665 = vshrl.u32 %v2660, 16
      %v2667 = vrot.slane %v2665, 7
      %v2668 = vshll.u32 %v2660, 16
      %v2670 = vor.u32 %v2667, %v2668
      %v2671 = vrot.slane %v2667, 4
      %v2673 = vshrl.u32 %v2661, 16
      %v2675 = vrot.slane %v2673, 7
      %v2676 = vshll.u32 %v2661, 16
      %v2678 = vor.u32 %v2675, %v2676
      %v2679 = vsel %vm2663, %v2671, %v2678
      %v2680 = vrot.slane %v2675, 4
      %v2684 = vld [vmem:[#allocation4] sm:$0xf]
      %v2685 = vsel %vm1599, %v2670, %v2684
      %2686 = vst [vmem:[#allocation4] sm:$0xf] %v2685
      %2687 = vst.msk [vmem:[#allocation4 + $0x4] sm:$0xf] %vm800, %v2679
      %v2688 = vld [vmem:[#allocation4 + $0x8] sm:$0x1]
      %v2689 = vsel %vm526, %v2680, %v2688
      %2690 = vst [vmem:[#allocation4 + $0x8] sm:$0x1] %v2689
      %v2691 = vld [vmem:[#allocation4] sm:$0xf]
      %v2692 = vld [vmem:[#allocation4 + $0x4] sm:$0xf]
      %v2693 = vld [vmem:[%s12] sm:$0xf]
      %v2694 = vld [vmem:[%s12 + $0x4] sm:$0xf]
      %v2695 = vld [vmem:[%s12 + $0x8] sm:$0xf]
      %v2696 = vld [vmem:[%s12 + $0xc] sm:$0xf]
      %v2697 = vld [vmem:[%s12 + $0x10] sm:$0xf]
      %v2698 = vld [vmem:[%s12 + $0x14] sm:$0xf]
      %v2699 = vld [vmem:[%s12 + $0x18] sm:$0xf]
      %v2700 = vld [vmem:[%s12 + $0x1c] sm:$0xf]
      %v2701 = vld [vmem:[#allocation4 + $0x8] sm:$0x1]
      %s2702 = scalar_lea.vmem %s12, 32
      %v2703 = vld [vmem:[%s2702] sm:$0xf]
      %v2704 = vld [vmem:[%s2702 + $0x4] sm:$0xf]
      %v2705 = vld [vmem:[%s2702 + $0x8] sm:$0xf]
      %v2706 = vld [vmem:[%s2702 + $0xc] sm:$0xf]
      %v2707 = vld [vmem:[%s2702 + $0x10] sm:$0xf]
      %v2708 = vld [vmem:[%s2702 + $0x14] sm:$0xf]
      %v2709 = vld [vmem:[%s2702 + $0x18] sm:$0xf]
      %v2710 = vld [vmem:[%s2702 + $0x1c] sm:$0xf]
      %v2714 = vunpack.c.l.b16 %v2691
      %v2715 = vunpack.c.l.b16 %v2692
      %v2716 = vunpack.c.l.b16 %v2701
      %v2717 = vpack.c.b16 %v2715, %v2714
      %v2718 = vpack.c.b16 %v2716, %v2716
      %vm2719 = vsmask.f32 7424
      %v2721 = vshrl.u32 %v2717, 16
      %v2723 = vshll.u32 %v2717, 16
      %v2725 = vrot.slane %v2723, 1
      %v2726 = vor.u32 %v2721, %v2725
      %v2728 = vshll.u32 %v2718, 16
      %v2730 = vrot.slane %v2728, 1
      %v2731 = vsel %vm2719, %v2726, %v2730
      %v2740 = vunpack.c.l.b16 %v2703
      %v2741 = vunpack.c.l.b16 %v2704
      %v2742 = vunpack.c.l.b16 %v2705
      %v2743 = vunpack.c.l.b16 %v2706
      %v2744 = vunpack.c.l.b16 %v2707
      %v2745 = vunpack.c.l.b16 %v2708
      %v2746 = vunpack.c.l.b16 %v2709
      %v2747 = vunpack.c.l.b16 %v2710
      %v2748 = vpack.c.b16 %v2741, %v2740
      %v2749 = vpack.c.b16 %v2743, %v2742
      %v2750 = vpack.c.b16 %v2745, %v2744
      %v2751 = vpack.c.b16 %v2747, %v2746
      %v2757 = vsel %vm607, %v2731, 0
      %2759 = vmatprep.subr.bf16.mxu0 0
      %2760 = vmatpush1.bf16.msra.mxu0 %v2748
      %2761 = vmatprep.subr.bf16.mxu0 0
      %2762 = vmatpush1.bf16.msra.mxu0 %v2749
      %2763 = vmatprep.subr.bf16.mxu0 0
      %2764 = vmatpush1.bf16.msra.mxu0 %v2750
      %2765 = vmatprep.subr.bf16.mxu0 0
      %2766 = vmatpush1.bf16.msra.mxu0 %v2751
      %2767 = vmatprep.subr.bf16.mxu0 0
      %2768 = vmatpush1.bf16.msra.mxu0 0
      %2769 = vmatprep.subr.bf16.mxu0 0
      %2770 = vmatpush1.bf16.msra.mxu0 0
      %2771 = vmatprep.subr.bf16.mxu0 0
      %2772 = vmatpush1.bf16.msra.mxu0 0
      %2773 = vmatprep.subr.bf16.mxu0 0
      %2774 = vmatpush1.bf16.msra.mxu0 0
      %2775 = vmatprep.subr.bf16.mxu0 0
      %2776 = vmatpush1.bf16.msra.mxu0 0
      %2777 = vmatprep.subr.bf16.mxu0 0
      %2778 = vmatpush1.bf16.msra.mxu0 0
      %2779 = vmatprep.subr.bf16.mxu0 0
      %2780 = vmatpush1.bf16.msra.mxu0 0
      %2781 = vmatprep.subr.bf16.mxu0 0
      %2782 = vmatpush1.bf16.msra.mxu0 0
      %2783 = vmatprep.subr.bf16.mxu0 0
      %2784 = vmatpush1.bf16.msra.mxu0 0
      %2785 = vmatprep.subr.bf16.mxu0 0
      %2786 = vmatpush1.bf16.msra.mxu0 0
      %2787 = vmatprep.subr.bf16.mxu0 0
      %2788 = vmatpush1.bf16.msra.mxu0 0
      %2789 = vmatprep.subr.bf16.mxu0 0
      %2790 = vmatpush1.bf16.msra.mxu0 0
      %2791 = vmatprep.mubr.bf16.mxu0 0
      %2792 = vmatmul.mubr.bf16.gmra.mrb[0].mxu0 %v2757
      %v2793 = vpop.f32.mrb[0].mxu0
      %v2794 = vadd.f32 0.0, %v2793
      %v2795 = vpop.f32.mrb[0].mxu0
      %v2796 = vpop.f32.mrb[0].mxu0
      %v2797 = vadd.f32 0.0, %v2796
      %v2798 = vpop.f32.mrb[0].mxu0
      %2799 = vdwg.mxu0
      %v2808 = vunpack.c.l.b16 %v2693
      %v2809 = vunpack.c.l.b16 %v2694
      %v2810 = vunpack.c.l.b16 %v2695
      %v2811 = vunpack.c.l.b16 %v2696
      %v2812 = vunpack.c.l.b16 %v2697
      %v2813 = vunpack.c.l.b16 %v2698
      %v2814 = vunpack.c.l.b16 %v2699
      %v2815 = vunpack.c.l.b16 %v2700
      %v2816 = vpack.c.b16 %v2809, %v2808
      %v2817 = vpack.c.b16 %v2811, %v2810
      %v2818 = vpack.c.b16 %v2813, %v2812
      %v2819 = vpack.c.b16 %v2815, %v2814
      %v2824 = vsel %vm607, %v2717, 0
      %2826 = vmatprep.subr.bf16.mxu0 0
      %2827 = vmatpush1.bf16.msra.mxu0 %v2816
      %2828 = vmatprep.subr.bf16.mxu0 0
      %2829 = vmatpush1.bf16.msra.mxu0 %v2817
      %2830 = vmatprep.subr.bf16.mxu0 0
      %2831 = vmatpush1.bf16.msra.mxu0 %v2818
      %2832 = vmatprep.subr.bf16.mxu0 0
      %2833 = vmatpush1.bf16.msra.mxu0 %v2819
      %2834 = vmatprep.subr.bf16.mxu0 0
      %2835 = vmatpush1.bf16.msra.mxu0 0
      %2836 = vmatprep.subr.bf16.mxu0 0
      %2837 = vmatpush1.bf16.msra.mxu0 0
      %2838 = vmatprep.subr.bf16.mxu0 0
      %2839 = vmatpush1.bf16.msra.mxu0 0
      %2840 = vmatprep.subr.bf16.mxu0 0
      %2841 = vmatpush1.bf16.msra.mxu0 0
      %2842 = vmatprep.subr.bf16.mxu0 0
      %2843 = vmatpush1.bf16.msra.mxu0 0
      %2844 = vmatprep.subr.bf16.mxu0 0
      %2845 = vmatpush1.bf16.msra.mxu0 0
      %2846 = vmatprep.subr.bf16.mxu0 0
      %2847 = vmatpush1.bf16.msra.mxu0 0
      %2848 = vmatprep.subr.bf16.mxu0 0
      %2849 = vmatpush1.bf16.msra.mxu0 0
      %2850 = vmatprep.subr.bf16.mxu0 0
      %2851 = vmatpush1.bf16.msra.mxu0 0
      %2852 = vmatprep.subr.bf16.mxu0 0
      %2853 = vmatpush1.bf16.msra.mxu0 0
      %2854 = vmatprep.subr.bf16.mxu0 0
      %2855 = vmatpush1.bf16.msra.mxu0 0
      %2856 = vmatprep.subr.bf16.mxu0 0
      %2857 = vmatpush1.bf16.msra.mxu0 0
      %2858 = vmatprep.mubr.bf16.mxu0 0
      %2859 = vmatmul.mubr.bf16.gmra.mrb[0].mxu0 %v2824
      %v2860 = vpop.f32.mrb[0].mxu0
      %v2861 = vadd.f32 %v2794, %v2860
      %v2862 = vpop.f32.mrb[0].mxu0
      %v2863 = vpop.f32.mrb[0].mxu0
      %v2864 = vadd.f32 %v2797, %v2863
      %v2865 = vpop.f32.mrb[0].mxu0
      %2866 = vdwg.mxu0
      %v2867 = vld [vmem:[#allocation4] sm:$0xe]
      %s2868 = scalar_lea.vmem %s12, 64
      %v2869 = vld [vmem:[%s2868] sm:$0xf]
      %v2870 = vld [vmem:[%s2868 + $0x4] sm:$0xf]
      %v2871 = vld [vmem:[%s2868 + $0x8] sm:$0xf]
      %v2872 = vld [vmem:[%s2868 + $0xc] sm:$0xf]
      %v2873 = vld [vmem:[%s2868 + $0x10] sm:$0xf]
      %v2874 = vld [vmem:[%s2868 + $0x14] sm:$0xf]
      %v2875 = vld [vmem:[%s2868 + $0x18] sm:$0xf]
      %v2876 = vld [vmem:[%s2868 + $0x1c] sm:$0xf]
      %v2878 = vunpack.c.l.b16 %v2867
      %v2879 = vpack.c.b16 %v2715, %v2878
      %vm2880 = vcmask 1046528
      %v2881 = vrot.slane %v2879, 1
      %v2882 = vrot.slane %v2718, 1
      %v2883 = vsel %vm2880, %v2881, %v2882
      %v2892 = vunpack.c.l.b16 %v2869
      %v2893 = vunpack.c.l.b16 %v2870
      %v2894 = vunpack.c.l.b16 %v2871
      %v2895 = vunpack.c.l.b16 %v2872
      %v2896 = vunpack.c.l.b16 %v2873
      %v2897 = vunpack.c.l.b16 %v2874
      %v2898 = vunpack.c.l.b16 %v2875
      %v2899 = vunpack.c.l.b16 %v2876
      %v2900 = vpack.c.b16 %v2893, %v2892
      %v2901 = vpack.c.b16 %v2895, %v2894
      %v2902 = vpack.c.b16 %v2897, %v2896
      %v2903 = vpack.c.b16 %v2899, %v2898
      %v2909 = vsel %vm607, %v2883, 0
      %2911 = vmatprep.subr.bf16.mxu0 0
      %2912 = vmatpush1.bf16.msra.mxu0 %v2900
      %2913 = vmatprep.subr.bf16.mxu0 0
      %2914 = vmatpush1.bf16.msra.mxu0 %v2901
      %2915 = vmatprep.subr.bf16.mxu0 0
      %2916 = vmatpush1.bf16.msra.mxu0 %v2902
      %2917 = vmatprep.subr.bf16.mxu0 0
      %2918 = vmatpush1.bf16.msra.mxu0 %v2903
      %2919 = vmatprep.subr.bf16.mxu0 0
      %2920 = vmatpush1.bf16.msra.mxu0 0
      %2921 = vmatprep.subr.bf16.mxu0 0
      %2922 = vmatpush1.bf16.msra.mxu0 0
      %2923 = vmatprep.subr.bf16.mxu0 0
      %2924 = vmatpush1.bf16.msra.mxu0 0
      %2925 = vmatprep.subr.bf16.mxu0 0
      %2926 = vmatpush1.bf16.msra.mxu0 0
      %2927 = vmatprep.subr.bf16.mxu0 0
      %2928 = vmatpush1.bf16.msra.mxu0 0
      %2929 = vmatprep.subr.bf16.mxu0 0
      %2930 = vmatpush1.bf16.msra.mxu0 0
      %2931 = vmatprep.subr.bf16.mxu0 0
      %2932 = vmatpush1.bf16.msra.mxu0 0
      %2933 = vmatprep.subr.bf16.mxu0 0
      %2934 = vmatpush1.bf16.msra.mxu0 0
      %2935 = vmatprep.subr.bf16.mxu0 0
      %2936 = vmatpush1.bf16.msra.mxu0 0
      %2937 = vmatprep.subr.bf16.mxu0 0
      %2938 = vmatpush1.bf16.msra.mxu0 0
      %2939 = vmatprep.subr.bf16.mxu0 0
      %2940 = vmatpush1.bf16.msra.mxu0 0
      %2941 = vmatprep.subr.bf16.mxu0 0
      %2942 = vmatpush1.bf16.msra.mxu0 0
      %2943 = vmatprep.mubr.bf16.mxu0 0
      %2944 = vmatmul.mubr.bf16.gmra.mrb[0].mxu0 %v2909
      %v2945 = vpop.f32.mrb[0].mxu0
      %v2946 = vadd.f32 0.0, %v2945
      %v2947 = vpop.f32.mrb[0].mxu0
      %v2948 = vpop.f32.mrb[0].mxu0
      %v2949 = vadd.f32 0.0, %v2948
      %v2950 = vpop.f32.mrb[0].mxu0
      %2951 = vdwg.mxu0
      %v2952 = vadd.f32 %v2861, %v2946
      %v2953 = vadd.f32 %v2864, %v2949
      %v2954 = vsel %vm607, %v2952, 0.0
      %v2955 = vsel %vm607, %v2953, 0.0
      %v2956 = vadd.f32 %v2954, %v2955
      %2957 = vadd.xlane.f32.xlu0 %v2956
      %v2958 = vpop.xlane.xlu0 %2957
      %v2959 = vrot.slane %v2958, 4
      %v2960 = vadd.f32 %v2958, %v2959
      %v2961 = vrot.slane %v2960, 2
      %v2962 = vadd.f32 %v2960, %v2961
      %v2963 = vrot.slane %v2962, 1
      %v2964 = vadd.f32 %v2962, %v2963
      %s2965 = vtos %v2964
      %s2966 = smul.f32 %s2965, 0.0009765625
      %v2967 = vmul.f32 %v2952, %v2952
      %v2968 = vmul.f32 %v2953, %v2953
      %v2969 = vsel %vm607, %v2967, 0.0
      %v2970 = vsel %vm607, %v2968, 0.0
      %v2971 = vadd.f32 %v2969, %v2970
      %2972 = vadd.xlane.f32.xlu0 %v2971
      %v2973 = vpop.xlane.xlu0 %2972
      %v2974 = vrot.slane %v2973, 4
      %v2975 = vadd.f32 %v2973, %v2974
      %v2976 = vrot.slane %v2975, 2
      %v2977 = vadd.f32 %v2975, %v2976
      %v2978 = vrot.slane %v2977, 1
      %v2979 = vadd.f32 %v2977, %v2978
      %s2980 = vtos %v2979
      %s2981 = smul.f32 %s2980, 0.0009765625
      %s2982 = smul.f32 %s2966, %s2966
      %s2983 = ssub.f32 %s2981, %s2982
      %v2984 = vstv %s2966
      %v2985 = vsub.f32 %v2952, %v2984
      %v2986 = vsub.f32 %v2953, %v2984
      %s2987 = sadd.f32 %s2983, 1e-05
      %v2988 = vstv %s2987
      %v2989 = vrsqrt.pop %v2988
      %s2990 = vtos %v2989
      %v2991 = vstv %s2990
      %v2992 = vmul.f32 %v2985, %v2991
      %v2993 = vmul.f32 %v2986, %v2991
      %v2994 = vlaneseq
      %v2995 = vshrl.u32 %v2994, 7
      %v2996 = vsub.s32 0, %v2995
      %v2997 = vrot.slane %v2649, %v2996
      %v2998 = vmul.f32 %v2992, %v2997
      %v2999 = vmul.f32 %v2993, %v2997
      %v3000 = vlaneseq
      %v3001 = vshrl.u32 %v3000, 7
      %v3002 = vsub.s32 1, %v3001
      %v3003 = vrot.slane %v2649, %v3002
      %v3004 = vadd.f32 %v2998, %v3003
      %v3005 = vadd.f32 %v2999, %v3003
      %vm3006 = vcmp.ge.f32.partialorder %v3004, 0.0
      %vm3007 = vcmp.ge.f32.partialorder %v3005, 0.0
      %v3008 = vlaneseq
      %v3009 = vshrl.u32 %v3008, 7
      %v3010 = vsub.s32 2, %v3009
      %v3011 = vrot.slane %v2649, %v3010
      %v3012 = vmul.f32 %v3011, %v3004
      %v3013 = vmul.f32 %v3011, %v3005
      %v3014 = vsel %vm3006, %v3004, %v3012
      %v3015 = vsel %vm3007, %v3005, %v3013
      %v3016 = vpack.c.bf16 %v3015, %v3014
      %v3018 = vunpack.c.l.b16 %v3016
      %v3019 = vunpack.c.h.b16 %v3016
      %v3020 = vpack.c.b16 %v3018, %v3018
      %v3021 = vpack.c.b16 %v3019, %v3019
      %v3023 = vshrl.u32 %v3020, 16
      %v3025 = vrot.slane %v3023, 7
      %v3026 = vshll.u32 %v3020, 16
      %v3028 = vor.u32 %v3025, %v3026
      %v3029 = vrot.slane %v3025, 4
      %v3031 = vshrl.u32 %v3021, 16
      %v3033 = vrot.slane %v3031, 7
      %v3034 = vshll.u32 %v3021, 16
      %v3036 = vor.u32 %v3033, %v3034
      %v3037 = vsel %vm2663, %v3029, %v3036
      %v3038 = vrot.slane %v3033, 4
      %v3042 = vsel %vm1599, %v3028, %v2691
      %3043 = vst [vmem:[#allocation4] sm:$0xf] %v3042
      %3044 = vst.msk [vmem:[#allocation4 + $0x4] sm:$0xf] %vm800, %v3037
      %v3045 = vld [vmem:[#allocation4 + $0x8] sm:$0x1]
      %v3046 = vsel %vm526, %v3038, %v3045
      %3047 = vst [vmem:[#allocation4 + $0x8] sm:$0x1] %v3046
      %v3048 = vld [vmem:[#allocation4] sm:$0xf]
      %v3049 = vld [vmem:[#allocation4 + $0x4] sm:$0xf]
      %s3050 = scalar_lea.vmem %s12, 96
      %v3051 = vld [vmem:[%s3050] sm:$0xf]
      %v3052 = vld [vmem:[%s3050 + $0x4] sm:$0xf]
      %v3053 = vld [vmem:[%s3050 + $0x8] sm:$0xf]
      %v3054 = vld [vmem:[%s3050 + $0xc] sm:$0xf]
      %v3055 = vld [vmem:[%s3050 + $0x10] sm:$0xf]
      %v3056 = vld [vmem:[%s3050 + $0x14] sm:$0xf]
      %v3057 = vld [vmem:[%s3050 + $0x18] sm:$0xf]
      %v3058 = vld [vmem:[%s3050 + $0x1c] sm:$0xf]
      %v3059 = vld [vmem:[#allocation4 + $0x8] sm:$0x1]
      %s3060 = scalar_lea.vmem %s12, 128
      %v3061 = vld [vmem:[%s3060] sm:$0xf]
      %v3062 = vld [vmem:[%s3060 + $0x4] sm:$0xf]
      %v3063 = vld [vmem:[%s3060 + $0x8] sm:$0xf]
      %v3064 = vld [vmem:[%s3060 + $0xc] sm:$0xf]
      %v3065 = vld [vmem:[%s3060 + $0x10] sm:$0xf]
      %v3066 = vld [vmem:[%s3060 + $0x14] sm:$0xf]
      %v3067 = vld [vmem:[%s3060 + $0x18] sm:$0xf]
      %v3068 = vld [vmem:[%s3060 + $0x1c] sm:$0xf]
      %v3072 = vunpack.c.l.b16 %v3048
      %v3073 = vunpack.c.l.b16 %v3049
      %v3074 = vunpack.c.l.b16 %v3059
      %v3075 = vpack.c.b16 %v3073, %v3072
      %v3076 = vpack.c.b16 %v3074, %v3074
      %v3078 = vshrl.u32 %v3075, 16
      %v3080 = vshll.u32 %v3075, 16
      %v3082 = vrot.slane %v3080, 1
      %v3083 = vor.u32 %v3078, %v3082
      %v3085 = vshll.u32 %v3076, 16
      %v3087 = vrot.slane %v3085, 1
      %v3088 = vsel %vm2719, %v3083, %v3087
      %v3097 = vunpack.c.l.b16 %v3061
      %v3098 = vunpack.c.l.b16 %v3062
      %v3099 = vunpack.c.l.b16 %v3063
      %v3100 = vunpack.c.l.b16 %v3064
      %v3101 = vunpack.c.l.b16 %v3065
      %v3102 = vunpack.c.l.b16 %v3066
      %v3103 = vunpack.c.l.b16 %v3067
      %v3104 = vunpack.c.l.b16 %v3068
      %v3105 = vpack.c.b16 %v3098, %v3097
      %v3106 = vpack.c.b16 %v3100, %v3099
      %v3107 = vpack.c.b16 %v3102, %v3101
      %v3108 = vpack.c.b16 %v3104, %v3103
      %v3114 = vsel %vm607, %v3088, 0
      %3116 = vmatprep.subr.bf16.mxu0 0
      %3117 = vmatpush1.bf16.msra.mxu0 %v3105
      %3118 = vmatprep.subr.bf16.mxu0 0
      %3119 = vmatpush1.bf16.msra.mxu0 %v3106
      %3120 = vmatprep.subr.bf16.mxu0 0
      %3121 = vmatpush1.bf16.msra.mxu0 %v3107
      %3122 = vmatprep.subr.bf16.mxu0 0
      %3123 = vmatpush1.bf16.msra.mxu0 %v3108
      %3124 = vmatprep.subr.bf16.mxu0 0
      %3125 = vmatpush1.bf16.msra.mxu0 0
      %3126 = vmatprep.subr.bf16.mxu0 0
      %3127 = vmatpush1.bf16.msra.mxu0 0
      %3128 = vmatprep.subr.bf16.mxu0 0
      %3129 = vmatpush1.bf16.msra.mxu0 0
      %3130 = vmatprep.subr.bf16.mxu0 0
      %3131 = vmatpush1.bf16.msra.mxu0 0
      %3132 = vmatprep.subr.bf16.mxu0 0
      %3133 = vmatpush1.bf16.msra.mxu0 0
      %3134 = vmatprep.subr.bf16.mxu0 0
      %3135 = vmatpush1.bf16.msra.mxu0 0
      %3136 = vmatprep.subr.bf16.mxu0 0
      %3137 = vmatpush1.bf16.msra.mxu0 0
      %3138 = vmatprep.subr.bf16.mxu0 0
      %3139 = vmatpush1.bf16.msra.mxu0 0
      %3140 = vmatprep.subr.bf16.mxu0 0
      %3141 = vmatpush1.bf16.msra.mxu0 0
      %3142 = vmatprep.subr.bf16.mxu0 0
      %3143 = vmatpush1.bf16.msra.mxu0 0
      %3144 = vmatprep.subr.bf16.mxu0 0
      %3145 = vmatpush1.bf16.msra.mxu0 0
      %3146 = vmatprep.subr.bf16.mxu0 0
      %3147 = vmatpush1.bf16.msra.mxu0 0
      %3148 = vmatprep.mubr.bf16.mxu0 0
      %3149 = vmatmul.mubr.bf16.gmra.mrb[0].mxu0 %v3114
      %v3150 = vpop.f32.mrb[0].mxu0
      %v3151 = vadd.f32 0.0, %v3150
      %v3152 = vpop.f32.mrb[0].mxu0
      %v3153 = vpop.f32.mrb[0].mxu0
      %v3154 = vadd.f32 0.0, %v3153
      %v3155 = vpop.f32.mrb[0].mxu0
      %3156 = vdwg.mxu0
      %v3165 = vunpack.c.l.b16 %v3051
      %v3166 = vunpack.c.l.b16 %v3052
      %v3167 = vunpack.c.l.b16 %v3053
      %v3168 = vunpack.c.l.b16 %v3054
      %v3169 = vunpack.c.l.b16 %v3055
      %v3170 = vunpack.c.l.b16 %v3056
      %v3171 = vunpack.c.l.b16 %v3057
      %v3172 = vunpack.c.l.b16 %v3058
      %v3173 = vpack.c.b16 %v3166, %v3165
      %v3174 = vpack.c.b16 %v3168, %v3167
      %v3175 = vpack.c.b16 %v3170, %v3169
      %v3176 = vpack.c.b16 %v3172, %v3171
      %v3181 = vsel %vm607, %v3075, 0
      %3183 = vmatprep.subr.bf16.mxu0 0
      %3184 = vmatpush1.bf16.msra.mxu0 %v3173
      %3185 = vmatprep.subr.bf16.mxu0 0
      %3186 = vmatpush1.bf16.msra.mxu0 %v3174
      %3187 = vmatprep.subr.bf16.mxu0 0
      %3188 = vmatpush1.bf16.msra.mxu0 %v3175
      %3189 = vmatprep.subr.bf16.mxu0 0
      %3190 = vmatpush1.bf16.msra.mxu0 %v3176
      %3191 = vmatprep.subr.bf16.mxu0 0
      %3192 = vmatpush1.bf16.msra.mxu0 0
      %3193 = vmatprep.subr.bf16.mxu0 0
      %3194 = vmatpush1.bf16.msra.mxu0 0
      %3195 = vmatprep.subr.bf16.mxu0 0
      %3196 = vmatpush1.bf16.msra.mxu0 0
      %3197 = vmatprep.subr.bf16.mxu0 0
      %3198 = vmatpush1.bf16.msra.mxu0 0
      %3199 = vmatprep.subr.bf16.mxu0 0
      %3200 = vmatpush1.bf16.msra.mxu0 0
      %3201 = vmatprep.subr.bf16.mxu0 0
      %3202 = vmatpush1.bf16.msra.mxu0 0
      %3203 = vmatprep.subr.bf16.mxu0 0
      %3204 = vmatpush1.bf16.msra.mxu0 0
      %3205 = vmatprep.subr.bf16.mxu0 0
      %3206 = vmatpush1.bf16.msra.mxu0 0
      %3207 = vmatprep.subr.bf16.mxu0 0
      %3208 = vmatpush1.bf16.msra.mxu0 0
      %3209 = vmatprep.subr.bf16.mxu0 0
      %3210 = vmatpush1.bf16.msra.mxu0 0
      %3211 = vmatprep.subr.bf16.mxu0 0
      %3212 = vmatpush1.bf16.msra.mxu0 0
      %3213 = vmatprep.subr.bf16.mxu0 0
      %3214 = vmatpush1.bf16.msra.mxu0 0
      %3215 = vmatprep.mubr.bf16.mxu0 0
      %3216 = vmatmul.mubr.bf16.gmra.mrb[0].mxu0 %v3181
      %v3217 = vpop.f32.mrb[0].mxu0
      %v3218 = vadd.f32 %v3151, %v3217
      %v3219 = vpop.f32.mrb[0].mxu0
      %v3220 = vpop.f32.mrb[0].mxu0
      %v3221 = vadd.f32 %v3154, %v3220
      %v3222 = vpop.f32.mrb[0].mxu0
      %3223 = vdwg.mxu0
      %v3224 = vld [vmem:[#allocation4] sm:$0xe]
      %s3225 = scalar_lea.vmem %s12, 160
      %v3226 = vld [vmem:[%s3225] sm:$0xf]
      %v3227 = vld [vmem:[%s3225 + $0x4] sm:$0xf]
      %v3228 = vld [vmem:[%s3225 + $0x8] sm:$0xf]
      %v3229 = vld [vmem:[%s3225 + $0xc] sm:$0xf]
      %v3230 = vld [vmem:[%s3225 + $0x10] sm:$0xf]
      %v3231 = vld [vmem:[%s3225 + $0x14] sm:$0xf]
      %v3232 = vld [vmem:[%s3225 + $0x18] sm:$0xf]
      %v3233 = vld [vmem:[%s3225 + $0x1c] sm:$0xf]
      %v3235 = vunpack.c.l.b16 %v3224
      %v3236 = vpack.c.b16 %v3073, %v3235
      %v3237 = vrot.slane %v3236, 1
      %v3238 = vrot.slane %v3076, 1
      %v3239 = vsel %vm2880, %v3237, %v3238
      %v3248 = vunpack.c.l.b16 %v3226
      %v3249 = vunpack.c.l.b16 %v3227
      %v3250 = vunpack.c.l.b16 %v3228
      %v3251 = vunpack.c.l.b16 %v3229
      %v3252 = vunpack.c.l.b16 %v3230
      %v3253 = vunpack.c.l.b16 %v3231
      %v3254 = vunpack.c.l.b16 %v3232
      %v3255 = vunpack.c.l.b16 %v3233
      %v3256 = vpack.c.b16 %v3249, %v3248
      %v3257 = vpack.c.b16 %v3251, %v3250
      %v3258 = vpack.c.b16 %v3253, %v3252
      %v3259 = vpack.c.b16 %v3255, %v3254
      %v3265 = vsel %vm607, %v3239, 0
      %3267 = vmatprep.subr.bf16.mxu0 0
      %3268 = vmatpush1.bf16.msra.mxu0 %v3256
      %3269 = vmatprep.subr.bf16.mxu0 0
      %3270 = vmatpush1.bf16.msra.mxu0 %v3257
      %3271 = vmatprep.subr.bf16.mxu0 0
      %3272 = vmatpush1.bf16.msra.mxu0 %v3258
      %3273 = vmatprep.subr.bf16.mxu0 0
      %3274 = vmatpush1.bf16.msra.mxu0 %v3259
      %3275 = vmatprep.subr.bf16.mxu0 0
      %3276 = vmatpush1.bf16.msra.mxu0 0
      %3277 = vmatprep.subr.bf16.mxu0 0
      %3278 = vmatpush1.bf16.msra.mxu0 0
      %3279 = vmatprep.subr.bf16.mxu0 0
      %3280 = vmatpush1.bf16.msra.mxu0 0
      %3281 = vmatprep.subr.bf16.mxu0 0
      %3282 = vmatpush1.bf16.msra.mxu0 0
      %3283 = vmatprep.subr.bf16.mxu0 0
      %3284 = vmatpush1.bf16.msra.mxu0 0
      %3285 = vmatprep.subr.bf16.mxu0 0
      %3286 = vmatpush1.bf16.msra.mxu0 0
      %3287 = vmatprep.subr.bf16.mxu0 0
      %3288 = vmatpush1.bf16.msra.mxu0 0
      %3289 = vmatprep.subr.bf16.mxu0 0
      %3290 = vmatpush1.bf16.msra.mxu0 0
      %3291 = vmatprep.subr.bf16.mxu0 0
      %3292 = vmatpush1.bf16.msra.mxu0 0
      %3293 = vmatprep.subr.bf16.mxu0 0
      %3294 = vmatpush1.bf16.msra.mxu0 0
      %3295 = vmatprep.subr.bf16.mxu0 0
      %3296 = vmatpush1.bf16.msra.mxu0 0
      %3297 = vmatprep.subr.bf16.mxu0 0
      %3298 = vmatpush1.bf16.msra.mxu0 0
      %3299 = vmatprep.mubr.bf16.mxu0 0
      %3300 = vmatmul.mubr.bf16.gmra.mrb[0].mxu0 %v3265
      %v3301 = vpop.f32.mrb[0].mxu0
      %v3302 = vadd.f32 0.0, %v3301
      %v3303 = vpop.f32.mrb[0].mxu0
      %v3304 = vpop.f32.mrb[0].mxu0
      %v3305 = vadd.f32 0.0, %v3304
      %v3306 = vpop.f32.mrb[0].mxu0
      %3307 = vdwg.mxu0
      %v3308 = vadd.f32 %v3218, %v3302
      %v3309 = vadd.f32 %v3221, %v3305
      %v3310 = vsel %vm607, %v3308, 0.0
      %v3311 = vsel %vm607, %v3309, 0.0
      %v3312 = vadd.f32 %v3310, %v3311
      %3313 = vadd.xlane.f32.xlu0 %v3312
      %v3314 = vpop.xlane.xlu0 %3313
      %v3315 = vrot.slane %v3314, 4
      %v3316 = vadd.f32 %v3314, %v3315
      %v3317 = vrot.slane %v3316, 2
      %v3318 = vadd.f32 %v3316, %v3317
      %v3319 = vrot.slane %v3318, 1
      %v3320 = vadd.f32 %v3318, %v3319
      %s3321 = vtos %v3320
      %s3322 = smul.f32 %s3321, 0.0009765625
      %v3323 = vmul.f32 %v3308, %v3308
      %v3324 = vmul.f32 %v3309, %v3309
      %v3325 = vsel %vm607, %v3323, 0.0
      %v3326 = vsel %vm607, %v3324, 0.0
      %v3327 = vadd.f32 %v3325, %v3326
      %3328 = vadd.xlane.f32.xlu0 %v3327
      %v3329 = vpop.xlane.xlu0 %3328
      %v3330 = vrot.slane %v3329, 4
      %v3331 = vadd.f32 %v3329, %v3330
      %v3332 = vrot.slane %v3331, 2
      %v3333 = vadd.f32 %v3331, %v3332
      %v3334 = vrot.slane %v3333, 1
      %v3335 = vadd.f32 %v3333, %v3334
      %s3336 = vtos %v3335
      %s3337 = smul.f32 %s3336, 0.0009765625
      %s3338 = smul.f32 %s3322, %s3322
      %s3339 = ssub.f32 %s3337, %s3338
      %v3340 = vstv %s3322
      %v3341 = vsub.f32 %v3308, %v3340
      %v3342 = vsub.f32 %v3309, %v3340
      %s3343 = sadd.f32 %s3339, 1e-05
      %v3344 = vstv %s3343
      %v3345 = vrsqrt.pop %v3344
      %s3346 = vtos %v3345
      %v3347 = vstv %s3346
      %v3348 = vmul.f32 %v3341, %v3347
      %v3349 = vmul.f32 %v3342, %v3347
      %v3350 = vmul.f32 %v3348, %v2997
      %v3351 = vmul.f32 %v3349, %v2997
      %v3352 = vadd.f32 %v3350, %v3003
      %v3353 = vadd.f32 %v3351, %v3003
      %vm3354 = vcmp.ge.f32.partialorder %v3352, 0.0
      %vm3355 = vcmp.ge.f32.partialorder %v3353, 0.0
      %v3356 = vmul.f32 %v3011, %v3352
      %v3357 = vmul.f32 %v3011, %v3353
      %v3358 = vsel %vm3354, %v3352, %v3356
      %v3359 = vsel %vm3355, %v3353, %v3357
      %v3360 = vpack.c.bf16 %v3359, %v3358
      %v3362 = vunpack.c.l.b16 %v3360
      %v3363 = vunpack.c.h.b16 %v3360
      %v3364 = vpack.c.b16 %v3362, %v3362
      %v3365 = vpack.c.b16 %v3363, %v3363
      %v3367 = vshrl.u32 %v3364, 16
      %v3369 = vrot.slane %v3367, 7
      %v3370 = vshll.u32 %v3364, 16
      %v3372 = vor.u32 %v3369, %v3370
      %v3373 = vrot.slane %v3369, 4
      %v3375 = vshrl.u32 %v3365, 16
      %v3377 = vrot.slane %v3375, 7
      %v3378 = vshll.u32 %v3365, 16
      %v3380 = vor.u32 %v3377, %v3378
      %v3381 = vsel %vm2663, %v3373, %v3380
      %v3382 = vrot.slane %v3377, 4
      %v3386 = vsel %vm1599, %v3372, %v3048
      %3387 = vst [vmem:[#allocation4] sm:$0xf] %v3386
      %3388 = vst.msk [vmem:[#allocation4 + $0x4] sm:$0xf] %vm800, %v3381
      %v3389 = vld [vmem:[#allocation4 + $0x8] sm:$0x1]
      %v3390 = vsel %vm526, %v3382, %v3389
      %3391 = vst [vmem:[#allocation4 + $0x8] sm:$0x1] %v3390
      %v3392 = vld [vmem:[#allocation4] sm:$0xf]
      %v3393 = vld [vmem:[#allocation4 + $0x4] sm:$0xf]
      %s3394 = scalar_lea.vmem %s12, 192
      %v3395 = vld [vmem:[%s3394] sm:$0xf]
      %v3396 = vld [vmem:[%s3394 + $0x4] sm:$0xf]
      %v3397 = vld [vmem:[%s3394 + $0x8] sm:$0xf]
      %v3398 = vld [vmem:[%s3394 + $0xc] sm:$0xf]
      %v3399 = vld [vmem:[%s3394 + $0x10] sm:$0xf]
      %v3400 = vld [vmem:[%s3394 + $0x14] sm:$0xf]
      %v3401 = vld [vmem:[%s3394 + $0x18] sm:$0xf]
      %v3402 = vld [vmem:[%s3394 + $0x1c] sm:$0xf]
      %v3403 = vld [vmem:[#allocation4 + $0x8] sm:$0x1]
      %s3404 = scalar_lea.vmem %s12, 224
      %v3405 = vld [vmem:[%s3404] sm:$0xf]
      %v3406 = vld [vmem:[%s3404 + $0x4] sm:$0xf]
      %v3407 = vld [vmem:[%s3404 + $0x8] sm:$0xf]
      %v3408 = vld [vmem:[%s3404 + $0xc] sm:$0xf]
      %v3409 = vld [vmem:[%s3404 + $0x10] sm:$0xf]
      %v3410 = vld [vmem:[%s3404 + $0x14] sm:$0xf]
      %v3411 = vld [vmem:[%s3404 + $0x18] sm:$0xf]
      %v3412 = vld [vmem:[%s3404 + $0x1c] sm:$0xf]
      %v3416 = vunpack.c.l.b16 %v3392
      %v3417 = vunpack.c.l.b16 %v3393
      %v3418 = vunpack.c.l.b16 %v3403
      %v3419 = vpack.c.b16 %v3417, %v3416
      %v3420 = vpack.c.b16 %v3418, %v3418
      %v3422 = vshrl.u32 %v3419, 16
      %v3424 = vshll.u32 %v3419, 16
      %v3426 = vrot.slane %v3424, 1
      %v3427 = vor.u32 %v3422, %v3426
      %v3429 = vshll.u32 %v3420, 16
      %v3431 = vrot.slane %v3429, 1
      %v3432 = vsel %vm2719, %v3427, %v3431
      %v3441 = vunpack.c.l.b16 %v3405
      %v3442 = vunpack.c.l.b16 %v3406
      %v3443 = vunpack.c.l.b16 %v3407
      %v3444 = vunpack.c.l.b16 %v3408
      %v3445 = vunpack.c.l.b16 %v3409
      %v3446 = vunpack.c.l.b16 %v3410
      %v3447 = vunpack.c.l.b16 %v3411
      %v3448 = vunpack.c.l.b16 %v3412
      %v3449 = vpack.c.b16 %v3442, %v3441
      %v3450 = vpack.c.b16 %v3444, %v3443
      %v3451 = vpack.c.b16 %v3446, %v3445
      %v3452 = vpack.c.b16 %v3448, %v3447
      %v3458 = vsel %vm607, %v3432, 0
      %3460 = vmatprep.subr.bf16.mxu0 0
      %3461 = vmatpush1.bf16.msra.mxu0 %v3449
      %3462 = vmatprep.subr.bf16.mxu0 0
      %3463 = vmatpush1.bf16.msra.mxu0 %v3450
      %3464 = vmatprep.subr.bf16.mxu0 0
      %3465 = vmatpush1.bf16.msra.mxu0 %v3451
      %3466 = vmatprep.subr.bf16.mxu0 0
      %3467 = vmatpush1.bf16.msra.mxu0 %v3452
      %3468 = vmatprep.subr.bf16.mxu0 0
      %3469 = vmatpush1.bf16.msra.mxu0 0
      %3470 = vmatprep.subr.bf16.mxu0 0
      %3471 = vmatpush1.bf16.msra.mxu0 0
      %3472 = vmatprep.subr.bf16.mxu0 0
      %3473 = vmatpush1.bf16.msra.mxu0 0
      %3474 = vmatprep.subr.bf16.mxu0 0
      %3475 = vmatpush1.bf16.msra.mxu0 0
      %3476 = vmatprep.subr.bf16.mxu0 0
      %3477 = vmatpush1.bf16.msra.mxu0 0
      %3478 = vmatprep.subr.bf16.mxu0 0
      %3479 = vmatpush1.bf16.msra.mxu0 0
      %3480 = vmatprep.subr.bf16.mxu0 0
      %3481 = vmatpush1.bf16.msra.mxu0 0
      %3482 = vmatprep.subr.bf16.mxu0 0
      %3483 = vmatpush1.bf16.msra.mxu0 0
      %3484 = vmatprep.subr.bf16.mxu0 0
      %3485 = vmatpush1.bf16.msra.mxu0 0
      %3486 = vmatprep.subr.bf16.mxu0 0
      %3487 = vmatpush1.bf16.msra.mxu0 0
      %3488 = vmatprep.subr.bf16.mxu0 0
      %3489 = vmatpush1.bf16.msra.mxu0 0
      %3490 = vmatprep.subr.bf16.mxu0 0
      %3491 = vmatpush1.bf16.msra.mxu0 0
      %3492 = vmatprep.mubr.bf16.mxu0 0
      %3493 = vmatmul.mubr.bf16.gmra.mrb[0].mxu0 %v3458
      %v3494 = vpop.f32.mrb[0].mxu0
      %v3495 = vadd.f32 0.0, %v3494
      %v3496 = vpop.f32.mrb[0].mxu0
      %v3497 = vpop.f32.mrb[0].mxu0
      %v3498 = vadd.f32 0.0, %v3497
      %v3499 = vpop.f32.mrb[0].mxu0
      %3500 = vdwg.mxu0
      %v3509 = vunpack.c.l.b16 %v3395
      %v3510 = vunpack.c.l.b16 %v3396
      %v3511 = vunpack.c.l.b16 %v3397
      %v3512 = vunpack.c.l.b16 %v3398
      %v3513 = vunpack.c.l.b16 %v3399
      %v3514 = vunpack.c.l.b16 %v3400
      %v3515 = vunpack.c.l.b16 %v3401
      %v3516 = vunpack.c.l.b16 %v3402
      %v3517 = vpack.c.b16 %v3510, %v3509
      %v3518 = vpack.c.b16 %v3512, %v3511
      %v3519 = vpack.c.b16 %v3514, %v3513
      %v3520 = vpack.c.b16 %v3516, %v3515
      %v3525 = vsel %vm607, %v3419, 0
      %3527 = vmatprep.subr.bf16.mxu0 0
      %3528 = vmatpush1.bf16.msra.mxu0 %v3517
      %3529 = vmatprep.subr.bf16.mxu0 0
      %3530 = vmatpush1.bf16.msra.mxu0 %v3518
      %3531 = vmatprep.subr.bf16.mxu0 0
      %3532 = vmatpush1.bf16.msra.mxu0 %v3519
      %3533 = vmatprep.subr.bf16.mxu0 0
      %3534 = vmatpush1.bf16.msra.mxu0 %v3520
      %3535 = vmatprep.subr.bf16.mxu0 0
      %3536 = vmatpush1.bf16.msra.mxu0 0
      %3537 = vmatprep.subr.bf16.mxu0 0
      %3538 = vmatpush1.bf16.msra.mxu0 0
      %3539 = vmatprep.subr.bf16.mxu0 0
      %3540 = vmatpush1.bf16.msra.mxu0 0
      %3541 = vmatprep.subr.bf16.mxu0 0
      %3542 = vmatpush1.bf16.msra.mxu0 0
      %3543 = vmatprep.subr.bf16.mxu0 0
      %3544 = vmatpush1.bf16.msra.mxu0 0
      %3545 = vmatprep.subr.bf16.mxu0 0
      %3546 = vmatpush1.bf16.msra.mxu0 0
      %3547 = vmatprep.subr.bf16.mxu0 0
      %3548 = vmatpush1.bf16.msra.mxu0 0
      %3549 = vmatprep.subr.bf16.mxu0 0
      %3550 = vmatpush1.bf16.msra.mxu0 0
      %3551 = vmatprep.subr.bf16.mxu0 0
      %3552 = vmatpush1.bf16.msra.mxu0 0
      %3553 = vmatprep.subr.bf16.mxu0 0
      %3554 = vmatpush1.bf16.msra.mxu0 0
      %3555 = vmatprep.subr.bf16.mxu0 0
      %3556 = vmatpush1.bf16.msra.mxu0 0
      %3557 = vmatprep.subr.bf16.mxu0 0
      %3558 = vmatpush1.bf16.msra.mxu0 0
      %3559 = vmatprep.mubr.bf16.mxu0 0
      %3560 = vmatmul.mubr.bf16.gmra.mrb[0].mxu0 %v3525
      %v3561 = vpop.f32.mrb[0].mxu0
      %v3562 = vadd.f32 %v3495, %v3561
      %v3563 = vpop.f32.mrb[0].mxu0
      %v3564 = vpop.f32.mrb[0].mxu0
      %v3565 = vadd.f32 %v3498, %v3564
      %v3566 = vpop.f32.mrb[0].mxu0
      %3567 = vdwg.mxu0
      %v3568 = vld [vmem:[#allocation4] sm:$0xe]
      %s3569 = scalar_lea.vmem %s12, 256
      %v3570 = vld [vmem:[%s3569] sm:$0xf]
      %v3571 = vld [vmem:[%s3569 + $0x4] sm:$0xf]
      %v3572 = vld [vmem:[%s3569 + $0x8] sm:$0xf]
      %v3573 = vld [vmem:[%s3569 + $0xc] sm:$0xf]
      %v3574 = vld [vmem:[%s3569 + $0x10] sm:$0xf]
      %v3575 = vld [vmem:[%s3569 + $0x14] sm:$0xf]
      %v3576 = vld [vmem:[%s3569 + $0x18] sm:$0xf]
      %v3577 = vld [vmem:[%s3569 + $0x1c] sm:$0xf]
      %v3579 = vunpack.c.l.b16 %v3568
      %v3580 = vpack.c.b16 %v3417, %v3579
      %v3581 = vrot.slane %v3580, 1
      %v3582 = vrot.slane %v3420, 1
      %v3583 = vsel %vm2880, %v3581, %v3582
      %v3592 = vunpack.c.l.b16 %v3570
      %v3593 = vunpack.c.l.b16 %v3571
      %v3594 = vunpack.c.l.b16 %v3572
      %v3595 = vunpack.c.l.b16 %v3573
      %v3596 = vunpack.c.l.b16 %v3574
      %v3597 = vunpack.c.l.b16 %v3575
      %v3598 = vunpack.c.l.b16 %v3576
      %v3599 = vunpack.c.l.b16 %v3577
      %v3600 = vpack.c.b16 %v3593, %v3592
      %v3601 = vpack.c.b16 %v3595, %v3594
      %v3602 = vpack.c.b16 %v3597, %v3596
      %v3603 = vpack.c.b16 %v3599, %v3598
      %v3609 = vsel %vm607, %v3583, 0
      %3611 = vmatprep.subr.bf16.mxu0 0
      %3612 = vmatpush1.bf16.msra.mxu0 %v3600
      %3613 = vmatprep.subr.bf16.mxu0 0
      %3614 = vmatpush1.bf16.msra.mxu0 %v3601
      %3615 = vmatprep.subr.bf16.mxu0 0
      %3616 = vmatpush1.bf16.msra.mxu0 %v3602
      %3617 = vmatprep.subr.bf16.mxu0 0
      %3618 = vmatpush1.bf16.msra.mxu0 %v3603
      %3619 = vmatprep.subr.bf16.mxu0 0
      %3620 = vmatpush1.bf16.msra.mxu0 0
      %3621 = vmatprep.subr.bf16.mxu0 0
      %3622 = vmatpush1.bf16.msra.mxu0 0
      %3623 = vmatprep.subr.bf16.mxu0 0
      %3624 = vmatpush1.bf16.msra.mxu0 0
      %3625 = vmatprep.subr.bf16.mxu0 0
      %3626 = vmatpush1.bf16.msra.mxu0 0
      %3627 = vmatprep.subr.bf16.mxu0 0
      %3628 = vmatpush1.bf16.msra.mxu0 0
      %3629 = vmatprep.subr.bf16.mxu0 0
      %3630 = vmatpush1.bf16.msra.mxu0 0
      %3631 = vmatprep.subr.bf16.mxu0 0
      %3632 = vmatpush1.bf16.msra.mxu0 0
      %3633 = vmatprep.subr.bf16.mxu0 0
      %3634 = vmatpush1.bf16.msra.mxu0 0
      %3635 = vmatprep.subr.bf16.mxu0 0
      %3636 = vmatpush1.bf16.msra.mxu0 0
      %3637 = vmatprep.subr.bf16.mxu0 0
      %3638 = vmatpush1.bf16.msra.mxu0 0
      %3639 = vmatprep.subr.bf16.mxu0 0
      %3640 = vmatpush1.bf16.msra.mxu0 0
      %3641 = vmatprep.subr.bf16.mxu0 0
      %3642 = vmatpush1.bf16.msra.mxu0 0
      %3643 = vmatprep.mubr.bf16.mxu0 0
      %3644 = vmatmul.mubr.bf16.gmra.mrb[0].mxu0 %v3609
      %v3645 = vpop.f32.mrb[0].mxu0
      %v3646 = vadd.f32 0.0, %v3645
      %v3647 = vpop.f32.mrb[0].mxu0
      %v3648 = vpop.f32.mrb[0].mxu0
      %v3649 = vadd.f32 0.0, %v3648
      %v3650 = vpop.f32.mrb[0].mxu0
      %3651 = vdwg.mxu0
      %v3652 = vadd.f32 %v3562, %v3646
      %v3653 = vadd.f32 %v3565, %v3649
      %v3654 = vsel %vm607, %v3652, 0.0
      %v3655 = vsel %vm607, %v3653, 0.0
      %v3656 = vadd.f32 %v3654, %v3655
      %3657 = vadd.xlane.f32.xlu0 %v3656
      %v3658 = vpop.xlane.xlu0 %3657
      %v3659 = vrot.slane %v3658, 4
      %v3660 = vadd.f32 %v3658, %v3659
      %v3661 = vrot.slane %v3660, 2
      %v3662 = vadd.f32 %v3660, %v3661
      %v3663 = vrot.slane %v3662, 1
      %v3664 = vadd.f32 %v3662, %v3663
      %s3665 = vtos %v3664
      %s3666 = smul.f32 %s3665, 0.0009765625
      %v3667 = vmul.f32 %v3652, %v3652
      %v3668 = vmul.f32 %v3653, %v3653
      %v3669 = vsel %vm607, %v3667, 0.0
      %v3670 = vsel %vm607, %v3668, 0.0
      %v3671 = vadd.f32 %v3669, %v3670
      %3672 = vadd.xlane.f32.xlu0 %v3671
      %v3673 = vpop.xlane.xlu0 %3672
      %v3674 = vrot.slane %v3673, 4
      %v3675 = vadd.f32 %v3673, %v3674
      %v3676 = vrot.slane %v3675, 2
      %v3677 = vadd.f32 %v3675, %v3676
      %v3678 = vrot.slane %v3677, 1
      %v3679 = vadd.f32 %v3677, %v3678
      %s3680 = vtos %v3679
      %s3681 = smul.f32 %s3680, 0.0009765625
      %s3682 = smul.f32 %s3666, %s3666
      %s3683 = ssub.f32 %s3681, %s3682
      %v3684 = vstv %s3666
      %v3685 = vsub.f32 %v3652, %v3684
      %v3686 = vsub.f32 %v3653, %v3684
      %s3687 = sadd.f32 %s3683, 1e-05
      %v3688 = vstv %s3687
      %v3689 = vrsqrt.pop %v3688
      %s3690 = vtos %v3689
      %v3691 = vstv %s3690
      %v3692 = vmul.f32 %v3685, %v3691
      %v3693 = vmul.f32 %v3686, %v3691
      %v3694 = vmul.f32 %v3692, %v2997
      %v3695 = vmul.f32 %v3693, %v2997
      %v3696 = vadd.f32 %v3694, %v3003
      %v3697 = vadd.f32 %v3695, %v3003
      %v3698 = vadd.f32 %v3696, %v2643
      %v3699 = vadd.f32 %v3697, %v2646
      %vm3700 = vcmp.ge.f32.partialorder %v3698, 0.0
      %vm3701 = vcmp.ge.f32.partialorder %v3699, 0.0
      %v3702 = vmul.f32 %v3011, %v3698
      %v3703 = vmul.f32 %v3011, %v3699
      %v3704 = vsel %vm3700, %v3698, %v3702
      %v3705 = vsel %vm3701, %v3699, %v3703
      %3706 = vst.msk [vmem:[%s518] sm:$0xff] %vm607, %v3704
      %3707 = vst.msk [vmem:[%s518 + $0x8] sm:$0xff] %vm607, %v3705
      %p3708 = scmp.lt.s32.totalorder %s25, 1
      %s3709 = scalar_select %p3708, %s25, 1
      %s3710 = smul.addr %s3709, 2
      %s3711 = smul.addr %s3710, 8
      %s3712 = scalar_lea.vmem %s14, %s3711
      // Predicated region
      $region77: #{decoder_forward.1} parent=75 // pred_check
        %p3713 = pneg %p357
      $region78: #{decoder_forward.1} parent=75 // pred_check_branch
        %3715 = sbr.rel (%p3713) target = $region80
      $region79: #{decoder_forward.1} parent=75 // pred_region
        _
      $region80: #{decoder_forward.1} parent=75 // pred_fallthru
        _
    $region76: #{decoder_forward.1} parent=5 // pred_fallthru
      _
    %p3716 = scmp.le.s32.totalorder 2, %s20
    // Predicated region
    $region81: #{decoder_forward.1} parent=5 // pred_check
      %p3717 = pneg %p3716
    $region82: #{decoder_forward.1} parent=5 // pred_check_branch
      %3719 = sbr.rel (%p3717) target = $region84
    $region83: #{decoder_forward.1} parent=5 // pred_region
      %s3720 = ssub.s32 %s20, 2
      // Predicated region
      $region85: #{decoder_forward.1} parent=83 // pred_check
        %p3721 = pneg %p363
      $region86: #{decoder_forward.1} parent=83 // pred_check_branch
        %3723 = sbr.rel (%p3721) target = $region88
      $region87: #{decoder_forward.1} parent=83 // pred_region
        %p3724 = scmp.lt.s32.totalorder %s26, 1
        %s3725 = scalar_select %p3724, %s26, 1
        %s3726 = smul.addr %s3725, 2
        %s3727 = smul.addr %s3726, 8
        %s3728 = scalar_lea.vmem %s14, %s3727
      $region88: #{decoder_forward.1} parent=83 // pred_fallthru
        _
    $region84: #{decoder_forward.1} parent=5 // pred_fallthru
      _
  $region6: #{decoder_forward.1} parent=0 // loop_footer
    %s24 = sadd.s32 1, %s20
  $region7: #{decoder_forward.1} parent=0 // loop_footer_branch
    %19 = sbr.rel target = $region3
  $region8: #{decoder_forward.1} parent=0 // loop_exit
    _

</llo_original>
